<compile_context>
chip_gen: v7x
topology: tpu7x:2x2x1
jax: 0.10.0
libtpu: 0.0.40
codegen_flags: <defaults>
</compile_context>

<pallas_src>
import functools

import jax
import jax.numpy as jnp
from jax.experimental import pallas as pl
from jax.experimental.pallas import tpu as pltpu

# ---------------- small config (scaled-down but structurally faithful) -------
B = 2               # batch of videos
T = 4               # temporal_seq_len (frames per video)
IMG = 16            # H = W
C = 3               # RGB
PATCH = 4           # backbone downsample -> 4x4 feature map per frame
FH = FW = IMG // PATCH
RESNET_DIM = 64     # stand-in for 2048
POS_LEN = 16        # stand-in for position_emb_len = 48
S = T * FH * FW     # spatial_temporal_seq_len (256 in the original, 64 here)
D = 64              # feature_dimension == model_dimension
NHEAD = 4
DH = D // NHEAD
FFN = D             # dim_feedforward = model_dimension in LAVA
NUM_LAYERS = 2      # LAVA uses 8; reduced for the small demo
NUM_CLASSES = 16    # 700 in the original
EPS = 1e-5

PPC = PATCH * PATCH * C          # 48 values per patch
FM_HID = RESNET_DIM // 2         # 32
M = B * S                        # 128 rows -> full MXU M dimension
HEAD_PAD = 128                   # fc1 output padded to 128 lanes


# ---------------- single fused Pallas kernel ---------------------------------
def _fused_forward_kernel(
    patches_ref, bbw_ref, bbb_ref, w1a_ref, posb_ref, bns_ref, bnt_ref,
    fmw2_ref, fmb2_ref, wp_ref, bp_ref,
    wqkv_ref, bqkv_ref, wo_ref, bo_ref, ln1g_ref, ln1b_ref,
    fw1_ref, fb1_ref, fw2_ref, fb2_ref, ln2g_ref, ln2b_ref,
    g2_ref, e2_ref, fcw_ref, fcb_ref,
    o_ref, *, eps, inv_s):
    bf = jnp.bfloat16
    f32 = jnp.float32

    # ---------- stem: backbone patch-embed -> feature_mlp -> v_projection ----
    feat = jnp.dot(patches_ref[...], bbw_ref[...],
                   preferred_element_type=f32) + bbb_ref[...]
    feat = jnp.maximum(feat, 0.0)
    # feature_mlp Linear1: backbone half as a matmul, positional half folded
    # into a precomputed bias table (pos_rows @ fm_w1b + fm_b1).
    h1 = jnp.dot(feat.astype(bf), w1a_ref[...],
                 preferred_element_type=f32) + posb_ref[...]
    # Dropout(eval)=id -> BatchNorm1d(S) (per-row scale/shift) -> ReLU
    h1 = jnp.maximum(h1 * bns_ref[...] + bnt_ref[...], 0.0)
    feats = jnp.dot(h1.astype(bf), fmw2_ref[...],
                    preferred_element_type=f32) + fmb2_ref[...]
    # v_projection Linear (BatchNorm1d(D) folded into weight/bias) -> ReLU
    x = jnp.dot(feats.astype(bf), wp_ref[...],
                preferred_element_type=f32) + bp_ref[...]
    x = jnp.maximum(x, 0.0)                       # (B*S, D) f32, VMEM-resident

    g2 = g2_ref[...]                              # (2D, 2*NHEAD) bf16 0/1
    e2 = e2_ref[...]                              # (2*NHEAD, 2D) bf16 0/1

    # ---------- transformer encoder layers (post-norm), fully fused ----------
    # Attention runs over the batch axis (length B=2, batch_first=False in the
    # reference); rows 0..S-1 are batch 0, rows S..2S-1 are batch 1.
    for l in range(NUM_LAYERS):
        qkv = jnp.dot(x.astype(bf), wqkv_ref[l],
                      preferred_element_type=f32) + bqkv_ref[l]   # (2S, 3D)
        q = qkv[:, 0:D]                    # 1/sqrt(DH) already folded into wq/bq
        k = qkv[:, D:2 * D]
        v = qkv[:, 2 * D:3 * D]

        # lane-pack both key/value batches: [k0 | k1], [v0 | v1] -> tile rows
        k_lanes = jnp.concatenate([k[0:S, :], k[S:2 * S, :]], axis=1)   # (S, 2D)
        v_lanes = jnp.concatenate([v[0:S, :], v[S:2 * S, :]], axis=1)   # (S, 2D)
        k_t = jnp.concatenate([k_lanes, k_lanes], axis=0)               # (2S, 2D)
        v_t = jnp.concatenate([v_lanes, v_lanes], axis=0)               # (2S, 2D)
        q_t = jnp.concatenate([q, q], axis=1)                           # (2S, 2D)

        # all per-head scores in ONE bf16 matmul: (2S,2D) x (2D, 2*NHEAD)
        qk = (q_t * k_t).astype(bf)
        scores = jnp.dot(qk, g2, preferred_element_type=f32)            # (2S, 2H)
        s0 = scores[:, 0:NHEAD]                 # key batch 0
        s1 = scores[:, NHEAD:2 * NHEAD]         # key batch 1
        mx = jnp.maximum(s0, s1)
        e0 = jnp.exp(s0 - mx)
        e1 = jnp.exp(s1 - mx)
        inv = pl.reciprocal(e0 + e1, approx=True)                       # EUP
        p = jnp.concatenate([e0 * inv, e1 * inv], axis=1)               # (2S, 2H)

        # expand softmax weights to lanes in ONE matmul and combine with V
        pexp = jnp.dot(p.astype(bf), e2, preferred_element_type=f32)    # (2S, 2D)
        prod = pexp * v_t
        attn_in = prod[:, 0:D] + prod[:, D:2 * D]                       # (2S, D)

        attn = jnp.dot(attn_in.astype(bf), wo_ref[l],
                       preferred_element_type=f32) + bo_ref[l]
        y = x + attn                              # residual 1 (post-norm)
        mu = jnp.mean(y, axis=-1, keepdims=True)
        var = jnp.mean(jnp.square(y - mu), axis=-1, keepdims=True)
        h = (y - mu) * jax.lax.rsqrt(var + eps) * ln1g_ref[l] + ln1b_ref[l]
        f = jnp.dot(h.astype(bf), fw1_ref[l],
                    preferred_element_type=f32) + fb1_ref[l]
        f = jnp.maximum(f, 0.0)
        f = jnp.dot(f.astype(bf), fw2_ref[l],
                    preferred_element_type=f32) + fb2_ref[l]
        z = h + f                                 # residual 2
        mu2 = jnp.mean(z, axis=-1, keepdims=True)
        var2 = jnp.mean(jnp.square(z - mu2), axis=-1, keepdims=True)
        x = (z - mu2) * jax.lax.rsqrt(var2 + eps) * ln2g_ref[l] + ln2b_ref[l]

    # ---------- head: mean over S (dim=1) per video + fc1 (padded to 128) ----
    xm0 = jnp.sum(x[0:S, :], axis=0, keepdims=True) * inv_s
    xm1 = jnp.sum(x[S:2 * S, :], axis=0, keepdims=True) * inv_s
    xm = jnp.concatenate([xm0, xm1], axis=0)                  # (B, D)
    o_ref[...] = jnp.dot(xm.astype(bf), fcw_ref[...],
                         preferred_element_type=f32) + fcb_ref[...]


# ---------------- pallas_call wrapper (one call, grid=(1,)) ------------------
def fused_forward(patches, q):
    args = (patches, q["backbone_w"], q["backbone_b"], q["fm_w1a"],
            q["pos_bias"], q["fm_bn_scale_rows"], q["fm_bn_shift_rows"],
            q["fm_w2"], q["fm_b2"], q["proj_w"], q["proj_b"],
            q["enc_wqkv"], q["enc_bqkv"], q["enc_wo"], q["enc_bo"],
            q["enc_ln1_g"], q["enc_ln1_b"],
            q["enc_w1"], q["enc_b1"], q["enc_w2"], q["enc_b2"],
            q["enc_ln2_g"], q["enc_ln2_b"],
            q["G2"], q["E2"], q["fc1_w"], q["fc1_b"])

    def spec(arr):
        shp = tuple(arr.shape)
        if len(shp) == 2:
            return pl.BlockSpec(shp, lambda i: (0, 0))
        return pl.BlockSpec(shp, lambda i: (0, 0, 0))

    return pl.pallas_call(
        functools.partial(_fused_forward_kernel, eps=EPS, inv_s=1.0 / S),
        out_shape=jax.ShapeDtypeStruct((B, HEAD_PAD), jnp.float32),
        grid=(1,),
        in_specs=[spec(a) for a in args],
        out_specs=pl.BlockSpec((B, HEAD_PAD), lambda i: (0, 0)),
        compiler_params=pltpu.CompilerParams(
            dimension_semantics=("arbitrary",)),
    )(*args)


# ---------------- parameter init (deterministic, f32 "PyTorch-style") --------
def init_params(key):
    keys = iter(jax.random.split(key, 64))

    def lin(kin, kout, scale=0.02):
        w = jax.random.normal(next(keys), (kin, kout), jnp.float32) * scale
        return w, jnp.zeros((kout,), jnp.float32)

    p = {}
    p["backbone_w"], p["backbone_b"] = lin(PPC, RESNET_DIM)
    p["pos_emb"] = jax.random.normal(next(keys), (T, FH, FW, POS_LEN),
                                     jnp.float32) * 0.02
    p["fm_w1"], p["fm_b1"] = lin(RESNET_DIM + POS_LEN, FM_HID)
    p["fm_bn_g"] = jnp.ones((S,), jnp.float32)
    p["fm_bn_b"] = jnp.zeros((S,), jnp.float32)
    p["fm_bn_rm"] = jnp.zeros((S,), jnp.float32)
    p["fm_bn_rv"] = jnp.ones((S,), jnp.float32)
    p["fm_w2"], p["fm_b2"] = lin(FM_HID, D)
    p["proj_w"], p["proj_b"] = lin(D, D)
    p["proj_bn_g"] = jnp.ones((D,), jnp.float32)
    p["proj_bn_b"] = jnp.zeros((D,), jnp.float32)
    p["proj_bn_rm"] = jnp.zeros((D,), jnp.float32)
    p["proj_bn_rv"] = jnp.ones((D,), jnp.float32)
    layers = []
    for _ in range(NUM_LAYERS):
        lp = {}
        lp["wq"], lp["bq"] = lin(D, D)
        lp["wk"], lp["bk"] = lin(D, D)
        lp["wv"], lp["bv"] = lin(D, D)
        lp["wo"], lp["bo"] = lin(D, D)
        lp["ln1_g"] = jnp.ones((D,), jnp.float32)
        lp["ln1_b"] = jnp.zeros((D,), jnp.float32)
        lp["w1"], lp["b1"] = lin(D, FFN)
        lp["w2"], lp["b2"] = lin(FFN, D)
        lp["ln2_g"] = jnp.ones((D,), jnp.float32)
        lp["ln2_b"] = jnp.zeros((D,), jnp.float32)
        layers.append(lp)
    p["layers"] = layers
    p["fc1_w"], p["fc1_b"] = lin(D, NUM_CLASSES)
    return p


# ---------------- one-time inference prep (folds + constants + bf16 cast) ----
def prepare_inference_params(p):
    bf = jnp.bfloat16
    q = {}
    q["backbone_w"] = p["backbone_w"].astype(bf)
    q["backbone_b"] = p["backbone_b"].reshape(1, -1)

    # positional contribution precomputed: pos_rows @ fm_w1b + fm_b1
    pos2d = p["pos_emb"].reshape(S, POS_LEN)
    pos_rows = jnp.tile(pos2d, (B, 1))                       # (B*S, POS_LEN)
    q["pos_bias"] = pos_rows @ p["fm_w1"][RESNET_DIM:] + p["fm_b1"]
    q["fm_w1a"] = p["fm_w1"][:RESNET_DIM].astype(bf)

    # BatchNorm1d(S): per-row (row = b*S + s -> channel s) scale/shift
    bn_s = p["fm_bn_g"] / jnp.sqrt(p["fm_bn_rv"] + EPS)
    bn_t = p["fm_bn_b"] - p["fm_bn_rm"] * bn_s
    q["fm_bn_scale_rows"] = jnp.tile(bn_s, (B,)).reshape(B * S, 1)
    q["fm_bn_shift_rows"] = jnp.tile(bn_t, (B,)).reshape(B * S, 1)
    q["fm_w2"] = p["fm_w2"].astype(bf)
    q["fm_b2"] = p["fm_b2"].reshape(1, -1)

    # v_projection BatchNorm1d(D) folded into the Linear weight/bias
    ps = p["proj_bn_g"] / jnp.sqrt(p["proj_bn_rv"] + EPS)
    pt = p["proj_bn_b"] - p["proj_bn_rm"] * ps
    q["proj_w"] = (p["proj_w"] * ps[None, :]).astype(bf)
    q["proj_b"] = (p["proj_b"] * ps + pt).reshape(1, -1)

    # encoder layers: fused QKV (1/sqrt(DH) folded into q columns), stacked
    scale = 1.0 / (DH ** 0.5)
    stk = {k: [] for k in ("wqkv", "bqkv", "wo", "bo", "ln1g", "ln1b",
                           "w1", "b1", "w2", "b2", "ln2g", "ln2b")}
    for lp in p["layers"]:
        stk["wqkv"].append(jnp.concatenate(
            [lp["wq"] * scale, lp["wk"], lp["wv"]], axis=1))
        stk["bqkv"].append(jnp.concatenate(
            [lp["bq"] * scale, lp["bk"], lp["bv"]]).reshape(1, -1))
        stk["wo"].append(lp["wo"]); stk["bo"].append(lp["bo"].reshape(1, -1))
        stk["ln1g"].append(lp["ln1_g"].reshape(1, -1))
        stk["ln1b"].append(lp["ln1_b"].reshape(1, -1))
        stk["w1"].append(lp["w1"]); stk["b1"].append(lp["b1"].reshape(1, -1))
        stk["w2"].append(lp["w2"]); stk["b2"].append(lp["b2"].reshape(1, -1))
        stk["ln2g"].append(lp["ln2_g"].reshape(1, -1))
        stk["ln2b"].append(lp["ln2_b"].reshape(1, -1))
    q["enc_wqkv"] = jnp.stack(stk["wqkv"]).astype(bf)     # (L, D, 3D)
    q["enc_bqkv"] = jnp.stack(stk["bqkv"])                # (L, 1, 3D)
    q["enc_wo"] = jnp.stack(stk["wo"]).astype(bf)
    q["enc_bo"] = jnp.stack(stk["bo"])
    q["enc_ln1_g"] = jnp.stack(stk["ln1g"])
    q["enc_ln1_b"] = jnp.stack(stk["ln1b"])
    q["enc_w1"] = jnp.stack(stk["w1"]).astype(bf)
    q["enc_b1"] = jnp.stack(stk["b1"])
    q["enc_w2"] = jnp.stack(stk["w2"]).astype(bf)
    q["enc_b2"] = jnp.stack(stk["b2"])
    q["enc_ln2_g"] = jnp.stack(stk["ln2g"])
    q["enc_ln2_b"] = jnp.stack(stk["ln2b"])

    # hoisted head-group selector constants (values exactly 0/1)
    rows = jnp.arange(2 * D)
    cols = jnp.arange(2 * NHEAD)
    jr = rows // D
    hr = (rows % D) // DH
    jc = cols // NHEAD
    hc = cols % NHEAD
    g2 = ((jr[:, None] == jc[None, :]) & (hr[:, None] == hc[None, :]))
    q["G2"] = g2.astype(bf)                               # (2D, 2*NHEAD)
    q["E2"] = g2.T.astype(bf)                             # (2*NHEAD, 2D)

    # fc1 padded to 128 lanes (lane-dense store); slice outside the kernel
    fcw = jnp.zeros((D, HEAD_PAD), jnp.float32).at[:, :NUM_CLASSES].set(p["fc1_w"])
    fcb = jnp.zeros((1, HEAD_PAD), jnp.float32).at[:, :NUM_CLASSES].set(
        p["fc1_b"].reshape(1, -1))
    q["fc1_w"] = fcw.astype(bf)
    q["fc1_b"] = fcb
    return q


# ---------------- model forward (ONE fused pallas_call) ----------------------
@jax.jit
def supervised_video_classifier_forward(a, v, t, prepped):
    del a, t  # forward() only uses the video modality
    Bv = v.shape[0]

    # Patch layout: one small reshape/swapaxes with 12-element (P*C) minor
    # chunks (no channel-minor transpose).
    # TODO(synk): at real ResNet scale this layout step should move into the
    #             backbone kernel (index_map / in-kernel gather), not XLA.
    pr = v.reshape(Bv * T, FH, PATCH, FW, PATCH * C)
    pr = jnp.swapaxes(pr, 2, 3)
    patches = pr.reshape(Bv * S, PPC).astype(jnp.bfloat16)

    logits_padded = fused_forward(patches, prepped)        # (B, 128)
    return logits_padded[:, :NUM_CLASSES]                  # (B, NUM_CLASSES)


# ---------------- demo --------------------------------------------------------
if __name__ == "__main__":
    key = jax.random.PRNGKey(0)
    kv, ka, kt, kp = jax.random.split(key, 4)
    v = jax.random.normal(kv, (B, T, IMG, IMG, C), jnp.float32)
    a = jax.random.normal(ka, (B, 8, 8), jnp.float32)   # unused by forward
    t = jax.random.normal(kt, (B, D), jnp.float32)      # unused by forward
    params = init_params(kp)
    prepped = prepare_inference_params(params)           # one-time fold + bf16

    pred = supervised_video_classifier_forward(a, v, t, prepped)
    pred = jax.block_until_ready(pred)
    assert pred.shape == (B, NUM_CLASSES)
    assert bool(jnp.all(jnp.isfinite(pred)))
    print("KERNEL_OK")
</pallas_src>

<mosaic_0001>
module attributes {stable_mosaic.version = 11 : i64} {
  func.func @_fused_forward_kernel(%arg0: i32, %arg1: memref<128x48xbf16, #tpu.memory_space<vmem>>, %arg2: memref<48x64xbf16, #tpu.memory_space<vmem>>, %arg3: memref<1x64xf32, #tpu.memory_space<vmem>>, %arg4: memref<64x32xbf16, #tpu.memory_space<vmem>>, %arg5: memref<128x32xf32, #tpu.memory_space<vmem>>, %arg6: memref<128x1xf32, #tpu.memory_space<vmem>>, %arg7: memref<128x1xf32, #tpu.memory_space<vmem>>, %arg8: memref<32x64xbf16, #tpu.memory_space<vmem>>, %arg9: memref<1x64xf32, #tpu.memory_space<vmem>>, %arg10: memref<64x64xbf16, #tpu.memory_space<vmem>>, %arg11: memref<1x64xf32, #tpu.memory_space<vmem>>, %arg12: memref<2x64x192xbf16, #tpu.memory_space<vmem>>, %arg13: memref<2x1x192xf32, #tpu.memory_space<vmem>>, %arg14: memref<2x64x64xbf16, #tpu.memory_space<vmem>>, %arg15: memref<2x1x64xf32, #tpu.memory_space<vmem>>, %arg16: memref<2x1x64xf32, #tpu.memory_space<vmem>>, %arg17: memref<2x1x64xf32, #tpu.memory_space<vmem>>, %arg18: memref<2x64x64xbf16, #tpu.memory_space<vmem>>, %arg19: memref<2x1x64xf32, #tpu.memory_space<vmem>>, %arg20: memref<2x64x64xbf16, #tpu.memory_space<vmem>>, %arg21: memref<2x1x64xf32, #tpu.memory_space<vmem>>, %arg22: memref<2x1x64xf32, #tpu.memory_space<vmem>>, %arg23: memref<2x1x64xf32, #tpu.memory_space<vmem>>, %arg24: memref<128x8xbf16, #tpu.memory_space<vmem>>, %arg25: memref<8x128xbf16, #tpu.memory_space<vmem>>, %arg26: memref<64x128xbf16, #tpu.memory_space<vmem>>, %arg27: memref<1x128xf32, #tpu.memory_space<vmem>>, %arg28: memref<2x128xf32, #tpu.memory_space<vmem>>) attributes {dimension_semantics = [#tpu.dimension_semantics<arbitrary>], iteration_bounds = array<i64: 1>, scalar_prefetch = 0 : i64, scratch_operands = 0 : i64, tpu.core_type = #tpu.core_type<tc>, window_params = [{pipeline_mode = #tpu.pipeline_mode<synchronous>, transform_indices = @transform_0, window_bounds = array<i64: 128, 48>}, {pipeline_mode = #tpu.pipeline_mode<synchronous>, transform_indices = @transform_1, window_bounds = array<i64: 48, 64>}, {pipeline_mode = #tpu.pipeline_mode<synchronous>, transform_indices = @transform_2, window_bounds = array<i64: 1, 64>}, {pipeline_mode = #tpu.pipeline_mode<synchronous>, transform_indices = @transform_3, window_bounds = array<i64: 64, 32>}, {pipeline_mode = #tpu.pipeline_mode<synchronous>, transform_indices = @transform_4, window_bounds = array<i64: 128, 32>}, {pipeline_mode = #tpu.pipeline_mode<synchronous>, transform_indices = @transform_5, window_bounds = array<i64: 128, 1>}, {pipeline_mode = #tpu.pipeline_mode<synchronous>, transform_indices = @transform_6, window_bounds = array<i64: 128, 1>}, {pipeline_mode = #tpu.pipeline_mode<synchronous>, transform_indices = @transform_7, window_bounds = array<i64: 32, 64>}, {pipeline_mode = #tpu.pipeline_mode<synchronous>, transform_indices = @transform_8, window_bounds = array<i64: 1, 64>}, {pipeline_mode = #tpu.pipeline_mode<synchronous>, transform_indices = @transform_9, window_bounds = array<i64: 64, 64>}, {pipeline_mode = #tpu.pipeline_mode<synchronous>, transform_indices = @transform_10, window_bounds = array<i64: 1, 64>}, {pipeline_mode = #tpu.pipeline_mode<synchronous>, transform_indices = @transform_11, window_bounds = array<i64: 2, 64, 192>}, {pipeline_mode = #tpu.pipeline_mode<synchronous>, transform_indices = @transform_12, window_bounds = array<i64: 2, 1, 192>}, {pipeline_mode = #tpu.pipeline_mode<synchronous>, transform_indices = @transform_13, window_bounds = array<i64: 2, 64, 64>}, {pipeline_mode = #tpu.pipeline_mode<synchronous>, transform_indices = @transform_14, window_bounds = array<i64: 2, 1, 64>}, {pipeline_mode = #tpu.pipeline_mode<synchronous>, transform_indices = @transform_15, window_bounds = array<i64: 2, 1, 64>}, {pipeline_mode = #tpu.pipeline_mode<synchronous>, transform_indices = @transform_16, window_bounds = array<i64: 2, 1, 64>}, {pipeline_mode = #tpu.pipeline_mode<synchronous>, transform_indices = @transform_17, window_bounds = array<i64: 2, 64, 64>}, {pipeline_mode = #tpu.pipeline_mode<synchronous>, transform_indices = @transform_18, window_bounds = array<i64: 2, 1, 64>}, {pipeline_mode = #tpu.pipeline_mode<synchronous>, transform_indices = @transform_19, window_bounds = array<i64: 2, 64, 64>}, {pipeline_mode = #tpu.pipeline_mode<synchronous>, transform_indices = @transform_20, window_bounds = array<i64: 2, 1, 64>}, {pipeline_mode = #tpu.pipeline_mode<synchronous>, transform_indices = @transform_21, window_bounds = array<i64: 2, 1, 64>}, {pipeline_mode = #tpu.pipeline_mode<synchronous>, transform_indices = @transform_22, window_bounds = array<i64: 2, 1, 64>}, {pipeline_mode = #tpu.pipeline_mode<synchronous>, transform_indices = @transform_23, window_bounds = array<i64: 128, 8>}, {pipeline_mode = #tpu.pipeline_mode<synchronous>, transform_indices = @transform_24, window_bounds = array<i64: 8, 128>}, {pipeline_mode = #tpu.pipeline_mode<synchronous>, transform_indices = @transform_25, window_bounds = array<i64: 64, 128>}, {pipeline_mode = #tpu.pipeline_mode<synchronous>, transform_indices = @transform_26, window_bounds = array<i64: 1, 128>}, {pipeline_mode = #tpu.pipeline_mode<synchronous>, transform_indices = @transform_27, window_bounds = array<i64: 2, 128>}]} {
    %c0 = arith.constant 0 : index
    %c0_0 = arith.constant 0 : index
    %0 = vector.load %arg1[%c0, %c0_0] : memref<128x48xbf16, #tpu.memory_space<vmem>>, vector<128x48xbf16>
    %c0_1 = arith.constant 0 : index
    %c0_2 = arith.constant 0 : index
    %1 = vector.load %arg2[%c0_1, %c0_2] : memref<48x64xbf16, #tpu.memory_space<vmem>>, vector<48x64xbf16>
    %cst = arith.constant dense<0.000000e+00> : vector<128x64xf32>
    %2 = tpu.matmul %0, %1, %cst {dimension_numbers = #tpu.dot_dimension_numbers<[1], [0], [0], [1], [0, 0, 1, 1], [], []>} : vector<128x48xbf16>, vector<48x64xbf16>, vector<128x64xf32> -> vector<128x64xf32>
    %c0_3 = arith.constant 0 : index
    %c0_4 = arith.constant 0 : index
    %3 = vector.load %arg3[%c0_3, %c0_4] : memref<1x64xf32, #tpu.memory_space<vmem>>, vector<1x64xf32>
    %4 = vector.broadcast %3 : vector<1x64xf32> to vector<128x64xf32>
    %5 = arith.addf %2, %4 : vector<128x64xf32>
    %cst_5 = arith.constant 0.000000e+00 : f32
    %6 = vector.broadcast %cst_5 : f32 to vector<128x64xf32>
    %7 = arith.maximumf %5, %6 : vector<128x64xf32>
    %8 = arith.truncf %7 : vector<128x64xf32> to vector<128x64xbf16>
    %c0_6 = arith.constant 0 : index
    %c0_7 = arith.constant 0 : index
    %9 = vector.load %arg4[%c0_6, %c0_7] : memref<64x32xbf16, #tpu.memory_space<vmem>>, vector<64x32xbf16>
    %cst_8 = arith.constant dense<0.000000e+00> : vector<128x32xf32>
    %10 = tpu.matmul %8, %9, %cst_8 {dimension_numbers = #tpu.dot_dimension_numbers<[1], [0], [0], [1], [0, 0, 1, 1], [], []>} : vector<128x64xbf16>, vector<64x32xbf16>, vector<128x32xf32> -> vector<128x32xf32>
    %c0_9 = arith.constant 0 : index
    %c0_10 = arith.constant 0 : index
    %11 = vector.load %arg5[%c0_9, %c0_10] : memref<128x32xf32, #tpu.memory_space<vmem>>, vector<128x32xf32>
    %12 = arith.addf %10, %11 : vector<128x32xf32>
    %c0_11 = arith.constant 0 : index
    %c0_12 = arith.constant 0 : index
    %13 = vector.load %arg6[%c0_11, %c0_12] : memref<128x1xf32, #tpu.memory_space<vmem>>, vector<128x1xf32>
    %14 = vector.broadcast %13 : vector<128x1xf32> to vector<128x32xf32>
    %15 = arith.mulf %12, %14 : vector<128x32xf32>
    %c0_13 = arith.constant 0 : index
    %c0_14 = arith.constant 0 : index
    %16 = vector.load %arg7[%c0_13, %c0_14] : memref<128x1xf32, #tpu.memory_space<vmem>>, vector<128x1xf32>
    %17 = vector.broadcast %16 : vector<128x1xf32> to vector<128x32xf32>
    %18 = arith.addf %15, %17 : vector<128x32xf32>
    %cst_15 = arith.constant 0.000000e+00 : f32
    %19 = vector.broadcast %cst_15 : f32 to vector<128x32xf32>
    %20 = arith.maximumf %18, %19 : vector<128x32xf32>
    %21 = arith.truncf %20 : vector<128x32xf32> to vector<128x32xbf16>
    %c0_16 = arith.constant 0 : index
    %c0_17 = arith.constant 0 : index
    %22 = vector.load %arg8[%c0_16, %c0_17] : memref<32x64xbf16, #tpu.memory_space<vmem>>, vector<32x64xbf16>
    %cst_18 = arith.constant dense<0.000000e+00> : vector<128x64xf32>
    %23 = tpu.matmul %21, %22, %cst_18 {dimension_numbers = #tpu.dot_dimension_numbers<[1], [0], [0], [1], [0, 0, 1, 1], [], []>} : vector<128x32xbf16>, vector<32x64xbf16>, vector<128x64xf32> -> vector<128x64xf32>
    %c0_19 = arith.constant 0 : index
    %c0_20 = arith.constant 0 : index
    %24 = vector.load %arg9[%c0_19, %c0_20] : memref<1x64xf32, #tpu.memory_space<vmem>>, vector<1x64xf32>
    %25 = vector.broadcast %24 : vector<1x64xf32> to vector<128x64xf32>
    %26 = arith.addf %23, %25 : vector<128x64xf32>
    %27 = arith.truncf %26 : vector<128x64xf32> to vector<128x64xbf16>
    %c0_21 = arith.constant 0 : index
    %c0_22 = arith.constant 0 : index
    %28 = vector.load %arg10[%c0_21, %c0_22] : memref<64x64xbf16, #tpu.memory_space<vmem>>, vector<64x64xbf16>
    %cst_23 = arith.constant dense<0.000000e+00> : vector<128x64xf32>
    %29 = tpu.matmul %27, %28, %cst_23 {dimension_numbers = #tpu.dot_dimension_numbers<[1], [0], [0], [1], [0, 0, 1, 1], [], []>} : vector<128x64xbf16>, vector<64x64xbf16>, vector<128x64xf32> -> vector<128x64xf32>
    %c0_24 = arith.constant 0 : index
    %c0_25 = arith.constant 0 : index
    %30 = vector.load %arg11[%c0_24, %c0_25] : memref<1x64xf32, #tpu.memory_space<vmem>>, vector<1x64xf32>
    %31 = vector.broadcast %30 : vector<1x64xf32> to vector<128x64xf32>
    %32 = arith.addf %29, %31 : vector<128x64xf32>
    %cst_26 = arith.constant 0.000000e+00 : f32
    %33 = vector.broadcast %cst_26 : f32 to vector<128x64xf32>
    %34 = arith.maximumf %32, %33 : vector<128x64xf32>
    %c0_27 = arith.constant 0 : index
    %c0_28 = arith.constant 0 : index
    %35 = vector.load %arg24[%c0_27, %c0_28] : memref<128x8xbf16, #tpu.memory_space<vmem>>, vector<128x8xbf16>
    %c0_29 = arith.constant 0 : index
    %c0_30 = arith.constant 0 : index
    %36 = vector.load %arg25[%c0_29, %c0_30] : memref<8x128xbf16, #tpu.memory_space<vmem>>, vector<8x128xbf16>
    %37 = arith.truncf %34 : vector<128x64xf32> to vector<128x64xbf16>
    %c0_31 = arith.constant 0 : index
    %c0_32 = arith.constant 0 : index
    %c0_33 = arith.constant 0 : index
    %38 = vector.load %arg12[%c0_31, %c0_32, %c0_33] : memref<2x64x192xbf16, #tpu.memory_space<vmem>>, vector<1x64x192xbf16>
    %39 = vector.shape_cast %38 : vector<1x64x192xbf16> to vector<64x192xbf16>
    %cst_34 = arith.constant dense<0.000000e+00> : vector<128x192xf32>
    %40 = tpu.matmul %37, %39, %cst_34 {dimension_numbers = #tpu.dot_dimension_numbers<[1], [0], [0], [1], [0, 0, 1, 1], [], []>} : vector<128x64xbf16>, vector<64x192xbf16>, vector<128x192xf32> -> vector<128x192xf32>
    %c0_35 = arith.constant 0 : index
    %c0_36 = arith.constant 0 : index
    %c0_37 = arith.constant 0 : index
    %41 = vector.load %arg13[%c0_35, %c0_36, %c0_37] : memref<2x1x192xf32, #tpu.memory_space<vmem>>, vector<1x1x192xf32>
    %42 = vector.shape_cast %41 : vector<1x1x192xf32> to vector<1x192xf32>
    %43 = vector.broadcast %42 : vector<1x192xf32> to vector<128x192xf32>
    %44 = arith.addf %40, %43 : vector<128x192xf32>
    %45 = vector.extract_strided_slice %44 {offsets = [0, 0], sizes = [128, 64], strides = [1, 1]} : vector<128x192xf32> to vector<128x64xf32>
    %46 = vector.extract_strided_slice %44 {offsets = [0, 64], sizes = [128, 64], strides = [1, 1]} : vector<128x192xf32> to vector<128x64xf32>
    %47 = vector.extract_strided_slice %44 {offsets = [0, 128], sizes = [128, 64], strides = [1, 1]} : vector<128x192xf32> to vector<128x64xf32>
    %48 = vector.extract_strided_slice %46 {offsets = [0, 0], sizes = [64, 64], strides = [1, 1]} : vector<128x64xf32> to vector<64x64xf32>
    %49 = vector.extract_strided_slice %46 {offsets = [64, 0], sizes = [64, 64], strides = [1, 1]} : vector<128x64xf32> to vector<64x64xf32>
    %50 = tpu.concatenate %48, %49 in 1 : vector<64x64xf32>, vector<64x64xf32> -> vector<64x128xf32>
    %51 = vector.extract_strided_slice %47 {offsets = [0, 0], sizes = [64, 64], strides = [1, 1]} : vector<128x64xf32> to vector<64x64xf32>
    %52 = vector.extract_strided_slice %47 {offsets = [64, 0], sizes = [64, 64], strides = [1, 1]} : vector<128x64xf32> to vector<64x64xf32>
    %53 = tpu.concatenate %51, %52 in 1 : vector<64x64xf32>, vector<64x64xf32> -> vector<64x128xf32>
    %54 = tpu.concatenate %50, %50 in 0 : vector<64x128xf32>, vector<64x128xf32> -> vector<128x128xf32>
    %55 = tpu.concatenate %53, %53 in 0 : vector<64x128xf32>, vector<64x128xf32> -> vector<128x128xf32>
    %56 = tpu.concatenate %45, %45 in 1 : vector<128x64xf32>, vector<128x64xf32> -> vector<128x128xf32>
    %57 = arith.mulf %56, %54 : vector<128x128xf32>
    %58 = arith.truncf %57 : vector<128x128xf32> to vector<128x128xbf16>
    %cst_38 = arith.constant dense<0.000000e+00> : vector<128x8xf32>
    %59 = tpu.matmul %58, %35, %cst_38 {dimension_numbers = #tpu.dot_dimension_numbers<[1], [0], [0], [1], [0, 0, 1, 1], [], []>} : vector<128x128xbf16>, vector<128x8xbf16>, vector<128x8xf32> -> vector<128x8xf32>
    %60 = vector.extract_strided_slice %59 {offsets = [0, 0], sizes = [128, 4], strides = [1, 1]} : vector<128x8xf32> to vector<128x4xf32>
    %61 = vector.extract_strided_slice %59 {offsets = [0, 4], sizes = [128, 4], strides = [1, 1]} : vector<128x8xf32> to vector<128x4xf32>
    %62 = arith.maximumf %60, %61 : vector<128x4xf32>
    %63 = arith.subf %60, %62 : vector<128x4xf32>
    %64 = math.exp %63 : vector<128x4xf32>
    %65 = arith.subf %61, %62 : vector<128x4xf32>
    %66 = math.exp %65 : vector<128x4xf32>
    %67 = arith.addf %64, %66 : vector<128x4xf32>
    %68 = tpu.reciprocal %67 {approx = true} : vector<128x4xf32> -> vector<128x4xf32>
    %69 = arith.mulf %64, %68 : vector<128x4xf32>
    %70 = arith.mulf %66, %68 : vector<128x4xf32>
    %71 = tpu.concatenate %69, %70 in 1 : vector<128x4xf32>, vector<128x4xf32> -> vector<128x8xf32>
    %72 = arith.truncf %71 : vector<128x8xf32> to vector<128x8xbf16>
    %cst_39 = arith.constant dense<0.000000e+00> : vector<128x128xf32>
    %73 = tpu.matmul %72, %36, %cst_39 {dimension_numbers = #tpu.dot_dimension_numbers<[1], [0], [0], [1], [0, 0, 1, 1], [], []>} : vector<128x8xbf16>, vector<8x128xbf16>, vector<128x128xf32> -> vector<128x128xf32>
    %74 = arith.mulf %73, %55 : vector<128x128xf32>
    %75 = vector.extract_strided_slice %74 {offsets = [0, 0], sizes = [128, 64], strides = [1, 1]} : vector<128x128xf32> to vector<128x64xf32>
    %76 = vector.extract_strided_slice %74 {offsets = [0, 64], sizes = [128, 64], strides = [1, 1]} : vector<128x128xf32> to vector<128x64xf32>
    %77 = arith.addf %75, %76 : vector<128x64xf32>
    %78 = arith.truncf %77 : vector<128x64xf32> to vector<128x64xbf16>
    %c0_40 = arith.constant 0 : index
    %c0_41 = arith.constant 0 : index
    %c0_42 = arith.constant 0 : index
    %79 = vector.load %arg14[%c0_40, %c0_41, %c0_42] : memref<2x64x64xbf16, #tpu.memory_space<vmem>>, vector<1x64x64xbf16>
    %80 = vector.shape_cast %79 : vector<1x64x64xbf16> to vector<64x64xbf16>
    %cst_43 = arith.constant dense<0.000000e+00> : vector<128x64xf32>
    %81 = tpu.matmul %78, %80, %cst_43 {dimension_numbers = #tpu.dot_dimension_numbers<[1], [0], [0], [1], [0, 0, 1, 1], [], []>} : vector<128x64xbf16>, vector<64x64xbf16>, vector<128x64xf32> -> vector<128x64xf32>
    %c0_44 = arith.constant 0 : index
    %c0_45 = arith.constant 0 : index
    %c0_46 = arith.constant 0 : index
    %82 = vector.load %arg15[%c0_44, %c0_45, %c0_46] : memref<2x1x64xf32, #tpu.memory_space<vmem>>, vector<1x1x64xf32>
    %83 = vector.shape_cast %82 : vector<1x1x64xf32> to vector<1x64xf32>
    %84 = vector.broadcast %83 : vector<1x64xf32> to vector<128x64xf32>
    %85 = arith.addf %81, %84 : vector<128x64xf32>
    %86 = arith.addf %34, %85 : vector<128x64xf32>
    %cst_47 = arith.constant dense<0.000000e+00> : vector<128xf32>
    %87 = vector.multi_reduction <add>, %86, %cst_47 [1] : vector<128x64xf32> to vector<128xf32>
    %88 = vector.shape_cast %87 : vector<128xf32> to vector<128x1xf32>
    %cst_48 = arith.constant 6.400000e+01 : f32
    %89 = vector.broadcast %cst_48 : f32 to vector<128x1xf32>
    %90 = arith.divf %88, %89 : vector<128x1xf32>
    %91 = vector.broadcast %90 : vector<128x1xf32> to vector<128x64xf32>
    %92 = arith.subf %86, %91 : vector<128x64xf32>
    %93 = arith.mulf %92, %92 : vector<128x64xf32>
    %cst_49 = arith.constant dense<0.000000e+00> : vector<128xf32>
    %94 = vector.multi_reduction <add>, %93, %cst_49 [1] : vector<128x64xf32> to vector<128xf32>
    %95 = vector.shape_cast %94 : vector<128xf32> to vector<128x1xf32>
    %cst_50 = arith.constant 6.400000e+01 : f32
    %96 = vector.broadcast %cst_50 : f32 to vector<128x1xf32>
    %97 = arith.divf %95, %96 : vector<128x1xf32>
    %98 = vector.broadcast %90 : vector<128x1xf32> to vector<128x64xf32>
    %99 = arith.subf %86, %98 : vector<128x64xf32>
    %cst_51 = arith.constant 9.99999974E-6 : f32
    %100 = vector.broadcast %cst_51 : f32 to vector<128x1xf32>
    %101 = arith.addf %97, %100 : vector<128x1xf32>
    %102 = math.rsqrt %101 : vector<128x1xf32>
    %103 = vector.broadcast %102 : vector<128x1xf32> to vector<128x64xf32>
    %104 = arith.mulf %99, %103 : vector<128x64xf32>
    %c0_52 = arith.constant 0 : index
    %c0_53 = arith.constant 0 : index
    %c0_54 = arith.constant 0 : index
    %105 = vector.load %arg16[%c0_52, %c0_53, %c0_54] : memref<2x1x64xf32, #tpu.memory_space<vmem>>, vector<1x1x64xf32>
    %106 = vector.shape_cast %105 : vector<1x1x64xf32> to vector<1x64xf32>
    %107 = vector.broadcast %106 : vector<1x64xf32> to vector<128x64xf32>
    %108 = arith.mulf %104, %107 : vector<128x64xf32>
    %c0_55 = arith.constant 0 : index
    %c0_56 = arith.constant 0 : index
    %c0_57 = arith.constant 0 : index
    %109 = vector.load %arg17[%c0_55, %c0_56, %c0_57] : memref<2x1x64xf32, #tpu.memory_space<vmem>>, vector<1x1x64xf32>
    %110 = vector.shape_cast %109 : vector<1x1x64xf32> to vector<1x64xf32>
    %111 = vector.broadcast %110 : vector<1x64xf32> to vector<128x64xf32>
    %112 = arith.addf %108, %111 : vector<128x64xf32>
    %113 = arith.truncf %112 : vector<128x64xf32> to vector<128x64xbf16>
    %c0_58 = arith.constant 0 : index
    %c0_59 = arith.constant 0 : index
    %c0_60 = arith.constant 0 : index
    %114 = vector.load %arg18[%c0_58, %c0_59, %c0_60] : memref<2x64x64xbf16, #tpu.memory_space<vmem>>, vector<1x64x64xbf16>
    %115 = vector.shape_cast %114 : vector<1x64x64xbf16> to vector<64x64xbf16>
    %cst_61 = arith.constant dense<0.000000e+00> : vector<128x64xf32>
    %116 = tpu.matmul %113, %115, %cst_61 {dimension_numbers = #tpu.dot_dimension_numbers<[1], [0], [0], [1], [0, 0, 1, 1], [], []>} : vector<128x64xbf16>, vector<64x64xbf16>, vector<128x64xf32> -> vector<128x64xf32>
    %c0_62 = arith.constant 0 : index
    %c0_63 = arith.constant 0 : index
    %c0_64 = arith.constant 0 : index
    %117 = vector.load %arg19[%c0_62, %c0_63, %c0_64] : memref<2x1x64xf32, #tpu.memory_space<vmem>>, vector<1x1x64xf32>
    %118 = vector.shape_cast %117 : vector<1x1x64xf32> to vector<1x64xf32>
    %119 = vector.broadcast %118 : vector<1x64xf32> to vector<128x64xf32>
    %120 = arith.addf %116, %119 : vector<128x64xf32>
    %cst_65 = arith.constant 0.000000e+00 : f32
    %121 = vector.broadcast %cst_65 : f32 to vector<128x64xf32>
    %122 = arith.maximumf %120, %121 : vector<128x64xf32>
    %123 = arith.truncf %122 : vector<128x64xf32> to vector<128x64xbf16>
    %c0_66 = arith.constant 0 : index
    %c0_67 = arith.constant 0 : index
    %c0_68 = arith.constant 0 : index
    %124 = vector.load %arg20[%c0_66, %c0_67, %c0_68] : memref<2x64x64xbf16, #tpu.memory_space<vmem>>, vector<1x64x64xbf16>
    %125 = vector.shape_cast %124 : vector<1x64x64xbf16> to vector<64x64xbf16>
    %cst_69 = arith.constant dense<0.000000e+00> : vector<128x64xf32>
    %126 = tpu.matmul %123, %125, %cst_69 {dimension_numbers = #tpu.dot_dimension_numbers<[1], [0], [0], [1], [0, 0, 1, 1], [], []>} : vector<128x64xbf16>, vector<64x64xbf16>, vector<128x64xf32> -> vector<128x64xf32>
    %c0_70 = arith.constant 0 : index
    %c0_71 = arith.constant 0 : index
    %c0_72 = arith.constant 0 : index
    %127 = vector.load %arg21[%c0_70, %c0_71, %c0_72] : memref<2x1x64xf32, #tpu.memory_space<vmem>>, vector<1x1x64xf32>
    %128 = vector.shape_cast %127 : vector<1x1x64xf32> to vector<1x64xf32>
    %129 = vector.broadcast %128 : vector<1x64xf32> to vector<128x64xf32>
    %130 = arith.addf %126, %129 : vector<128x64xf32>
    %131 = arith.addf %112, %130 : vector<128x64xf32>
    %cst_73 = arith.constant dense<0.000000e+00> : vector<128xf32>
    %132 = vector.multi_reduction <add>, %131, %cst_73 [1] : vector<128x64xf32> to vector<128xf32>
    %133 = vector.shape_cast %132 : vector<128xf32> to vector<128x1xf32>
    %cst_74 = arith.constant 6.400000e+01 : f32
    %134 = vector.broadcast %cst_74 : f32 to vector<128x1xf32>
    %135 = arith.divf %133, %134 : vector<128x1xf32>
    %136 = vector.broadcast %135 : vector<128x1xf32> to vector<128x64xf32>
    %137 = arith.subf %131, %136 : vector<128x64xf32>
    %138 = arith.mulf %137, %137 : vector<128x64xf32>
    %cst_75 = arith.constant dense<0.000000e+00> : vector<128xf32>
    %139 = vector.multi_reduction <add>, %138, %cst_75 [1] : vector<128x64xf32> to vector<128xf32>
    %140 = vector.shape_cast %139 : vector<128xf32> to vector<128x1xf32>
    %cst_76 = arith.constant 6.400000e+01 : f32
    %141 = vector.broadcast %cst_76 : f32 to vector<128x1xf32>
    %142 = arith.divf %140, %141 : vector<128x1xf32>
    %143 = vector.broadcast %135 : vector<128x1xf32> to vector<128x64xf32>
    %144 = arith.subf %131, %143 : vector<128x64xf32>
    %cst_77 = arith.constant 9.99999974E-6 : f32
    %145 = vector.broadcast %cst_77 : f32 to vector<128x1xf32>
    %146 = arith.addf %142, %145 : vector<128x1xf32>
    %147 = math.rsqrt %146 : vector<128x1xf32>
    %148 = vector.broadcast %147 : vector<128x1xf32> to vector<128x64xf32>
    %149 = arith.mulf %144, %148 : vector<128x64xf32>
    %c0_78 = arith.constant 0 : index
    %c0_79 = arith.constant 0 : index
    %c0_80 = arith.constant 0 : index
    %150 = vector.load %arg22[%c0_78, %c0_79, %c0_80] : memref<2x1x64xf32, #tpu.memory_space<vmem>>, vector<1x1x64xf32>
    %151 = vector.shape_cast %150 : vector<1x1x64xf32> to vector<1x64xf32>
    %152 = vector.broadcast %151 : vector<1x64xf32> to vector<128x64xf32>
    %153 = arith.mulf %149, %152 : vector<128x64xf32>
    %c0_81 = arith.constant 0 : index
    %c0_82 = arith.constant 0 : index
    %c0_83 = arith.constant 0 : index
    %154 = vector.load %arg23[%c0_81, %c0_82, %c0_83] : memref<2x1x64xf32, #tpu.memory_space<vmem>>, vector<1x1x64xf32>
    %155 = vector.shape_cast %154 : vector<1x1x64xf32> to vector<1x64xf32>
    %156 = vector.broadcast %155 : vector<1x64xf32> to vector<128x64xf32>
    %157 = arith.addf %153, %156 : vector<128x64xf32>
    %158 = arith.truncf %157 : vector<128x64xf32> to vector<128x64xbf16>
    %c1 = arith.constant 1 : index
    %c0_84 = arith.constant 0 : index
    %c0_85 = arith.constant 0 : index
    %159 = vector.load %arg12[%c1, %c0_84, %c0_85] : memref<2x64x192xbf16, #tpu.memory_space<vmem>>, vector<1x64x192xbf16>
    %160 = vector.shape_cast %159 : vector<1x64x192xbf16> to vector<64x192xbf16>
    %cst_86 = arith.constant dense<0.000000e+00> : vector<128x192xf32>
    %161 = tpu.matmul %158, %160, %cst_86 {dimension_numbers = #tpu.dot_dimension_numbers<[1], [0], [0], [1], [0, 0, 1, 1], [], []>} : vector<128x64xbf16>, vector<64x192xbf16>, vector<128x192xf32> -> vector<128x192xf32>
    %c1_87 = arith.constant 1 : index
    %c0_88 = arith.constant 0 : index
    %c0_89 = arith.constant 0 : index
    %162 = vector.load %arg13[%c1_87, %c0_88, %c0_89] : memref<2x1x192xf32, #tpu.memory_space<vmem>>, vector<1x1x192xf32>
    %163 = vector.shape_cast %162 : vector<1x1x192xf32> to vector<1x192xf32>
    %164 = vector.broadcast %163 : vector<1x192xf32> to vector<128x192xf32>
    %165 = arith.addf %161, %164 : vector<128x192xf32>
    %166 = vector.extract_strided_slice %165 {offsets = [0, 0], sizes = [128, 64], strides = [1, 1]} : vector<128x192xf32> to vector<128x64xf32>
    %167 = vector.extract_strided_slice %165 {offsets = [0, 64], sizes = [128, 64], strides = [1, 1]} : vector<128x192xf32> to vector<128x64xf32>
    %168 = vector.extract_strided_slice %165 {offsets = [0, 128], sizes = [128, 64], strides = [1, 1]} : vector<128x192xf32> to vector<128x64xf32>
    %169 = vector.extract_strided_slice %167 {offsets = [0, 0], sizes = [64, 64], strides = [1, 1]} : vector<128x64xf32> to vector<64x64xf32>
    %170 = vector.extract_strided_slice %167 {offsets = [64, 0], sizes = [64, 64], strides = [1, 1]} : vector<128x64xf32> to vector<64x64xf32>
    %171 = tpu.concatenate %169, %170 in 1 : vector<64x64xf32>, vector<64x64xf32> -> vector<64x128xf32>
    %172 = vector.extract_strided_slice %168 {offsets = [0, 0], sizes = [64, 64], strides = [1, 1]} : vector<128x64xf32> to vector<64x64xf32>
    %173 = vector.extract_strided_slice %168 {offsets = [64, 0], sizes = [64, 64], strides = [1, 1]} : vector<128x64xf32> to vector<64x64xf32>
    %174 = tpu.concatenate %172, %173 in 1 : vector<64x64xf32>, vector<64x64xf32> -> vector<64x128xf32>
    %175 = tpu.concatenate %171, %171 in 0 : vector<64x128xf32>, vector<64x128xf32> -> vector<128x128xf32>
    %176 = tpu.concatenate %174, %174 in 0 : vector<64x128xf32>, vector<64x128xf32> -> vector<128x128xf32>
    %177 = tpu.concatenate %166, %166 in 1 : vector<128x64xf32>, vector<128x64xf32> -> vector<128x128xf32>
    %178 = arith.mulf %177, %175 : vector<128x128xf32>
    %179 = arith.truncf %178 : vector<128x128xf32> to vector<128x128xbf16>
    %cst_90 = arith.constant dense<0.000000e+00> : vector<128x8xf32>
    %180 = tpu.matmul %179, %35, %cst_90 {dimension_numbers = #tpu.dot_dimension_numbers<[1], [0], [0], [1], [0, 0, 1, 1], [], []>} : vector<128x128xbf16>, vector<128x8xbf16>, vector<128x8xf32> -> vector<128x8xf32>
    %181 = vector.extract_strided_slice %180 {offsets = [0, 0], sizes = [128, 4], strides = [1, 1]} : vector<128x8xf32> to vector<128x4xf32>
    %182 = vector.extract_strided_slice %180 {offsets = [0, 4], sizes = [128, 4], strides = [1, 1]} : vector<128x8xf32> to vector<128x4xf32>
    %183 = arith.maximumf %181, %182 : vector<128x4xf32>
    %184 = arith.subf %181, %183 : vector<128x4xf32>
    %185 = math.exp %184 : vector<128x4xf32>
    %186 = arith.subf %182, %183 : vector<128x4xf32>
    %187 = math.exp %186 : vector<128x4xf32>
    %188 = arith.addf %185, %187 : vector<128x4xf32>
    %189 = tpu.reciprocal %188 {approx = true} : vector<128x4xf32> -> vector<128x4xf32>
    %190 = arith.mulf %185, %189 : vector<128x4xf32>
    %191 = arith.mulf %187, %189 : vector<128x4xf32>
    %192 = tpu.concatenate %190, %191 in 1 : vector<128x4xf32>, vector<128x4xf32> -> vector<128x8xf32>
    %193 = arith.truncf %192 : vector<128x8xf32> to vector<128x8xbf16>
    %cst_91 = arith.constant dense<0.000000e+00> : vector<128x128xf32>
    %194 = tpu.matmul %193, %36, %cst_91 {dimension_numbers = #tpu.dot_dimension_numbers<[1], [0], [0], [1], [0, 0, 1, 1], [], []>} : vector<128x8xbf16>, vector<8x128xbf16>, vector<128x128xf32> -> vector<128x128xf32>
    %195 = arith.mulf %194, %176 : vector<128x128xf32>
    %196 = vector.extract_strided_slice %195 {offsets = [0, 0], sizes = [128, 64], strides = [1, 1]} : vector<128x128xf32> to vector<128x64xf32>
    %197 = vector.extract_strided_slice %195 {offsets = [0, 64], sizes = [128, 64], strides = [1, 1]} : vector<128x128xf32> to vector<128x64xf32>
    %198 = arith.addf %196, %197 : vector<128x64xf32>
    %199 = arith.truncf %198 : vector<128x64xf32> to vector<128x64xbf16>
    %c1_92 = arith.constant 1 : index
    %c0_93 = arith.constant 0 : index
    %c0_94 = arith.constant 0 : index
    %200 = vector.load %arg14[%c1_92, %c0_93, %c0_94] : memref<2x64x64xbf16, #tpu.memory_space<vmem>>, vector<1x64x64xbf16>
    %201 = vector.shape_cast %200 : vector<1x64x64xbf16> to vector<64x64xbf16>
    %cst_95 = arith.constant dense<0.000000e+00> : vector<128x64xf32>
    %202 = tpu.matmul %199, %201, %cst_95 {dimension_numbers = #tpu.dot_dimension_numbers<[1], [0], [0], [1], [0, 0, 1, 1], [], []>} : vector<128x64xbf16>, vector<64x64xbf16>, vector<128x64xf32> -> vector<128x64xf32>
    %c1_96 = arith.constant 1 : index
    %c0_97 = arith.constant 0 : index
    %c0_98 = arith.constant 0 : index
    %203 = vector.load %arg15[%c1_96, %c0_97, %c0_98] : memref<2x1x64xf32, #tpu.memory_space<vmem>>, vector<1x1x64xf32>
    %204 = vector.shape_cast %203 : vector<1x1x64xf32> to vector<1x64xf32>
    %205 = vector.broadcast %204 : vector<1x64xf32> to vector<128x64xf32>
    %206 = arith.addf %202, %205 : vector<128x64xf32>
    %207 = arith.addf %157, %206 : vector<128x64xf32>
    %cst_99 = arith.constant dense<0.000000e+00> : vector<128xf32>
    %208 = vector.multi_reduction <add>, %207, %cst_99 [1] : vector<128x64xf32> to vector<128xf32>
    %209 = vector.shape_cast %208 : vector<128xf32> to vector<128x1xf32>
    %cst_100 = arith.constant 6.400000e+01 : f32
    %210 = vector.broadcast %cst_100 : f32 to vector<128x1xf32>
    %211 = arith.divf %209, %210 : vector<128x1xf32>
    %212 = vector.broadcast %211 : vector<128x1xf32> to vector<128x64xf32>
    %213 = arith.subf %207, %212 : vector<128x64xf32>
    %214 = arith.mulf %213, %213 : vector<128x64xf32>
    %cst_101 = arith.constant dense<0.000000e+00> : vector<128xf32>
    %215 = vector.multi_reduction <add>, %214, %cst_101 [1] : vector<128x64xf32> to vector<128xf32>
    %216 = vector.shape_cast %215 : vector<128xf32> to vector<128x1xf32>
    %cst_102 = arith.constant 6.400000e+01 : f32
    %217 = vector.broadcast %cst_102 : f32 to vector<128x1xf32>
    %218 = arith.divf %216, %217 : vector<128x1xf32>
    %219 = vector.broadcast %211 : vector<128x1xf32> to vector<128x64xf32>
    %220 = arith.subf %207, %219 : vector<128x64xf32>
    %cst_103 = arith.constant 9.99999974E-6 : f32
    %221 = vector.broadcast %cst_103 : f32 to vector<128x1xf32>
    %222 = arith.addf %218, %221 : vector<128x1xf32>
    %223 = math.rsqrt %222 : vector<128x1xf32>
    %224 = vector.broadcast %223 : vector<128x1xf32> to vector<128x64xf32>
    %225 = arith.mulf %220, %224 : vector<128x64xf32>
    %c1_104 = arith.constant 1 : index
    %c0_105 = arith.constant 0 : index
    %c0_106 = arith.constant 0 : index
    %226 = vector.load %arg16[%c1_104, %c0_105, %c0_106] : memref<2x1x64xf32, #tpu.memory_space<vmem>>, vector<1x1x64xf32>
    %227 = vector.shape_cast %226 : vector<1x1x64xf32> to vector<1x64xf32>
    %228 = vector.broadcast %227 : vector<1x64xf32> to vector<128x64xf32>
    %229 = arith.mulf %225, %228 : vector<128x64xf32>
    %c1_107 = arith.constant 1 : index
    %c0_108 = arith.constant 0 : index
    %c0_109 = arith.constant 0 : index
    %230 = vector.load %arg17[%c1_107, %c0_108, %c0_109] : memref<2x1x64xf32, #tpu.memory_space<vmem>>, vector<1x1x64xf32>
    %231 = vector.shape_cast %230 : vector<1x1x64xf32> to vector<1x64xf32>
    %232 = vector.broadcast %231 : vector<1x64xf32> to vector<128x64xf32>
    %233 = arith.addf %229, %232 : vector<128x64xf32>
    %234 = arith.truncf %233 : vector<128x64xf32> to vector<128x64xbf16>
    %c1_110 = arith.constant 1 : index
    %c0_111 = arith.constant 0 : index
    %c0_112 = arith.constant 0 : index
    %235 = vector.load %arg18[%c1_110, %c0_111, %c0_112] : memref<2x64x64xbf16, #tpu.memory_space<vmem>>, vector<1x64x64xbf16>
    %236 = vector.shape_cast %235 : vector<1x64x64xbf16> to vector<64x64xbf16>
    %cst_113 = arith.constant dense<0.000000e+00> : vector<128x64xf32>
    %237 = tpu.matmul %234, %236, %cst_113 {dimension_numbers = #tpu.dot_dimension_numbers<[1], [0], [0], [1], [0, 0, 1, 1], [], []>} : vector<128x64xbf16>, vector<64x64xbf16>, vector<128x64xf32> -> vector<128x64xf32>
    %c1_114 = arith.constant 1 : index
    %c0_115 = arith.constant 0 : index
    %c0_116 = arith.constant 0 : index
    %238 = vector.load %arg19[%c1_114, %c0_115, %c0_116] : memref<2x1x64xf32, #tpu.memory_space<vmem>>, vector<1x1x64xf32>
    %239 = vector.shape_cast %238 : vector<1x1x64xf32> to vector<1x64xf32>
    %240 = vector.broadcast %239 : vector<1x64xf32> to vector<128x64xf32>
    %241 = arith.addf %237, %240 : vector<128x64xf32>
    %cst_117 = arith.constant 0.000000e+00 : f32
    %242 = vector.broadcast %cst_117 : f32 to vector<128x64xf32>
    %243 = arith.maximumf %241, %242 : vector<128x64xf32>
    %244 = arith.truncf %243 : vector<128x64xf32> to vector<128x64xbf16>
    %c1_118 = arith.constant 1 : index
    %c0_119 = arith.constant 0 : index
    %c0_120 = arith.constant 0 : index
    %245 = vector.load %arg20[%c1_118, %c0_119, %c0_120] : memref<2x64x64xbf16, #tpu.memory_space<vmem>>, vector<1x64x64xbf16>
    %246 = vector.shape_cast %245 : vector<1x64x64xbf16> to vector<64x64xbf16>
    %cst_121 = arith.constant dense<0.000000e+00> : vector<128x64xf32>
    %247 = tpu.matmul %244, %246, %cst_121 {dimension_numbers = #tpu.dot_dimension_numbers<[1], [0], [0], [1], [0, 0, 1, 1], [], []>} : vector<128x64xbf16>, vector<64x64xbf16>, vector<128x64xf32> -> vector<128x64xf32>
    %c1_122 = arith.constant 1 : index
    %c0_123 = arith.constant 0 : index
    %c0_124 = arith.constant 0 : index
    %248 = vector.load %arg21[%c1_122, %c0_123, %c0_124] : memref<2x1x64xf32, #tpu.memory_space<vmem>>, vector<1x1x64xf32>
    %249 = vector.shape_cast %248 : vector<1x1x64xf32> to vector<1x64xf32>
    %250 = vector.broadcast %249 : vector<1x64xf32> to vector<128x64xf32>
    %251 = arith.addf %247, %250 : vector<128x64xf32>
    %252 = arith.addf %233, %251 : vector<128x64xf32>
    %cst_125 = arith.constant dense<0.000000e+00> : vector<128xf32>
    %253 = vector.multi_reduction <add>, %252, %cst_125 [1] : vector<128x64xf32> to vector<128xf32>
    %254 = vector.shape_cast %253 : vector<128xf32> to vector<128x1xf32>
    %cst_126 = arith.constant 6.400000e+01 : f32
    %255 = vector.broadcast %cst_126 : f32 to vector<128x1xf32>
    %256 = arith.divf %254, %255 : vector<128x1xf32>
    %257 = vector.broadcast %256 : vector<128x1xf32> to vector<128x64xf32>
    %258 = arith.subf %252, %257 : vector<128x64xf32>
    %259 = arith.mulf %258, %258 : vector<128x64xf32>
    %cst_127 = arith.constant dense<0.000000e+00> : vector<128xf32>
    %260 = vector.multi_reduction <add>, %259, %cst_127 [1] : vector<128x64xf32> to vector<128xf32>
    %261 = vector.shape_cast %260 : vector<128xf32> to vector<128x1xf32>
    %cst_128 = arith.constant 6.400000e+01 : f32
    %262 = vector.broadcast %cst_128 : f32 to vector<128x1xf32>
    %263 = arith.divf %261, %262 : vector<128x1xf32>
    %264 = vector.broadcast %256 : vector<128x1xf32> to vector<128x64xf32>
    %265 = arith.subf %252, %264 : vector<128x64xf32>
    %cst_129 = arith.constant 9.99999974E-6 : f32
    %266 = vector.broadcast %cst_129 : f32 to vector<128x1xf32>
    %267 = arith.addf %263, %266 : vector<128x1xf32>
    %268 = math.rsqrt %267 : vector<128x1xf32>
    %269 = vector.broadcast %268 : vector<128x1xf32> to vector<128x64xf32>
    %270 = arith.mulf %265, %269 : vector<128x64xf32>
    %c1_130 = arith.constant 1 : index
    %c0_131 = arith.constant 0 : index
    %c0_132 = arith.constant 0 : index
    %271 = vector.load %arg22[%c1_130, %c0_131, %c0_132] : memref<2x1x64xf32, #tpu.memory_space<vmem>>, vector<1x1x64xf32>
    %272 = vector.shape_cast %271 : vector<1x1x64xf32> to vector<1x64xf32>
    %273 = vector.broadcast %272 : vector<1x64xf32> to vector<128x64xf32>
    %274 = arith.mulf %270, %273 : vector<128x64xf32>
    %c1_133 = arith.constant 1 : index
    %c0_134 = arith.constant 0 : index
    %c0_135 = arith.constant 0 : index
    %275 = vector.load %arg23[%c1_133, %c0_134, %c0_135] : memref<2x1x64xf32, #tpu.memory_space<vmem>>, vector<1x1x64xf32>
    %276 = vector.shape_cast %275 : vector<1x1x64xf32> to vector<1x64xf32>
    %277 = vector.broadcast %276 : vector<1x64xf32> to vector<128x64xf32>
    %278 = arith.addf %274, %277 : vector<128x64xf32>
    %279 = vector.extract_strided_slice %278 {offsets = [0, 0], sizes = [64, 64], strides = [1, 1]} : vector<128x64xf32> to vector<64x64xf32>
    %cst_136 = arith.constant dense<0.000000e+00> : vector<64xf32>
    %280 = vector.multi_reduction <add>, %279, %cst_136 [0] : vector<64x64xf32> to vector<64xf32>
    %281 = vector.shape_cast %280 : vector<64xf32> to vector<1x64xf32>
    %cst_137 = arith.constant 1.562500e-02 : f32
    %282 = vector.broadcast %cst_137 : f32 to vector<1x64xf32>
    %283 = arith.mulf %281, %282 : vector<1x64xf32>
    %284 = vector.extract_strided_slice %278 {offsets = [64, 0], sizes = [64, 64], strides = [1, 1]} : vector<128x64xf32> to vector<64x64xf32>
    %cst_138 = arith.constant dense<0.000000e+00> : vector<64xf32>
    %285 = vector.multi_reduction <add>, %284, %cst_138 [0] : vector<64x64xf32> to vector<64xf32>
    %286 = vector.shape_cast %285 : vector<64xf32> to vector<1x64xf32>
    %cst_139 = arith.constant 1.562500e-02 : f32
    %287 = vector.broadcast %cst_139 : f32 to vector<1x64xf32>
    %288 = arith.mulf %286, %287 : vector<1x64xf32>
    %289 = tpu.concatenate %283, %288 in 0 : vector<1x64xf32>, vector<1x64xf32> -> vector<2x64xf32>
    %290 = arith.truncf %289 : vector<2x64xf32> to vector<2x64xbf16>
    %c0_140 = arith.constant 0 : index
    %c0_141 = arith.constant 0 : index
    %291 = vector.load %arg26[%c0_140, %c0_141] : memref<64x128xbf16, #tpu.memory_space<vmem>>, vector<64x128xbf16>
    %cst_142 = arith.constant dense<0.000000e+00> : vector<2x128xf32>
    %292 = tpu.matmul %290, %291, %cst_142 {dimension_numbers = #tpu.dot_dimension_numbers<[1], [0], [0], [1], [0, 0, 1, 1], [], []>} : vector<2x64xbf16>, vector<64x128xbf16>, vector<2x128xf32> -> vector<2x128xf32>
    %c0_143 = arith.constant 0 : index
    %c0_144 = arith.constant 0 : index
    %293 = vector.load %arg27[%c0_143, %c0_144] : memref<1x128xf32, #tpu.memory_space<vmem>>, vector<1x128xf32>
    %294 = vector.broadcast %293 : vector<1x128xf32> to vector<2x128xf32>
    %295 = arith.addf %292, %294 : vector<2x128xf32>
    %c0_145 = arith.constant 0 : index
    %c0_146 = arith.constant 0 : index
    %296 = vector.load %arg28[%c0_145, %c0_146] : memref<2x128xf32, #tpu.memory_space<vmem>>, vector<2x128xf32>
    tpu.vector_store %arg28[%c0_145, %c0_146], %295 {strides = array<i32>} : memref<2x128xf32, #tpu.memory_space<vmem>>, vector<2x128xf32>,
    return
  }
  func.func @transform_0(%arg0: i32) -> (i32, i32) {
    %c0_i32 = arith.constant 0 : i32
    %c0_i32_0 = arith.constant 0 : i32
    %c0_i32_1 = arith.constant 0 : i32
    return %c0_i32, %c0_i32_0 : i32, i32
  }
  func.func @transform_1(%arg0: i32) -> (i32, i32) {
    %c0_i32 = arith.constant 0 : i32
    %c0_i32_0 = arith.constant 0 : i32
    %c0_i32_1 = arith.constant 0 : i32
    return %c0_i32, %c0_i32_0 : i32, i32
  }
  func.func @transform_2(%arg0: i32) -> (i32, i32) {
    %c0_i32 = arith.constant 0 : i32
    %c0_i32_0 = arith.constant 0 : i32
    %c0_i32_1 = arith.constant 0 : i32
    return %c0_i32, %c0_i32_0 : i32, i32
  }
  func.func @transform_3(%arg0: i32) -> (i32, i32) {
    %c0_i32 = arith.constant 0 : i32
    %c0_i32_0 = arith.constant 0 : i32
    %c0_i32_1 = arith.constant 0 : i32
    return %c0_i32, %c0_i32_0 : i32, i32
  }
  func.func @transform_4(%arg0: i32) -> (i32, i32) {
    %c0_i32 = arith.constant 0 : i32
    %c0_i32_0 = arith.constant 0 : i32
    %c0_i32_1 = arith.constant 0 : i32
    return %c0_i32, %c0_i32_0 : i32, i32
  }
  func.func @transform_5(%arg0: i32) -> (i32, i32) {
    %c0_i32 = arith.constant 0 : i32
    %c0_i32_0 = arith.constant 0 : i32
    %c0_i32_1 = arith.constant 0 : i32
    return %c0_i32, %c0_i32_0 : i32, i32
  }
  func.func @transform_6(%arg0: i32) -> (i32, i32) {
    %c0_i32 = arith.constant 0 : i32
    %c0_i32_0 = arith.constant 0 : i32
    %c0_i32_1 = arith.constant 0 : i32
    return %c0_i32, %c0_i32_0 : i32, i32
  }
  func.func @transform_7(%arg0: i32) -> (i32, i32) {
    %c0_i32 = arith.constant 0 : i32
    %c0_i32_0 = arith.constant 0 : i32
    %c0_i32_1 = arith.constant 0 : i32
    return %c0_i32, %c0_i32_0 : i32, i32
  }
  func.func @transform_8(%arg0: i32) -> (i32, i32) {
    %c0_i32 = arith.constant 0 : i32
    %c0_i32_0 = arith.constant 0 : i32
    %c0_i32_1 = arith.constant 0 : i32
    return %c0_i32, %c0_i32_0 : i32, i32
  }
  func.func @transform_9(%arg0: i32) -> (i32, i32) {
    %c0_i32 = arith.constant 0 : i32
    %c0_i32_0 = arith.constant 0 : i32
    %c0_i32_1 = arith.constant 0 : i32
    return %c0_i32, %c0_i32_0 : i32, i32
  }
  func.func @transform_10(%arg0: i32) -> (i32, i32) {
    %c0_i32 = arith.constant 0 : i32
    %c0_i32_0 = arith.constant 0 : i32
    %c0_i32_1 = arith.constant 0 : i32
    return %c0_i32, %c0_i32_0 : i32, i32
  }
  func.func @transform_11(%arg0: i32) -> (i32, i32, i32) {
    %c0_i32 = arith.constant 0 : i32
    %c0_i32_0 = arith.constant 0 : i32
    %c0_i32_1 = arith.constant 0 : i32
    %c0_i32_2 = arith.constant 0 : i32
    return %c0_i32, %c0_i32_0, %c0_i32_1 : i32, i32, i32
  }
  func.func @transform_12(%arg0: i32) -> (i32, i32, i32) {
    %c0_i32 = arith.constant 0 : i32
    %c0_i32_0 = arith.constant 0 : i32
    %c0_i32_1 = arith.constant 0 : i32
    %c0_i32_2 = arith.constant 0 : i32
    return %c0_i32, %c0_i32_0, %c0_i32_1 : i32, i32, i32
  }
  func.func @transform_13(%arg0: i32) -> (i32, i32, i32) {
    %c0_i32 = arith.constant 0 : i32
    %c0_i32_0 = arith.constant 0 : i32
    %c0_i32_1 = arith.constant 0 : i32
    %c0_i32_2 = arith.constant 0 : i32
    return %c0_i32, %c0_i32_0, %c0_i32_1 : i32, i32, i32
  }
  func.func @transform_14(%arg0: i32) -> (i32, i32, i32) {
    %c0_i32 = arith.constant 0 : i32
    %c0_i32_0 = arith.constant 0 : i32
    %c0_i32_1 = arith.constant 0 : i32
    %c0_i32_2 = arith.constant 0 : i32
    return %c0_i32, %c0_i32_0, %c0_i32_1 : i32, i32, i32
  }
  func.func @transform_15(%arg0: i32) -> (i32, i32, i32) {
    %c0_i32 = arith.constant 0 : i32
    %c0_i32_0 = arith.constant 0 : i32
    %c0_i32_1 = arith.constant 0 : i32
    %c0_i32_2 = arith.constant 0 : i32
    return %c0_i32, %c0_i32_0, %c0_i32_1 : i32, i32, i32
  }
  func.func @transform_16(%arg0: i32) -> (i32, i32, i32) {
    %c0_i32 = arith.constant 0 : i32
    %c0_i32_0 = arith.constant 0 : i32
    %c0_i32_1 = arith.constant 0 : i32
    %c0_i32_2 = arith.constant 0 : i32
    return %c0_i32, %c0_i32_0, %c0_i32_1 : i32, i32, i32
  }
  func.func @transform_17(%arg0: i32) -> (i32, i32, i32) {
    %c0_i32 = arith.constant 0 : i32
    %c0_i32_0 = arith.constant 0 : i32
    %c0_i32_1 = arith.constant 0 : i32
    %c0_i32_2 = arith.constant 0 : i32
    return %c0_i32, %c0_i32_0, %c0_i32_1 : i32, i32, i32
  }
  func.func @transform_18(%arg0: i32) -> (i32, i32, i32) {
    %c0_i32 = arith.constant 0 : i32
    %c0_i32_0 = arith.constant 0 : i32
    %c0_i32_1 = arith.constant 0 : i32
    %c0_i32_2 = arith.constant 0 : i32
    return %c0_i32, %c0_i32_0, %c0_i32_1 : i32, i32, i32
  }
  func.func @transform_19(%arg0: i32) -> (i32, i32, i32) {
    %c0_i32 = arith.constant 0 : i32
    %c0_i32_0 = arith.constant 0 : i32
    %c0_i32_1 = arith.constant 0 : i32
    %c0_i32_2 = arith.constant 0 : i32
    return %c0_i32, %c0_i32_0, %c0_i32_1 : i32, i32, i32
  }
  func.func @transform_20(%arg0: i32) -> (i32, i32, i32) {
    %c0_i32 = arith.constant 0 : i32
    %c0_i32_0 = arith.constant 0 : i32
    %c0_i32_1 = arith.constant 0 : i32
    %c0_i32_2 = arith.constant 0 : i32
    return %c0_i32, %c0_i32_0, %c0_i32_1 : i32, i32, i32
  }
  func.func @transform_21(%arg0: i32) -> (i32, i32, i32) {
    %c0_i32 = arith.constant 0 : i32
    %c0_i32_0 = arith.constant 0 : i32
    %c0_i32_1 = arith.constant 0 : i32
    %c0_i32_2 = arith.constant 0 : i32
    return %c0_i32, %c0_i32_0, %c0_i32_1 : i32, i32, i32
  }
  func.func @transform_22(%arg0: i32) -> (i32, i32, i32) {
    %c0_i32 = arith.constant 0 : i32
    %c0_i32_0 = arith.constant 0 : i32
    %c0_i32_1 = arith.constant 0 : i32
    %c0_i32_2 = arith.constant 0 : i32
    return %c0_i32, %c0_i32_0, %c0_i32_1 : i32, i32, i32
  }
  func.func @transform_23(%arg0: i32) -> (i32, i32) {
    %c0_i32 = arith.constant 0 : i32
    %c0_i32_0 = arith.constant 0 : i32
    %c0_i32_1 = arith.constant 0 : i32
    return %c0_i32, %c0_i32_0 : i32, i32
  }
  func.func @transform_24(%arg0: i32) -> (i32, i32) {
    %c0_i32 = arith.constant 0 : i32
    %c0_i32_0 = arith.constant 0 : i32
    %c0_i32_1 = arith.constant 0 : i32
    return %c0_i32, %c0_i32_0 : i32, i32
  }
  func.func @transform_25(%arg0: i32) -> (i32, i32) {
    %c0_i32 = arith.constant 0 : i32
    %c0_i32_0 = arith.constant 0 : i32
    %c0_i32_1 = arith.constant 0 : i32
    return %c0_i32, %c0_i32_0 : i32, i32
  }
  func.func @transform_26(%arg0: i32) -> (i32, i32) {
    %c0_i32 = arith.constant 0 : i32
    %c0_i32_0 = arith.constant 0 : i32
    %c0_i32_1 = arith.constant 0 : i32
    return %c0_i32, %c0_i32_0 : i32, i32
  }
  func.func @transform_27(%arg0: i32) -> (i32, i32) {
    %c0_i32 = arith.constant 0 : i32
    %c0_i32_0 = arith.constant 0 : i32
    %c0_i32_1 = arith.constant 0 : i32
    return %c0_i32, %c0_i32_0 : i32, i32
  }
}

</mosaic_0001>

<llo_original>
// kernel: supervised_video_classifier_forward.1
$region0: #{supervised_video_classifier_forward.1}
  #allocation0 [shape = 'u32[]', space=smem, size = 0x4, offset = 0x4, fixed_abs, tag = 'smem constant byte address 0x4 - core index']
  #allocation1 [shape = 'u32[144,128]{1,0:T(1,128)}', space=vmem, size = 0x12000, scoped, tag = 'internal scratch']
  %s0 = inlined_call_operand.vmem [shape: bf16[128,48], index: 0, kind: input, shape index: {}]
  %s1 = inlined_call_operand.vmem [shape: bf16[48,64], index: 1, kind: input, shape index: {}]
  %s2 = inlined_call_operand.vmem [shape: f32[1,64], index: 2, kind: input, shape index: {}]
  %s3 = inlined_call_operand.vmem [shape: bf16[64,32], index: 3, kind: input, shape index: {}]
  %s4 = inlined_call_operand.vmem [shape: f32[128,32], index: 4, kind: input, shape index: {}]
  %s5 = inlined_call_operand.vmem [shape: f32[128,1], index: 5, kind: input, shape index: {}]
  %s6 = inlined_call_operand.vmem [shape: f32[128,1], index: 6, kind: input, shape index: {}]
  %s7 = inlined_call_operand.vmem [shape: bf16[32,64], index: 7, kind: input, shape index: {}]
  %s8 = inlined_call_operand.vmem [shape: f32[1,64], index: 8, kind: input, shape index: {}]
  %s9 = inlined_call_operand.vmem [shape: bf16[64,64], index: 9, kind: input, shape index: {}]
  %s10 = inlined_call_operand.vmem [shape: f32[1,64], index: 10, kind: input, shape index: {}]
  %s11 = inlined_call_operand.vmem [shape: bf16[2,64,192], index: 11, kind: input, shape index: {}]
  %s12 = inlined_call_operand.vmem [shape: f32[2,1,192], index: 12, kind: input, shape index: {}]
  %s13 = inlined_call_operand.vmem [shape: bf16[2,64,64], index: 13, kind: input, shape index: {}]
  %s14 = inlined_call_operand.vmem [shape: f32[2,1,64], index: 14, kind: input, shape index: {}]
  %s15 = inlined_call_operand.vmem [shape: f32[2,1,64], index: 15, kind: input, shape index: {}]
  %s16 = inlined_call_operand.vmem [shape: f32[2,1,64], index: 16, kind: input, shape index: {}]
  %s17 = inlined_call_operand.vmem [shape: bf16[2,64,64], index: 17, kind: input, shape index: {}]
  %s18 = inlined_call_operand.vmem [shape: f32[2,1,64], index: 18, kind: input, shape index: {}]
  %s19 = inlined_call_operand.vmem [shape: bf16[2,64,64], index: 19, kind: input, shape index: {}]
  %s20 = inlined_call_operand.vmem [shape: f32[2,1,64], index: 20, kind: input, shape index: {}]
  %s21 = inlined_call_operand.vmem [shape: f32[2,1,64], index: 21, kind: input, shape index: {}]
  %s22 = inlined_call_operand.vmem [shape: f32[2,1,64], index: 22, kind: input, shape index: {}]
  %s23 = inlined_call_operand.vmem [shape: bf16[128,8], index: 23, kind: input, shape index: {}]
  %s24 = inlined_call_operand.vmem [shape: bf16[8,128], index: 24, kind: input, shape index: {}]
  %s25 = inlined_call_operand.vmem [shape: bf16[64,128], index: 25, kind: input, shape index: {}]
  %s26 = inlined_call_operand.vmem [shape: f32[1,128], index: 26, kind: input, shape index: {}]
  %s27 = inlined_call_operand.hbm [shape: f32[2,128], index: 27, kind: output, shape index: {}]
  %s28 = sld [smem:[#allocation0]]
  $region118: #{supervised_video_classifier_forward.1} parent=0
    _
  %s30 = ssub.s32 1, %s28
  %s31 = scalar_select 0, %s30, %s28
  $region1: #{supervised_video_classifier_forward.1} parent=0
    #allocation2 [shape = 'u8[1024]{0}', space=vmem, size = 0x400, scoped, tag = 'output window, operand 0, single buffered']
    #allocation3 [shape = 's32[1]{0}', space=sflag, size = 0x4, scoped, tag = 'scoped memory for supervised_video_classifier_forward.1']
    %32 = vsyncpa [#allocation3], 0
    // Predicated region
    $region2: #{supervised_video_classifier_forward.1} parent=1 // pred_check
      _
    $region3: #{supervised_video_classifier_forward.1} parent=1 // pred_check_branch
      %34 = sbr.rel (0) target = $region5
    $region4: #{supervised_video_classifier_forward.1} parent=1 // pred_region
      _
    $region5: #{supervised_video_classifier_forward.1} parent=1 // pred_fallthru
      _
    // Predicated region
    $region6: #{supervised_video_classifier_forward.1} parent=1 // pred_check
      _
    $region7: #{supervised_video_classifier_forward.1} parent=1 // pred_check_branch
      %36 = sbr.rel (0) target = $region9
    $region8: #{supervised_video_classifier_forward.1} parent=1 // pred_region
      _
    $region9: #{supervised_video_classifier_forward.1} parent=1 // pred_fallthru
      _
    // Predicated region
    $region10: #{supervised_video_classifier_forward.1} parent=1 // pred_check
      _
    $region11: #{supervised_video_classifier_forward.1} parent=1 // pred_check_branch
      %38 = sbr.rel (0) target = $region13
    $region12: #{supervised_video_classifier_forward.1} parent=1 // pred_region
      _
    $region13: #{supervised_video_classifier_forward.1} parent=1 // pred_fallthru
      _
    // Predicated region
    $region14: #{supervised_video_classifier_forward.1} parent=1 // pred_check
      _
    $region15: #{supervised_video_classifier_forward.1} parent=1 // pred_check_branch
      %40 = sbr.rel (0) target = $region17
    $region16: #{supervised_video_classifier_forward.1} parent=1 // pred_region
      _
    $region17: #{supervised_video_classifier_forward.1} parent=1 // pred_fallthru
      _
    // Predicated region
    $region18: #{supervised_video_classifier_forward.1} parent=1 // pred_check
      _
    $region19: #{supervised_video_classifier_forward.1} parent=1 // pred_check_branch
      %42 = sbr.rel (0) target = $region21
    $region20: #{supervised_video_classifier_forward.1} parent=1 // pred_region
      _
    $region21: #{supervised_video_classifier_forward.1} parent=1 // pred_fallthru
      _
    // Predicated region
    $region22: #{supervised_video_classifier_forward.1} parent=1 // pred_check
      _
    $region23: #{supervised_video_classifier_forward.1} parent=1 // pred_check_branch
      %44 = sbr.rel (0) target = $region25
    $region24: #{supervised_video_classifier_forward.1} parent=1 // pred_region
      _
    $region25: #{supervised_video_classifier_forward.1} parent=1 // pred_fallthru
      _
    // Predicated region
    $region26: #{supervised_video_classifier_forward.1} parent=1 // pred_check
      _
    $region27: #{supervised_video_classifier_forward.1} parent=1 // pred_check_branch
      %46 = sbr.rel (0) target = $region29
    $region28: #{supervised_video_classifier_forward.1} parent=1 // pred_region
      _
    $region29: #{supervised_video_classifier_forward.1} parent=1 // pred_fallthru
      _
    // Predicated region
    $region30: #{supervised_video_classifier_forward.1} parent=1 // pred_check
      _
    $region31: #{supervised_video_classifier_forward.1} parent=1 // pred_check_branch
      %48 = sbr.rel (0) target = $region33
    $region32: #{supervised_video_classifier_forward.1} parent=1 // pred_region
      _
    $region33: #{supervised_video_classifier_forward.1} parent=1 // pred_fallthru
      _
    // Predicated region
    $region34: #{supervised_video_classifier_forward.1} parent=1 // pred_check
      _
    $region35: #{supervised_video_classifier_forward.1} parent=1 // pred_check_branch
      %50 = sbr.rel (0) target = $region37
    $region36: #{supervised_video_classifier_forward.1} parent=1 // pred_region
      _
    $region37: #{supervised_video_classifier_forward.1} parent=1 // pred_fallthru
      _
    // Predicated region
    $region38: #{supervised_video_classifier_forward.1} parent=1 // pred_check
      _
    $region39: #{supervised_video_classifier_forward.1} parent=1 // pred_check_branch
      %52 = sbr.rel (0) target = $region41
    $region40: #{supervised_video_classifier_forward.1} parent=1 // pred_region
      _
    $region41: #{supervised_video_classifier_forward.1} parent=1 // pred_fallthru
      _
    // Predicated region
    $region42: #{supervised_video_classifier_forward.1} parent=1 // pred_check
      _
    $region43: #{supervised_video_classifier_forward.1} parent=1 // pred_check_branch
      %54 = sbr.rel (0) target = $region45
    $region44: #{supervised_video_classifier_forward.1} parent=1 // pred_region
      _
    $region45: #{supervised_video_classifier_forward.1} parent=1 // pred_fallthru
      _
    // Predicated region
    $region46: #{supervised_video_classifier_forward.1} parent=1 // pred_check
      _
    $region47: #{supervised_video_classifier_forward.1} parent=1 // pred_check_branch
      %56 = sbr.rel (0) target = $region49
    $region48: #{supervised_video_classifier_forward.1} parent=1 // pred_region
      _
    $region49: #{supervised_video_classifier_forward.1} parent=1 // pred_fallthru
      _
    // Predicated region
    $region50: #{supervised_video_classifier_forward.1} parent=1 // pred_check
      _
    $region51: #{supervised_video_classifier_forward.1} parent=1 // pred_check_branch
      %58 = sbr.rel (0) target = $region53
    $region52: #{supervised_video_classifier_forward.1} parent=1 // pred_region
      _
    $region53: #{supervised_video_classifier_forward.1} parent=1 // pred_fallthru
      _
    // Predicated region
    $region54: #{supervised_video_classifier_forward.1} parent=1 // pred_check
      _
    $region55: #{supervised_video_classifier_forward.1} parent=1 // pred_check_branch
      %60 = sbr.rel (0) target = $region57
    $region56: #{supervised_video_classifier_forward.1} parent=1 // pred_region
      _
    $region57: #{supervised_video_classifier_forward.1} parent=1 // pred_fallthru
      _
    // Predicated region
    $region58: #{supervised_video_classifier_forward.1} parent=1 // pred_check
      _
    $region59: #{supervised_video_classifier_forward.1} parent=1 // pred_check_branch
      %62 = sbr.rel (0) target = $region61
    $region60: #{supervised_video_classifier_forward.1} parent=1 // pred_region
      _
    $region61: #{supervised_video_classifier_forward.1} parent=1 // pred_fallthru
      _
    // Predicated region
    $region62: #{supervised_video_classifier_forward.1} parent=1 // pred_check
      _
    $region63: #{supervised_video_classifier_forward.1} parent=1 // pred_check_branch
      %64 = sbr.rel (0) target = $region65
    $region64: #{supervised_video_classifier_forward.1} parent=1 // pred_region
      _
    $region65: #{supervised_video_classifier_forward.1} parent=1 // pred_fallthru
      _
    // Predicated region
    $region66: #{supervised_video_classifier_forward.1} parent=1 // pred_check
      _
    $region67: #{supervised_video_classifier_forward.1} parent=1 // pred_check_branch
      %66 = sbr.rel (0) target = $region69
    $region68: #{supervised_video_classifier_forward.1} parent=1 // pred_region
      _
    $region69: #{supervised_video_classifier_forward.1} parent=1 // pred_fallthru
      _
    // Predicated region
    $region70: #{supervised_video_classifier_forward.1} parent=1 // pred_check
      _
    $region71: #{supervised_video_classifier_forward.1} parent=1 // pred_check_branch
      %68 = sbr.rel (0) target = $region73
    $region72: #{supervised_video_classifier_forward.1} parent=1 // pred_region
      _
    $region73: #{supervised_video_classifier_forward.1} parent=1 // pred_fallthru
      _
    // Predicated region
    $region74: #{supervised_video_classifier_forward.1} parent=1 // pred_check
      _
    $region75: #{supervised_video_classifier_forward.1} parent=1 // pred_check_branch
      %70 = sbr.rel (0) target = $region77
    $region76: #{supervised_video_classifier_forward.1} parent=1 // pred_region
      _
    $region77: #{supervised_video_classifier_forward.1} parent=1 // pred_fallthru
      _
    // Predicated region
    $region78: #{supervised_video_classifier_forward.1} parent=1 // pred_check
      _
    $region79: #{supervised_video_classifier_forward.1} parent=1 // pred_check_branch
      %72 = sbr.rel (0) target = $region81
    $region80: #{supervised_video_classifier_forward.1} parent=1 // pred_region
      _
    $region81: #{supervised_video_classifier_forward.1} parent=1 // pred_fallthru
      _
    // Predicated region
    $region82: #{supervised_video_classifier_forward.1} parent=1 // pred_check
      _
    $region83: #{supervised_video_classifier_forward.1} parent=1 // pred_check_branch
      %74 = sbr.rel (0) target = $region85
    $region84: #{supervised_video_classifier_forward.1} parent=1 // pred_region
      _
    $region85: #{supervised_video_classifier_forward.1} parent=1 // pred_fallthru
      _
    // Predicated region
    $region86: #{supervised_video_classifier_forward.1} parent=1 // pred_check
      _
    $region87: #{supervised_video_classifier_forward.1} parent=1 // pred_check_branch
      %76 = sbr.rel (0) target = $region89
    $region88: #{supervised_video_classifier_forward.1} parent=1 // pred_region
      _
    $region89: #{supervised_video_classifier_forward.1} parent=1 // pred_fallthru
      _
    // Predicated region
    $region90: #{supervised_video_classifier_forward.1} parent=1 // pred_check
      _
    $region91: #{supervised_video_classifier_forward.1} parent=1 // pred_check_branch
      %78 = sbr.rel (0) target = $region93
    $region92: #{supervised_video_classifier_forward.1} parent=1 // pred_region
      _
    $region93: #{supervised_video_classifier_forward.1} parent=1 // pred_fallthru
      _
    // Predicated region
    $region94: #{supervised_video_classifier_forward.1} parent=1 // pred_check
      _
    $region95: #{supervised_video_classifier_forward.1} parent=1 // pred_check_branch
      %80 = sbr.rel (0) target = $region97
    $region96: #{supervised_video_classifier_forward.1} parent=1 // pred_region
      _
    $region97: #{supervised_video_classifier_forward.1} parent=1 // pred_fallthru
      _
    // Predicated region
    $region98: #{supervised_video_classifier_forward.1} parent=1 // pred_check
      _
    $region99: #{supervised_video_classifier_forward.1} parent=1 // pred_check_branch
      %82 = sbr.rel (0) target = $region101
    $region100: #{supervised_video_classifier_forward.1} parent=1 // pred_region
      _
    $region101: #{supervised_video_classifier_forward.1} parent=1 // pred_fallthru
      _
    // Predicated region
    $region102: #{supervised_video_classifier_forward.1} parent=1 // pred_check
      _
    $region103: #{supervised_video_classifier_forward.1} parent=1 // pred_check_branch
      %84 = sbr.rel (0) target = $region105
    $region104: #{supervised_video_classifier_forward.1} parent=1 // pred_region
      _
    $region105: #{supervised_video_classifier_forward.1} parent=1 // pred_fallthru
      _
    // Predicated region
    $region106: #{supervised_video_classifier_forward.1} parent=1 // pred_check
      _
    $region107: #{supervised_video_classifier_forward.1} parent=1 // pred_check_branch
      %86 = sbr.rel (0) target = $region109
    $region108: #{supervised_video_classifier_forward.1} parent=1 // pred_region
      _
    $region109: #{supervised_video_classifier_forward.1} parent=1 // pred_fallthru
      _
    %v88 = vld [vmem:[%s0] sm:$0xf]
    %v89 = vld [vmem:[%s0 + $0x4] sm:$0xf]
    %v90 = vld [vmem:[%s0 + $0x8] sm:$0xf]
    %v91 = vld [vmem:[%s0 + $0xc] sm:$0xf]
    %v92 = vld [vmem:[%s0 + $0x10] sm:$0xf]
    %v93 = vld [vmem:[%s0 + $0x14] sm:$0xf]
    %v94 = vld [vmem:[%s0 + $0x18] sm:$0xf]
    %v95 = vld [vmem:[%s0 + $0x1c] sm:$0xf]
    %v96 = vld [vmem:[%s0 + $0x20] sm:$0xf]
    %v97 = vld [vmem:[%s0 + $0x24] sm:$0xf]
    %v98 = vld [vmem:[%s0 + $0x28] sm:$0xf]
    %v99 = vld [vmem:[%s0 + $0x2c] sm:$0xf]
    %v100 = vld [vmem:[%s0 + $0x30] sm:$0xf]
    %v101 = vld [vmem:[%s0 + $0x34] sm:$0xf]
    %v102 = vld [vmem:[%s0 + $0x38] sm:$0xf]
    %v103 = vld [vmem:[%s0 + $0x3c] sm:$0xf]
    %v104 = vld [vmem:[%s1] sm:$0xf]
    %v105 = vld [vmem:[%s1 + $0x4] sm:$0xf]
    %v106 = vld [vmem:[%s1 + $0x8] sm:$0xf]
    %v107 = vld [vmem:[%s1 + $0xc] sm:$0xf]
    %v108 = vld [vmem:[%s1 + $0x10] sm:$0xf]
    %v109 = vld [vmem:[%s1 + $0x14] sm:$0xf]
    %v110 = vld [vmem:[%s2] sm:$0x1]
    %v112 = vlaneseq
    %v113 = vshrl.u32 %v112, 7
    %v114 = vsub.s32 0, %v113
    %v115 = vrot.slane %v110, %v114
    %v133 = vunpack.c.l.b16 %v88
    %v134 = vunpack.c.l.b16 %v89
    %v135 = vunpack.c.l.b16 %v90
    %v136 = vunpack.c.l.b16 %v91
    %v137 = vunpack.c.l.b16 %v92
    %v138 = vunpack.c.l.b16 %v93
    %v139 = vunpack.c.l.b16 %v94
    %v140 = vunpack.c.l.b16 %v95
    %v141 = vunpack.c.l.b16 %v96
    %v142 = vunpack.c.l.b16 %v97
    %v143 = vunpack.c.l.b16 %v98
    %v144 = vunpack.c.l.b16 %v99
    %v145 = vunpack.c.l.b16 %v100
    %v146 = vunpack.c.l.b16 %v101
    %v147 = vunpack.c.l.b16 %v102
    %v148 = vunpack.c.l.b16 %v103
    %v149 = vpack.c.b16 %v134, %v133
    %v150 = vpack.c.b16 %v136, %v135
    %v151 = vpack.c.b16 %v138, %v137
    %v152 = vpack.c.b16 %v140, %v139
    %v153 = vpack.c.b16 %v142, %v141
    %v154 = vpack.c.b16 %v144, %v143
    %v155 = vpack.c.b16 %v146, %v145
    %v156 = vpack.c.b16 %v148, %v147
    %v163 = vunpack.c.l.b16 %v104
    %v164 = vunpack.c.l.b16 %v105
    %v165 = vunpack.c.l.b16 %v106
    %v166 = vunpack.c.l.b16 %v107
    %v167 = vunpack.c.l.b16 %v108
    %v168 = vunpack.c.l.b16 %v109
    %v169 = vpack.c.b16 %v164, %v163
    %v170 = vpack.c.b16 %v166, %v165
    %v171 = vpack.c.b16 %v168, %v167
    %vm175 = vcmask 392192
    %v177 = vsel %vm175, %v149, 0
    %v180 = vsel %vm175, %v150, 0
    %v183 = vsel %vm175, %v151, 0
    %v186 = vsel %vm175, %v152, 0
    %v189 = vsel %vm175, %v153, 0
    %v192 = vsel %vm175, %v154, 0
    %v195 = vsel %vm175, %v155, 0
    %v198 = vsel %vm175, %v156, 0
    %200 = vmatprep.subr.bf16.mxu0 0
    %201 = vmatpush1.bf16.msra.mxu0 %v169
    %202 = vmatprep.subr.bf16.mxu0 0
    %203 = vmatpush1.bf16.msra.mxu0 %v170
    %204 = vmatprep.subr.bf16.mxu0 0
    %205 = vmatpush1.bf16.msra.mxu0 %v171
    %206 = vmatprep.subr.bf16.mxu0 0
    %207 = vmatpush1.bf16.msra.mxu0 0
    %208 = vmatprep.subr.bf16.mxu0 0
    %209 = vmatpush1.bf16.msra.mxu0 0
    %210 = vmatprep.subr.bf16.mxu0 0
    %211 = vmatpush1.bf16.msra.mxu0 0
    %212 = vmatprep.subr.bf16.mxu0 0
    %213 = vmatpush1.bf16.msra.mxu0 0
    %214 = vmatprep.subr.bf16.mxu0 0
    %215 = vmatpush1.bf16.msra.mxu0 0
    %216 = vmatprep.subr.bf16.mxu0 0
    %217 = vmatpush1.bf16.msra.mxu0 0
    %218 = vmatprep.subr.bf16.mxu0 0
    %219 = vmatpush1.bf16.msra.mxu0 0
    %220 = vmatprep.subr.bf16.mxu0 0
    %221 = vmatpush1.bf16.msra.mxu0 0
    %222 = vmatprep.subr.bf16.mxu0 0
    %223 = vmatpush1.bf16.msra.mxu0 0
    %224 = vmatprep.subr.bf16.mxu0 0
    %225 = vmatpush1.bf16.msra.mxu0 0
    %226 = vmatprep.subr.bf16.mxu0 0
    %227 = vmatpush1.bf16.msra.mxu0 0
    %228 = vmatprep.subr.bf16.mxu0 0
    %229 = vmatpush1.bf16.msra.mxu0 0
    %230 = vmatprep.subr.bf16.mxu0 0
    %231 = vmatpush1.bf16.msra.mxu0 0
    %232 = vmatprep.mubr.bf16.mxu0 0
    %233 = vmatmul.mubr.bf16.gmra.mrb[0].mxu0 %v177
    %v234 = vpop.f32.mrb[0].mxu0
    %v235 = vadd.f32 %v115, %v234
    %v236 = vpop.f32.mrb[0].mxu0
    %v237 = vpop.f32.mrb[0].mxu0
    %v238 = vadd.f32 %v115, %v237
    %v239 = vpop.f32.mrb[0].mxu0
    %240 = vmatprep.mubr.bf16.mxu0 0
    %241 = vmatmul.mubr.bf16.gmra.mrb[0].mxu0 %v180
    %v242 = vpop.f32.mrb[0].mxu0
    %v243 = vadd.f32 %v115, %v242
    %v244 = vpop.f32.mrb[0].mxu0
    %v245 = vpop.f32.mrb[0].mxu0
    %v246 = vadd.f32 %v115, %v245
    %v247 = vpop.f32.mrb[0].mxu0
    %248 = vmatprep.mubr.bf16.mxu0 0
    %249 = vmatmul.mubr.bf16.gmra.mrb[0].mxu0 %v183
    %v250 = vpop.f32.mrb[0].mxu0
    %v251 = vadd.f32 %v115, %v250
    %v252 = vpop.f32.mrb[0].mxu0
    %v253 = vpop.f32.mrb[0].mxu0
    %v254 = vadd.f32 %v115, %v253
    %v255 = vpop.f32.mrb[0].mxu0
    %256 = vmatprep.mubr.bf16.mxu0 0
    %257 = vmatmul.mubr.bf16.gmra.mrb[0].mxu0 %v186
    %v258 = vpop.f32.mrb[0].mxu0
    %v259 = vadd.f32 %v115, %v258
    %v260 = vpop.f32.mrb[0].mxu0
    %v261 = vpop.f32.mrb[0].mxu0
    %v262 = vadd.f32 %v115, %v261
    %v263 = vpop.f32.mrb[0].mxu0
    %264 = vmatprep.mubr.bf16.mxu0 0
    %265 = vmatmul.mubr.bf16.gmra.mrb[0].mxu0 %v189
    %v266 = vpop.f32.mrb[0].mxu0
    %v267 = vadd.f32 %v115, %v266
    %v268 = vpop.f32.mrb[0].mxu0
    %v269 = vpop.f32.mrb[0].mxu0
    %v270 = vadd.f32 %v115, %v269
    %v271 = vpop.f32.mrb[0].mxu0
    %272 = vmatprep.mubr.bf16.mxu0 0
    %273 = vmatmul.mubr.bf16.gmra.mrb[0].mxu0 %v192
    %v274 = vpop.f32.mrb[0].mxu0
    %v275 = vadd.f32 %v115, %v274
    %v276 = vpop.f32.mrb[0].mxu0
    %v277 = vpop.f32.mrb[0].mxu0
    %v278 = vadd.f32 %v115, %v277
    %v279 = vpop.f32.mrb[0].mxu0
    %280 = vmatprep.mubr.bf16.mxu0 0
    %281 = vmatmul.mubr.bf16.gmra.mrb[0].mxu0 %v195
    %v282 = vpop.f32.mrb[0].mxu0
    %v283 = vadd.f32 %v115, %v282
    %v284 = vpop.f32.mrb[0].mxu0
    %v285 = vpop.f32.mrb[0].mxu0
    %v286 = vadd.f32 %v115, %v285
    %v287 = vpop.f32.mrb[0].mxu0
    %288 = vmatprep.mubr.bf16.mxu0 0
    %289 = vmatmul.mubr.bf16.gmra.mrb[0].mxu0 %v198
    %v290 = vpop.f32.mrb[0].mxu0
    %v291 = vadd.f32 %v115, %v290
    %v292 = vpop.f32.mrb[0].mxu0
    %v293 = vpop.f32.mrb[0].mxu0
    %v294 = vadd.f32 %v115, %v293
    %v295 = vpop.f32.mrb[0].mxu0
    %296 = vdwg.mxu0
    %v297 = vmax.f32 %v235, 0.0
    %v298 = vmax.f32 %v238, 0.0
    %v299 = vmax.f32 %v243, 0.0
    %v300 = vmax.f32 %v246, 0.0
    %v301 = vmax.f32 %v251, 0.0
    %v302 = vmax.f32 %v254, 0.0
    %v303 = vmax.f32 %v259, 0.0
    %v304 = vmax.f32 %v262, 0.0
    %v305 = vmax.f32 %v267, 0.0
    %v306 = vmax.f32 %v270, 0.0
    %v307 = vmax.f32 %v275, 0.0
    %v308 = vmax.f32 %v278, 0.0
    %v309 = vmax.f32 %v283, 0.0
    %v310 = vmax.f32 %v286, 0.0
    %v311 = vmax.f32 %v291, 0.0
    %v312 = vmax.f32 %v294, 0.0
    %v313 = vpack.c.bf16 %v298, %v297
    %v314 = vpack.c.bf16 %v300, %v299
    %v315 = vpack.c.bf16 %v302, %v301
    %v316 = vpack.c.bf16 %v304, %v303
    %v317 = vpack.c.bf16 %v306, %v305
    %v318 = vpack.c.bf16 %v308, %v307
    %v319 = vpack.c.bf16 %v310, %v309
    %v320 = vpack.c.bf16 %v312, %v311
    %v321 = vld [vmem:[%s3] sm:$0xf]
    %v322 = vld [vmem:[%s3 + $0x4] sm:$0xf]
    %v323 = vld [vmem:[%s3 + $0x8] sm:$0xf]
    %v324 = vld [vmem:[%s3 + $0xc] sm:$0xf]
    %v325 = vld [vmem:[%s3 + $0x10] sm:$0xf]
    %v326 = vld [vmem:[%s3 + $0x14] sm:$0xf]
    %v327 = vld [vmem:[%s3 + $0x18] sm:$0xf]
    %v328 = vld [vmem:[%s3 + $0x1c] sm:$0xf]
    %v329 = vld [vmem:[%s4] sm:$0xff]
    %v330 = vld [vmem:[%s4 + $0x8] sm:$0xff]
    %v331 = vld [vmem:[%s4 + $0x10] sm:$0xff]
    %v332 = vld [vmem:[%s4 + $0x18] sm:$0xff]
    %v333 = vld [vmem:[%s4 + $0x20] sm:$0xff]
    %v334 = vld [vmem:[%s4 + $0x28] sm:$0xff]
    %v335 = vld [vmem:[%s4 + $0x30] sm:$0xff]
    %v336 = vld [vmem:[%s4 + $0x38] sm:$0xff]
    %v337 = vld [vmem:[%s4 + $0x40] sm:$0xff]
    %v338 = vld [vmem:[%s4 + $0x48] sm:$0xff]
    %v339 = vld [vmem:[%s4 + $0x50] sm:$0xff]
    %v340 = vld [vmem:[%s4 + $0x58] sm:$0xff]
    %v341 = vld [vmem:[%s4 + $0x60] sm:$0xff]
    %v342 = vld [vmem:[%s4 + $0x68] sm:$0xff]
    %v343 = vld [vmem:[%s4 + $0x70] sm:$0xff]
    %v344 = vld [vmem:[%s4 + $0x78] sm:$0xff]
    %v353 = vunpack.c.l.b16 %v321
    %v354 = vunpack.c.l.b16 %v322
    %v355 = vunpack.c.l.b16 %v323
    %v356 = vunpack.c.l.b16 %v324
    %v357 = vunpack.c.l.b16 %v325
    %v358 = vunpack.c.l.b16 %v326
    %v359 = vunpack.c.l.b16 %v327
    %v360 = vunpack.c.l.b16 %v328
    %v361 = vpack.c.b16 %v354, %v353
    %v362 = vpack.c.b16 %v356, %v355
    %v363 = vpack.c.b16 %v358, %v357
    %v364 = vpack.c.b16 %v360, %v359
    %vm369 = vcmask 523264
    %v371 = vsel %vm369, %v313, 0
    %v374 = vsel %vm369, %v314, 0
    %v377 = vsel %vm369, %v315, 0
    %v380 = vsel %vm369, %v316, 0
    %v383 = vsel %vm369, %v317, 0
    %v386 = vsel %vm369, %v318, 0
    %v389 = vsel %vm369, %v319, 0
    %v392 = vsel %vm369, %v320, 0
    %394 = vmatprep.subr.bf16.mxu0 0
    %395 = vmatpush1.bf16.msra.mxu0 %v361
    %396 = vmatprep.subr.bf16.mxu0 0
    %397 = vmatpush1.bf16.msra.mxu0 %v362
    %398 = vmatprep.subr.bf16.mxu0 0
    %399 = vmatpush1.bf16.msra.mxu0 %v363
    %400 = vmatprep.subr.bf16.mxu0 0
    %401 = vmatpush1.bf16.msra.mxu0 %v364
    %402 = vmatprep.subr.bf16.mxu0 0
    %403 = vmatpush1.bf16.msra.mxu0 0
    %404 = vmatprep.subr.bf16.mxu0 0
    %405 = vmatpush1.bf16.msra.mxu0 0
    %406 = vmatprep.subr.bf16.mxu0 0
    %407 = vmatpush1.bf16.msra.mxu0 0
    %408 = vmatprep.subr.bf16.mxu0 0
    %409 = vmatpush1.bf16.msra.mxu0 0
    %410 = vmatprep.subr.bf16.mxu0 0
    %411 = vmatpush1.bf16.msra.mxu0 0
    %412 = vmatprep.subr.bf16.mxu0 0
    %413 = vmatpush1.bf16.msra.mxu0 0
    %414 = vmatprep.subr.bf16.mxu0 0
    %415 = vmatpush1.bf16.msra.mxu0 0
    %416 = vmatprep.subr.bf16.mxu0 0
    %417 = vmatpush1.bf16.msra.mxu0 0
    %418 = vmatprep.subr.bf16.mxu0 0
    %419 = vmatpush1.bf16.msra.mxu0 0
    %420 = vmatprep.subr.bf16.mxu0 0
    %421 = vmatpush1.bf16.msra.mxu0 0
    %422 = vmatprep.subr.bf16.mxu0 0
    %423 = vmatpush1.bf16.msra.mxu0 0
    %424 = vmatprep.subr.bf16.mxu0 0
    %425 = vmatpush1.bf16.msra.mxu0 0
    %426 = vmatprep.mubr.bf16.mxu0 0
    %427 = vmatmul.mubr.bf16.gmra.mrb[0].mxu0 %v371
    %v428 = vpop.f32.mrb[0].mxu0
    %v429 = vadd.f32 %v329, %v428
    %v430 = vpop.f32.mrb[0].mxu0
    %v431 = vpop.f32.mrb[0].mxu0
    %v432 = vadd.f32 %v330, %v431
    %v433 = vpop.f32.mrb[0].mxu0
    %434 = vmatprep.mubr.bf16.mxu0 0
    %435 = vmatmul.mubr.bf16.gmra.mrb[0].mxu0 %v374
    %v436 = vpop.f32.mrb[0].mxu0
    %v437 = vadd.f32 %v331, %v436
    %v438 = vpop.f32.mrb[0].mxu0
    %v439 = vpop.f32.mrb[0].mxu0
    %v440 = vadd.f32 %v332, %v439
    %v441 = vpop.f32.mrb[0].mxu0
    %442 = vmatprep.mubr.bf16.mxu0 0
    %443 = vmatmul.mubr.bf16.gmra.mrb[0].mxu0 %v377
    %v444 = vpop.f32.mrb[0].mxu0
    %v445 = vadd.f32 %v333, %v444
    %v446 = vpop.f32.mrb[0].mxu0
    %v447 = vpop.f32.mrb[0].mxu0
    %v448 = vadd.f32 %v334, %v447
    %v449 = vpop.f32.mrb[0].mxu0
    %450 = vmatprep.mubr.bf16.mxu0 0
    %451 = vmatmul.mubr.bf16.gmra.mrb[0].mxu0 %v380
    %v452 = vpop.f32.mrb[0].mxu0
    %v453 = vadd.f32 %v335, %v452
    %v454 = vpop.f32.mrb[0].mxu0
    %v455 = vpop.f32.mrb[0].mxu0
    %v456 = vadd.f32 %v336, %v455
    %v457 = vpop.f32.mrb[0].mxu0
    %458 = vmatprep.mubr.bf16.mxu0 0
    %459 = vmatmul.mubr.bf16.gmra.mrb[0].mxu0 %v383
    %v460 = vpop.f32.mrb[0].mxu0
    %v461 = vadd.f32 %v337, %v460
    %v462 = vpop.f32.mrb[0].mxu0
    %v463 = vpop.f32.mrb[0].mxu0
    %v464 = vadd.f32 %v338, %v463
    %v465 = vpop.f32.mrb[0].mxu0
    %466 = vmatprep.mubr.bf16.mxu0 0
    %467 = vmatmul.mubr.bf16.gmra.mrb[0].mxu0 %v386
    %v468 = vpop.f32.mrb[0].mxu0
    %v469 = vadd.f32 %v339, %v468
    %v470 = vpop.f32.mrb[0].mxu0
    %v471 = vpop.f32.mrb[0].mxu0
    %v472 = vadd.f32 %v340, %v471
    %v473 = vpop.f32.mrb[0].mxu0
    %474 = vmatprep.mubr.bf16.mxu0 0
    %475 = vmatmul.mubr.bf16.gmra.mrb[0].mxu0 %v389
    %v476 = vpop.f32.mrb[0].mxu0
    %v477 = vadd.f32 %v341, %v476
    %v478 = vpop.f32.mrb[0].mxu0
    %v479 = vpop.f32.mrb[0].mxu0
    %v480 = vadd.f32 %v342, %v479
    %v481 = vpop.f32.mrb[0].mxu0
    %482 = vmatprep.mubr.bf16.mxu0 0
    %483 = vmatmul.mubr.bf16.gmra.mrb[0].mxu0 %v392
    %v484 = vpop.f32.mrb[0].mxu0
    %v485 = vadd.f32 %v343, %v484
    %v486 = vpop.f32.mrb[0].mxu0
    %v487 = vpop.f32.mrb[0].mxu0
    %v488 = vadd.f32 %v344, %v487
    %v489 = vpop.f32.mrb[0].mxu0
    %490 = vdwg.mxu0
    %v491 = vld [vmem:[%s5] sm:$0xff]
    %v492 = vld [vmem:[%s5 + $0x8] sm:$0xff]
    %v493 = vld [vmem:[%s5 + $0x10] sm:$0xff]
    %v494 = vld [vmem:[%s5 + $0x18] sm:$0xff]
    %v495 = vld [vmem:[%s5 + $0x20] sm:$0xff]
    %v496 = vld [vmem:[%s5 + $0x28] sm:$0xff]
    %v497 = vld [vmem:[%s5 + $0x30] sm:$0xff]
    %v498 = vld [vmem:[%s5 + $0x38] sm:$0xff]
    %v499 = vld [vmem:[%s5 + $0x40] sm:$0xff]
    %v500 = vld [vmem:[%s5 + $0x48] sm:$0xff]
    %v501 = vld [vmem:[%s5 + $0x50] sm:$0xff]
    %v502 = vld [vmem:[%s5 + $0x58] sm:$0xff]
    %v503 = vld [vmem:[%s5 + $0x60] sm:$0xff]
    %v504 = vld [vmem:[%s5 + $0x68] sm:$0xff]
    %v505 = vld [vmem:[%s5 + $0x70] sm:$0xff]
    %v506 = vld [vmem:[%s5 + $0x78] sm:$0xff]
    %508 = vset.pattern.permute.xlu0 0
    %509 = vperm.xlu0 %508, %v491
    %v510 = vpop.permute.xlu0 %509
    %513 = vset.pattern.permute.xlu0 0
    %514 = vperm.xlu0 %513, %v492
    %v515 = vpop.permute.xlu0 %514
    %518 = vset.pattern.permute.xlu0 0
    %519 = vperm.xlu0 %518, %v493
    %v520 = vpop.permute.xlu0 %519
    %523 = vset.pattern.permute.xlu0 0
    %524 = vperm.xlu0 %523, %v494
    %v525 = vpop.permute.xlu0 %524
    %528 = vset.pattern.permute.xlu0 0
    %529 = vperm.xlu0 %528, %v495
    %v530 = vpop.permute.xlu0 %529
    %533 = vset.pattern.permute.xlu0 0
    %534 = vperm.xlu0 %533, %v496
    %v535 = vpop.permute.xlu0 %534
    %538 = vset.pattern.permute.xlu0 0
    %539 = vperm.xlu0 %538, %v497
    %v540 = vpop.permute.xlu0 %539
    %543 = vset.pattern.permute.xlu0 0
    %544 = vperm.xlu0 %543, %v498
    %v545 = vpop.permute.xlu0 %544
    %548 = vset.pattern.permute.xlu0 0
    %549 = vperm.xlu0 %548, %v499
    %v550 = vpop.permute.xlu0 %549
    %553 = vset.pattern.permute.xlu0 0
    %554 = vperm.xlu0 %553, %v500
    %v555 = vpop.permute.xlu0 %554
    %558 = vset.pattern.permute.xlu0 0
    %559 = vperm.xlu0 %558, %v501
    %v560 = vpop.permute.xlu0 %559
    %563 = vset.pattern.permute.xlu0 0
    %564 = vperm.xlu0 %563, %v502
    %v565 = vpop.permute.xlu0 %564
    %568 = vset.pattern.permute.xlu0 0
    %569 = vperm.xlu0 %568, %v503
    %v570 = vpop.permute.xlu0 %569
    %573 = vset.pattern.permute.xlu0 0
    %574 = vperm.xlu0 %573, %v504
    %v575 = vpop.permute.xlu0 %574
    %578 = vset.pattern.permute.xlu0 0
    %579 = vperm.xlu0 %578, %v505
    %v580 = vpop.permute.xlu0 %579
    %583 = vset.pattern.permute.xlu0 0
    %584 = vperm.xlu0 %583, %v506
    %v585 = vpop.permute.xlu0 %584
    %v587 = vmul.f32 %v429, %v510
    %v588 = vmul.f32 %v432, %v515
    %v589 = vmul.f32 %v437, %v520
    %v590 = vmul.f32 %v440, %v525
    %v591 = vmul.f32 %v445, %v530
    %v592 = vmul.f32 %v448, %v535
    %v593 = vmul.f32 %v453, %v540
    %v594 = vmul.f32 %v456, %v545
    %v595 = vmul.f32 %v461, %v550
    %v596 = vmul.f32 %v464, %v555
    %v597 = vmul.f32 %v469, %v560
    %v598 = vmul.f32 %v472, %v565
    %v599 = vmul.f32 %v477, %v570
    %v600 = vmul.f32 %v480, %v575
    %v601 = vmul.f32 %v485, %v580
    %v602 = vmul.f32 %v488, %v585
    %v603 = vld [vmem:[%s6] sm:$0xff]
    %v604 = vld [vmem:[%s6 + $0x8] sm:$0xff]
    %v605 = vld [vmem:[%s6 + $0x10] sm:$0xff]
    %v606 = vld [vmem:[%s6 + $0x18] sm:$0xff]
    %v607 = vld [vmem:[%s6 + $0x20] sm:$0xff]
    %v608 = vld [vmem:[%s6 + $0x28] sm:$0xff]
    %v609 = vld [vmem:[%s6 + $0x30] sm:$0xff]
    %v610 = vld [vmem:[%s6 + $0x38] sm:$0xff]
    %v611 = vld [vmem:[%s6 + $0x40] sm:$0xff]
    %v612 = vld [vmem:[%s6 + $0x48] sm:$0xff]
    %v613 = vld [vmem:[%s6 + $0x50] sm:$0xff]
    %v614 = vld [vmem:[%s6 + $0x58] sm:$0xff]
    %v615 = vld [vmem:[%s6 + $0x60] sm:$0xff]
    %v616 = vld [vmem:[%s6 + $0x68] sm:$0xff]
    %v617 = vld [vmem:[%s6 + $0x70] sm:$0xff]
    %v618 = vld [vmem:[%s6 + $0x78] sm:$0xff]
    %620 = vset.pattern.permute.xlu0 0
    %621 = vperm.xlu0 %620, %v603
    %v622 = vpop.permute.xlu0 %621
    %625 = vset.pattern.permute.xlu0 0
    %626 = vperm.xlu0 %625, %v604
    %v627 = vpop.permute.xlu0 %626
    %630 = vset.pattern.permute.xlu0 0
    %631 = vperm.xlu0 %630, %v605
    %v632 = vpop.permute.xlu0 %631
    %635 = vset.pattern.permute.xlu0 0
    %636 = vperm.xlu0 %635, %v606
    %v637 = vpop.permute.xlu0 %636
    %640 = vset.pattern.permute.xlu0 0
    %641 = vperm.xlu0 %640, %v607
    %v642 = vpop.permute.xlu0 %641
    %645 = vset.pattern.permute.xlu0 0
    %646 = vperm.xlu0 %645, %v608
    %v647 = vpop.permute.xlu0 %646
    %650 = vset.pattern.permute.xlu0 0
    %651 = vperm.xlu0 %650, %v609
    %v652 = vpop.permute.xlu0 %651
    %655 = vset.pattern.permute.xlu0 0
    %656 = vperm.xlu0 %655, %v610
    %v657 = vpop.permute.xlu0 %656
    %660 = vset.pattern.permute.xlu0 0
    %661 = vperm.xlu0 %660, %v611
    %v662 = vpop.permute.xlu0 %661
    %665 = vset.pattern.permute.xlu0 0
    %666 = vperm.xlu0 %665, %v612
    %v667 = vpop.permute.xlu0 %666
    %670 = vset.pattern.permute.xlu0 0
    %671 = vperm.xlu0 %670, %v613
    %v672 = vpop.permute.xlu0 %671
    %675 = vset.pattern.permute.xlu0 0
    %676 = vperm.xlu0 %675, %v614
    %v677 = vpop.permute.xlu0 %676
    %680 = vset.pattern.permute.xlu0 0
    %681 = vperm.xlu0 %680, %v615
    %v682 = vpop.permute.xlu0 %681
    %685 = vset.pattern.permute.xlu0 0
    %686 = vperm.xlu0 %685, %v616
    %v687 = vpop.permute.xlu0 %686
    %690 = vset.pattern.permute.xlu0 0
    %691 = vperm.xlu0 %690, %v617
    %v692 = vpop.permute.xlu0 %691
    %695 = vset.pattern.permute.xlu0 0
    %696 = vperm.xlu0 %695, %v618
    %v697 = vpop.permute.xlu0 %696
    %v699 = vadd.f32 %v587, %v622
    %v700 = vadd.f32 %v588, %v627
    %v701 = vadd.f32 %v589, %v632
    %v702 = vadd.f32 %v590, %v637
    %v703 = vadd.f32 %v591, %v642
    %v704 = vadd.f32 %v592, %v647
    %v705 = vadd.f32 %v593, %v652
    %v706 = vadd.f32 %v594, %v657
    %v707 = vadd.f32 %v595, %v662
    %v708 = vadd.f32 %v596, %v667
    %v709 = vadd.f32 %v597, %v672
    %v710 = vadd.f32 %v598, %v677
    %v711 = vadd.f32 %v599, %v682
    %v712 = vadd.f32 %v600, %v687
    %v713 = vadd.f32 %v601, %v692
    %v714 = vadd.f32 %v602, %v697
    %v715 = vmax.f32 %v699, 0.0
    %v716 = vmax.f32 %v700, 0.0
    %v717 = vmax.f32 %v701, 0.0
    %v718 = vmax.f32 %v702, 0.0
    %v719 = vmax.f32 %v703, 0.0
    %v720 = vmax.f32 %v704, 0.0
    %v721 = vmax.f32 %v705, 0.0
    %v722 = vmax.f32 %v706, 0.0
    %v723 = vmax.f32 %v707, 0.0
    %v724 = vmax.f32 %v708, 0.0
    %v725 = vmax.f32 %v709, 0.0
    %v726 = vmax.f32 %v710, 0.0
    %v727 = vmax.f32 %v711, 0.0
    %v728 = vmax.f32 %v712, 0.0
    %v729 = vmax.f32 %v713, 0.0
    %v730 = vmax.f32 %v714, 0.0
    %v731 = vpack.c.bf16 %v716, %v715
    %v732 = vpack.c.bf16 %v718, %v717
    %v733 = vpack.c.bf16 %v720, %v719
    %v734 = vpack.c.bf16 %v722, %v721
    %v735 = vpack.c.bf16 %v724, %v723
    %v736 = vpack.c.bf16 %v726, %v725
    %v737 = vpack.c.bf16 %v728, %v727
    %v738 = vpack.c.bf16 %v730, %v729
    %v739 = vld [vmem:[%s7] sm:$0xf]
    %v740 = vld [vmem:[%s7 + $0x4] sm:$0xf]
    %v741 = vld [vmem:[%s7 + $0x8] sm:$0xf]
    %v742 = vld [vmem:[%s7 + $0xc] sm:$0xf]
    %v743 = vld [vmem:[%s8] sm:$0x1]
    %v745 = vlaneseq
    %v746 = vshrl.u32 %v745, 7
    %v747 = vsub.s32 0, %v746
    %v748 = vrot.slane %v743, %v747
    %v754 = vunpack.c.l.b16 %v739
    %v755 = vunpack.c.l.b16 %v740
    %v756 = vunpack.c.l.b16 %v741
    %v757 = vunpack.c.l.b16 %v742
    %v758 = vpack.c.b16 %v755, %v754
    %v759 = vpack.c.b16 %v757, %v756
    %vm762 = vcmask 261120
    %v764 = vsel %vm762, %v731, 0
    %v767 = vsel %vm762, %v732, 0
    %v770 = vsel %vm762, %v733, 0
    %v773 = vsel %vm762, %v734, 0
    %v776 = vsel %vm762, %v735, 0
    %v779 = vsel %vm762, %v736, 0
    %v782 = vsel %vm762, %v737, 0
    %v785 = vsel %vm762, %v738, 0
    %787 = vmatprep.subr.bf16.mxu0 0
    %788 = vmatpush1.bf16.msra.mxu0 %v758
    %789 = vmatprep.subr.bf16.mxu0 0
    %790 = vmatpush1.bf16.msra.mxu0 %v759
    %791 = vmatprep.subr.bf16.mxu0 0
    %792 = vmatpush1.bf16.msra.mxu0 0
    %793 = vmatprep.subr.bf16.mxu0 0
    %794 = vmatpush1.bf16.msra.mxu0 0
    %795 = vmatprep.subr.bf16.mxu0 0
    %796 = vmatpush1.bf16.msra.mxu0 0
    %797 = vmatprep.subr.bf16.mxu0 0
    %798 = vmatpush1.bf16.msra.mxu0 0
    %799 = vmatprep.subr.bf16.mxu0 0
    %800 = vmatpush1.bf16.msra.mxu0 0
    %801 = vmatprep.subr.bf16.mxu0 0
    %802 = vmatpush1.bf16.msra.mxu0 0
    %803 = vmatprep.subr.bf16.mxu0 0
    %804 = vmatpush1.bf16.msra.mxu0 0
    %805 = vmatprep.subr.bf16.mxu0 0
    %806 = vmatpush1.bf16.msra.mxu0 0
    %807 = vmatprep.subr.bf16.mxu0 0
    %808 = vmatpush1.bf16.msra.mxu0 0
    %809 = vmatprep.subr.bf16.mxu0 0
    %810 = vmatpush1.bf16.msra.mxu0 0
    %811 = vmatprep.subr.bf16.mxu0 0
    %812 = vmatpush1.bf16.msra.mxu0 0
    %813 = vmatprep.subr.bf16.mxu0 0
    %814 = vmatpush1.bf16.msra.mxu0 0
    %815 = vmatprep.subr.bf16.mxu0 0
    %816 = vmatpush1.bf16.msra.mxu0 0
    %817 = vmatprep.subr.bf16.mxu0 0
    %818 = vmatpush1.bf16.msra.mxu0 0
    %819 = vmatprep.mubr.bf16.mxu0 0
    %820 = vmatmul.mubr.bf16.gmra.mrb[0].mxu0 %v764
    %v821 = vpop.f32.mrb[0].mxu0
    %v822 = vadd.f32 %v748, %v821
    %v823 = vpop.f32.mrb[0].mxu0
    %v824 = vpop.f32.mrb[0].mxu0
    %v825 = vadd.f32 %v748, %v824
    %v826 = vpop.f32.mrb[0].mxu0
    %827 = vmatprep.mubr.bf16.mxu0 0
    %828 = vmatmul.mubr.bf16.gmra.mrb[0].mxu0 %v767
    %v829 = vpop.f32.mrb[0].mxu0
    %v830 = vadd.f32 %v748, %v829
    %v831 = vpop.f32.mrb[0].mxu0
    %v832 = vpop.f32.mrb[0].mxu0
    %v833 = vadd.f32 %v748, %v832
    %v834 = vpop.f32.mrb[0].mxu0
    %835 = vmatprep.mubr.bf16.mxu0 0
    %836 = vmatmul.mubr.bf16.gmra.mrb[0].mxu0 %v770
    %v837 = vpop.f32.mrb[0].mxu0
    %v838 = vadd.f32 %v748, %v837
    %v839 = vpop.f32.mrb[0].mxu0
    %v840 = vpop.f32.mrb[0].mxu0
    %v841 = vadd.f32 %v748, %v840
    %v842 = vpop.f32.mrb[0].mxu0
    %843 = vmatprep.mubr.bf16.mxu0 0
    %844 = vmatmul.mubr.bf16.gmra.mrb[0].mxu0 %v773
    %v845 = vpop.f32.mrb[0].mxu0
    %v846 = vadd.f32 %v748, %v845
    %v847 = vpop.f32.mrb[0].mxu0
    %v848 = vpop.f32.mrb[0].mxu0
    %v849 = vadd.f32 %v748, %v848
    %v850 = vpop.f32.mrb[0].mxu0
    %851 = vmatprep.mubr.bf16.mxu0 0
    %852 = vmatmul.mubr.bf16.gmra.mrb[0].mxu0 %v776
    %v853 = vpop.f32.mrb[0].mxu0
    %v854 = vadd.f32 %v748, %v853
    %v855 = vpop.f32.mrb[0].mxu0
    %v856 = vpop.f32.mrb[0].mxu0
    %v857 = vadd.f32 %v748, %v856
    %v858 = vpop.f32.mrb[0].mxu0
    %859 = vmatprep.mubr.bf16.mxu0 0
    %860 = vmatmul.mubr.bf16.gmra.mrb[0].mxu0 %v779
    %v861 = vpop.f32.mrb[0].mxu0
    %v862 = vadd.f32 %v748, %v861
    %v863 = vpop.f32.mrb[0].mxu0
    %v864 = vpop.f32.mrb[0].mxu0
    %v865 = vadd.f32 %v748, %v864
    %v866 = vpop.f32.mrb[0].mxu0
    %867 = vmatprep.mubr.bf16.mxu0 0
    %868 = vmatmul.mubr.bf16.gmra.mrb[0].mxu0 %v782
    %v869 = vpop.f32.mrb[0].mxu0
    %v870 = vadd.f32 %v748, %v869
    %v871 = vpop.f32.mrb[0].mxu0
    %v872 = vpop.f32.mrb[0].mxu0
    %v873 = vadd.f32 %v748, %v872
    %v874 = vpop.f32.mrb[0].mxu0
    %875 = vmatprep.mubr.bf16.mxu0 0
    %876 = vmatmul.mubr.bf16.gmra.mrb[0].mxu0 %v785
    %v877 = vpop.f32.mrb[0].mxu0
    %v878 = vadd.f32 %v748, %v877
    %v879 = vpop.f32.mrb[0].mxu0
    %v880 = vpop.f32.mrb[0].mxu0
    %v881 = vadd.f32 %v748, %v880
    %v882 = vpop.f32.mrb[0].mxu0
    %883 = vdwg.mxu0
    %v884 = vpack.c.bf16 %v825, %v822
    %v885 = vpack.c.bf16 %v833, %v830
    %v886 = vpack.c.bf16 %v841, %v838
    %v887 = vpack.c.bf16 %v849, %v846
    %v888 = vpack.c.bf16 %v857, %v854
    %v889 = vpack.c.bf16 %v865, %v862
    %v890 = vpack.c.bf16 %v873, %v870
    %v891 = vpack.c.bf16 %v881, %v878
    %v892 = vld [vmem:[%s9] sm:$0xf]
    %v893 = vld [vmem:[%s9 + $0x4] sm:$0xf]
    %v894 = vld [vmem:[%s9 + $0x8] sm:$0xf]
    %v895 = vld [vmem:[%s9 + $0xc] sm:$0xf]
    %v896 = vld [vmem:[%s9 + $0x10] sm:$0xf]
    %v897 = vld [vmem:[%s9 + $0x14] sm:$0xf]
    %v898 = vld [vmem:[%s9 + $0x18] sm:$0xf]
    %v899 = vld [vmem:[%s9 + $0x1c] sm:$0xf]
    %v900 = vld [vmem:[%s10] sm:$0x1]
    %v902 = vlaneseq
    %v903 = vshrl.u32 %v902, 7
    %v904 = vsub.s32 0, %v903
    %v905 = vrot.slane %v900, %v904
    %v915 = vunpack.c.l.b16 %v892
    %v916 = vunpack.c.l.b16 %v893
    %v917 = vunpack.c.l.b16 %v894
    %v918 = vunpack.c.l.b16 %v895
    %v919 = vunpack.c.l.b16 %v896
    %v920 = vunpack.c.l.b16 %v897
    %v921 = vunpack.c.l.b16 %v898
    %v922 = vunpack.c.l.b16 %v899
    %v923 = vpack.c.b16 %v916, %v915
    %v924 = vpack.c.b16 %v918, %v917
    %v925 = vpack.c.b16 %v920, %v919
    %v926 = vpack.c.b16 %v922, %v921
    %v932 = vsel %vm369, %v884, 0
    %v935 = vsel %vm369, %v885, 0
    %v938 = vsel %vm369, %v886, 0
    %v941 = vsel %vm369, %v887, 0
    %v944 = vsel %vm369, %v888, 0
    %v947 = vsel %vm369, %v889, 0
    %v950 = vsel %vm369, %v890, 0
    %v953 = vsel %vm369, %v891, 0
    %955 = vmatprep.subr.bf16.mxu0 0
    %956 = vmatpush1.bf16.msra.mxu0 %v923
    %957 = vmatprep.subr.bf16.mxu0 0
    %958 = vmatpush1.bf16.msra.mxu0 %v924
    %959 = vmatprep.subr.bf16.mxu0 0
    %960 = vmatpush1.bf16.msra.mxu0 %v925
    %961 = vmatprep.subr.bf16.mxu0 0
    %962 = vmatpush1.bf16.msra.mxu0 %v926
    %963 = vmatprep.subr.bf16.mxu0 0
    %964 = vmatpush1.bf16.msra.mxu0 0
    %965 = vmatprep.subr.bf16.mxu0 0
    %966 = vmatpush1.bf16.msra.mxu0 0
    %967 = vmatprep.subr.bf16.mxu0 0
    %968 = vmatpush1.bf16.msra.mxu0 0
    %969 = vmatprep.subr.bf16.mxu0 0
    %970 = vmatpush1.bf16.msra.mxu0 0
    %971 = vmatprep.subr.bf16.mxu0 0
    %972 = vmatpush1.bf16.msra.mxu0 0
    %973 = vmatprep.subr.bf16.mxu0 0
    %974 = vmatpush1.bf16.msra.mxu0 0
    %975 = vmatprep.subr.bf16.mxu0 0
    %976 = vmatpush1.bf16.msra.mxu0 0
    %977 = vmatprep.subr.bf16.mxu0 0
    %978 = vmatpush1.bf16.msra.mxu0 0
    %979 = vmatprep.subr.bf16.mxu0 0
    %980 = vmatpush1.bf16.msra.mxu0 0
    %981 = vmatprep.subr.bf16.mxu0 0
    %982 = vmatpush1.bf16.msra.mxu0 0
    %983 = vmatprep.subr.bf16.mxu0 0
    %984 = vmatpush1.bf16.msra.mxu0 0
    %985 = vmatprep.subr.bf16.mxu0 0
    %986 = vmatpush1.bf16.msra.mxu0 0
    %987 = vmatprep.mubr.bf16.mxu0 0
    %988 = vmatmul.mubr.bf16.gmra.mrb[0].mxu0 %v932
    %v989 = vpop.f32.mrb[0].mxu0
    %v990 = vadd.f32 %v905, %v989
    %v991 = vpop.f32.mrb[0].mxu0
    %v992 = vpop.f32.mrb[0].mxu0
    %v993 = vadd.f32 %v905, %v992
    %v994 = vpop.f32.mrb[0].mxu0
    %995 = vmatprep.mubr.bf16.mxu0 0
    %996 = vmatmul.mubr.bf16.gmra.mrb[0].mxu0 %v935
    %v997 = vpop.f32.mrb[0].mxu0
    %v998 = vadd.f32 %v905, %v997
    %v999 = vpop.f32.mrb[0].mxu0
    %v1000 = vpop.f32.mrb[0].mxu0
    %v1001 = vadd.f32 %v905, %v1000
    %v1002 = vpop.f32.mrb[0].mxu0
    %1003 = vmatprep.mubr.bf16.mxu0 0
    %1004 = vmatmul.mubr.bf16.gmra.mrb[0].mxu0 %v938
    %v1005 = vpop.f32.mrb[0].mxu0
    %v1006 = vadd.f32 %v905, %v1005
    %v1007 = vpop.f32.mrb[0].mxu0
    %v1008 = vpop.f32.mrb[0].mxu0
    %v1009 = vadd.f32 %v905, %v1008
    %v1010 = vpop.f32.mrb[0].mxu0
    %1011 = vmatprep.mubr.bf16.mxu0 0
    %1012 = vmatmul.mubr.bf16.gmra.mrb[0].mxu0 %v941
    %v1013 = vpop.f32.mrb[0].mxu0
    %v1014 = vadd.f32 %v905, %v1013
    %v1015 = vpop.f32.mrb[0].mxu0
    %v1016 = vpop.f32.mrb[0].mxu0
    %v1017 = vadd.f32 %v905, %v1016
    %v1018 = vpop.f32.mrb[0].mxu0
    %1019 = vmatprep.mubr.bf16.mxu0 0
    %1020 = vmatmul.mubr.bf16.gmra.mrb[0].mxu0 %v944
    %v1021 = vpop.f32.mrb[0].mxu0
    %v1022 = vadd.f32 %v905, %v1021
    %v1023 = vpop.f32.mrb[0].mxu0
    %v1024 = vpop.f32.mrb[0].mxu0
    %v1025 = vadd.f32 %v905, %v1024
    %v1026 = vpop.f32.mrb[0].mxu0
    %1027 = vmatprep.mubr.bf16.mxu0 0
    %1028 = vmatmul.mubr.bf16.gmra.mrb[0].mxu0 %v947
    %v1029 = vpop.f32.mrb[0].mxu0
    %v1030 = vadd.f32 %v905, %v1029
    %v1031 = vpop.f32.mrb[0].mxu0
    %v1032 = vpop.f32.mrb[0].mxu0
    %v1033 = vadd.f32 %v905, %v1032
    %v1034 = vpop.f32.mrb[0].mxu0
    %1035 = vmatprep.mubr.bf16.mxu0 0
    %1036 = vmatmul.mubr.bf16.gmra.mrb[0].mxu0 %v950
    %v1037 = vpop.f32.mrb[0].mxu0
    %v1038 = vadd.f32 %v905, %v1037
    %v1039 = vpop.f32.mrb[0].mxu0
    %v1040 = vpop.f32.mrb[0].mxu0
    %v1041 = vadd.f32 %v905, %v1040
    %v1042 = vpop.f32.mrb[0].mxu0
    %1043 = vmatprep.mubr.bf16.mxu0 0
    %1044 = vmatmul.mubr.bf16.gmra.mrb[0].mxu0 %v953
    %v1045 = vpop.f32.mrb[0].mxu0
    %v1046 = vadd.f32 %v905, %v1045
    %v1047 = vpop.f32.mrb[0].mxu0
    %v1048 = vpop.f32.mrb[0].mxu0
    %v1049 = vadd.f32 %v905, %v1048
    %v1050 = vpop.f32.mrb[0].mxu0
    %1051 = vdwg.mxu0
    %v1052 = vmax.f32 %v990, 0.0
    %v1053 = vmax.f32 %v993, 0.0
    %v1054 = vmax.f32 %v998, 0.0
    %v1055 = vmax.f32 %v1001, 0.0
    %v1056 = vmax.f32 %v1006, 0.0
    %v1057 = vmax.f32 %v1009, 0.0
    %v1058 = vmax.f32 %v1014, 0.0
    %v1059 = vmax.f32 %v1017, 0.0
    %v1060 = vmax.f32 %v1022, 0.0
    %v1061 = vmax.f32 %v1025, 0.0
    %v1062 = vmax.f32 %v1030, 0.0
    %v1063 = vmax.f32 %v1033, 0.0
    %v1064 = vmax.f32 %v1038, 0.0
    %v1065 = vmax.f32 %v1041, 0.0
    %v1066 = vmax.f32 %v1046, 0.0
    %v1067 = vmax.f32 %v1049, 0.0
    %v1068 = vld [vmem:[%s23] sm:$0xf]
    %v1069 = vld [vmem:[%s23 + $0x4] sm:$0xf]
    %v1070 = vld [vmem:[%s23 + $0x8] sm:$0xf]
    %v1071 = vld [vmem:[%s23 + $0xc] sm:$0xf]
    %v1072 = vld [vmem:[%s23 + $0x10] sm:$0xf]
    %v1073 = vld [vmem:[%s23 + $0x14] sm:$0xf]
    %v1074 = vld [vmem:[%s23 + $0x18] sm:$0xf]
    %v1075 = vld [vmem:[%s23 + $0x1c] sm:$0xf]
    %v1076 = vld [vmem:[%s23 + $0x20] sm:$0xf]
    %v1077 = vld [vmem:[%s23 + $0x24] sm:$0xf]
    %v1078 = vld [vmem:[%s23 + $0x28] sm:$0xf]
    %v1079 = vld [vmem:[%s23 + $0x2c] sm:$0xf]
    %v1080 = vld [vmem:[%s23 + $0x30] sm:$0xf]
    %v1081 = vld [vmem:[%s23 + $0x34] sm:$0xf]
    %v1082 = vld [vmem:[%s23 + $0x38] sm:$0xf]
    %v1083 = vld [vmem:[%s23 + $0x3c] sm:$0xf]
    %v1084 = vld [vmem:[%s24] sm:$0xf]
    %v1085 = vpack.c.bf16 %v1053, %v1052
    %v1086 = vpack.c.bf16 %v1055, %v1054
    %v1087 = vpack.c.bf16 %v1057, %v1056
    %v1088 = vpack.c.bf16 %v1059, %v1058
    %v1089 = vpack.c.bf16 %v1061, %v1060
    %v1090 = vpack.c.bf16 %v1063, %v1062
    %v1091 = vpack.c.bf16 %v1065, %v1064
    %v1092 = vpack.c.bf16 %v1067, %v1066
    %v1093 = vld [vmem:[%s11] sm:$0xff]
    %v1094 = vld [vmem:[%s11 + $0x8] sm:$0xff]
    %v1095 = vld [vmem:[%s11 + $0x10] sm:$0xff]
    %v1096 = vld [vmem:[%s11 + $0x18] sm:$0xff]
    %v1097 = vld [vmem:[%s11 + $0x20] sm:$0xff]
    %v1098 = vld [vmem:[%s11 + $0x28] sm:$0xff]
    %v1099 = vld [vmem:[%s11 + $0x30] sm:$0xff]
    %v1100 = vld [vmem:[%s11 + $0x38] sm:$0xff]
    %v1101 = vld [vmem:[%s12] sm:$0x3]
    %v1103 = vlaneseq
    %v1104 = vshrl.u32 %v1103, 7
    %v1105 = vsub.s32 0, %v1104
    %v1106 = vrot.slane %v1101, %v1105
    %v1107 = vlaneseq
    %v1108 = vshrl.u32 %v1107, 7
    %v1109 = vsub.s32 1, %v1108
    %v1110 = vrot.slane %v1101, %v1109
    %v1121 = vunpack.c.l.b16 %v1093
    %v1122 = vunpack.c.h.b16 %v1093
    %v1123 = vunpack.c.l.b16 %v1094
    %v1124 = vunpack.c.h.b16 %v1094
    %v1125 = vunpack.c.l.b16 %v1095
    %v1126 = vunpack.c.h.b16 %v1095
    %v1127 = vunpack.c.l.b16 %v1096
    %v1128 = vunpack.c.h.b16 %v1096
    %v1129 = vunpack.c.l.b16 %v1097
    %v1130 = vunpack.c.h.b16 %v1097
    %v1131 = vunpack.c.l.b16 %v1098
    %v1132 = vunpack.c.h.b16 %v1098
    %v1133 = vunpack.c.l.b16 %v1099
    %v1134 = vunpack.c.h.b16 %v1099
    %v1135 = vunpack.c.l.b16 %v1100
    %v1136 = vunpack.c.h.b16 %v1100
    %v1137 = vpack.c.b16 %v1123, %v1121
    %v1138 = vpack.c.b16 %v1124, %v1122
    %v1139 = vpack.c.b16 %v1127, %v1125
    %v1140 = vpack.c.b16 %v1128, %v1126
    %v1141 = vpack.c.b16 %v1131, %v1129
    %v1142 = vpack.c.b16 %v1132, %v1130
    %v1143 = vpack.c.b16 %v1135, %v1133
    %v1144 = vpack.c.b16 %v1136, %v1134
    %v1154 = vsel %vm369, %v1085, 0
    %v1157 = vsel %vm369, %v1086, 0
    %v1160 = vsel %vm369, %v1087, 0
    %v1163 = vsel %vm369, %v1088, 0
    %v1166 = vsel %vm369, %v1089, 0
    %v1169 = vsel %vm369, %v1090, 0
    %v1172 = vsel %vm369, %v1091, 0
    %v1175 = vsel %vm369, %v1092, 0
    %1177 = vmatprep.subr.bf16.mxu0 %v1138
    %1178 = vmatpush1.bf16.msra.mxu0 %v1137
    %1179 = vmatprep.subr.bf16.mxu0 %v1140
    %1180 = vmatpush1.bf16.msra.mxu0 %v1139
    %1181 = vmatprep.subr.bf16.mxu0 %v1142
    %1182 = vmatpush1.bf16.msra.mxu0 %v1141
    %1183 = vmatprep.subr.bf16.mxu0 %v1144
    %1184 = vmatpush1.bf16.msra.mxu0 %v1143
    %1185 = vmatprep.subr.bf16.mxu0 0
    %1186 = vmatpush1.bf16.msra.mxu0 0
    %1187 = vmatprep.subr.bf16.mxu0 0
    %1188 = vmatpush1.bf16.msra.mxu0 0
    %1189 = vmatprep.subr.bf16.mxu0 0
    %1190 = vmatpush1.bf16.msra.mxu0 0
    %1191 = vmatprep.subr.bf16.mxu0 0
    %1192 = vmatpush1.bf16.msra.mxu0 0
    %1193 = vmatprep.subr.bf16.mxu0 0
    %1194 = vmatpush1.bf16.msra.mxu0 0
    %1195 = vmatprep.subr.bf16.mxu0 0
    %1196 = vmatpush1.bf16.msra.mxu0 0
    %1197 = vmatprep.subr.bf16.mxu0 0
    %1198 = vmatpush1.bf16.msra.mxu0 0
    %1199 = vmatprep.subr.bf16.mxu0 0
    %1200 = vmatpush1.bf16.msra.mxu0 0
    %1201 = vmatprep.subr.bf16.mxu0 0
    %1202 = vmatpush1.bf16.msra.mxu0 0
    %1203 = vmatprep.subr.bf16.mxu0 0
    %1204 = vmatpush1.bf16.msra.mxu0 0
    %1205 = vmatprep.subr.bf16.mxu0 0
    %1206 = vmatpush1.bf16.msra.mxu0 0
    %1207 = vmatprep.subr.bf16.mxu0 0
    %1208 = vmatpush1.bf16.msra.mxu0 0
    %1209 = vmatprep.mubr.bf16.mxu0 0
    %1210 = vmatmul.mubr.bf16.gmra.mrb[0].mxu0 %v1154
    %v1211 = vpop.f32.mrb[0].mxu0
    %v1212 = vadd.f32 %v1106, %v1211
    %v1213 = vpop.f32.mrb[0].mxu0
    %v1214 = vadd.f32 %v1110, %v1213
    %v1215 = vpop.f32.mrb[0].mxu0
    %v1216 = vadd.f32 %v1106, %v1215
    %v1217 = vpop.f32.mrb[0].mxu0
    %v1218 = vadd.f32 %v1110, %v1217
    %1219 = vmatprep.mubr.bf16.mxu0 0
    %1220 = vmatmul.mubr.bf16.gmra.mrb[0].mxu0 %v1157
    %v1221 = vpop.f32.mrb[0].mxu0
    %v1222 = vadd.f32 %v1106, %v1221
    %v1223 = vpop.f32.mrb[0].mxu0
    %v1224 = vadd.f32 %v1110, %v1223
    %v1225 = vpop.f32.mrb[0].mxu0
    %v1226 = vadd.f32 %v1106, %v1225
    %v1227 = vpop.f32.mrb[0].mxu0
    %v1228 = vadd.f32 %v1110, %v1227
    %1229 = vmatprep.mubr.bf16.mxu0 0
    %1230 = vmatmul.mubr.bf16.gmra.mrb[0].mxu0 %v1160
    %v1231 = vpop.f32.mrb[0].mxu0
    %v1232 = vadd.f32 %v1106, %v1231
    %v1233 = vpop.f32.mrb[0].mxu0
    %v1234 = vadd.f32 %v1110, %v1233
    %v1235 = vpop.f32.mrb[0].mxu0
    %v1236 = vadd.f32 %v1106, %v1235
    %v1237 = vpop.f32.mrb[0].mxu0
    %v1238 = vadd.f32 %v1110, %v1237
    %1239 = vmatprep.mubr.bf16.mxu0 0
    %1240 = vmatmul.mubr.bf16.gmra.mrb[0].mxu0 %v1163
    %v1241 = vpop.f32.mrb[0].mxu0
    %v1242 = vadd.f32 %v1106, %v1241
    %v1243 = vpop.f32.mrb[0].mxu0
    %v1244 = vadd.f32 %v1110, %v1243
    %v1245 = vpop.f32.mrb[0].mxu0
    %v1246 = vadd.f32 %v1106, %v1245
    %v1247 = vpop.f32.mrb[0].mxu0
    %v1248 = vadd.f32 %v1110, %v1247
    %1249 = vmatprep.mubr.bf16.mxu0 0
    %1250 = vmatmul.mubr.bf16.gmra.mrb[0].mxu0 %v1166
    %v1251 = vpop.f32.mrb[0].mxu0
    %v1252 = vadd.f32 %v1106, %v1251
    %v1253 = vpop.f32.mrb[0].mxu0
    %v1254 = vadd.f32 %v1110, %v1253
    %v1255 = vpop.f32.mrb[0].mxu0
    %v1256 = vadd.f32 %v1106, %v1255
    %v1257 = vpop.f32.mrb[0].mxu0
    %v1258 = vadd.f32 %v1110, %v1257
    %1259 = vmatprep.mubr.bf16.mxu0 0
    %1260 = vmatmul.mubr.bf16.gmra.mrb[0].mxu0 %v1169
    %v1261 = vpop.f32.mrb[0].mxu0
    %v1262 = vadd.f32 %v1106, %v1261
    %v1263 = vpop.f32.mrb[0].mxu0
    %v1264 = vadd.f32 %v1110, %v1263
    %v1265 = vpop.f32.mrb[0].mxu0
    %v1266 = vadd.f32 %v1106, %v1265
    %v1267 = vpop.f32.mrb[0].mxu0
    %v1268 = vadd.f32 %v1110, %v1267
    %1269 = vmatprep.mubr.bf16.mxu0 0
    %1270 = vmatmul.mubr.bf16.gmra.mrb[0].mxu0 %v1172
    %v1271 = vpop.f32.mrb[0].mxu0
    %v1272 = vadd.f32 %v1106, %v1271
    %v1273 = vpop.f32.mrb[0].mxu0
    %v1274 = vadd.f32 %v1110, %v1273
    %v1275 = vpop.f32.mrb[0].mxu0
    %v1276 = vadd.f32 %v1106, %v1275
    %v1277 = vpop.f32.mrb[0].mxu0
    %v1278 = vadd.f32 %v1110, %v1277
    %1279 = vmatprep.mubr.bf16.mxu0 0
    %1280 = vmatmul.mubr.bf16.gmra.mrb[0].mxu0 %v1175
    %v1281 = vpop.f32.mrb[0].mxu0
    %v1282 = vadd.f32 %v1106, %v1281
    %v1283 = vpop.f32.mrb[0].mxu0
    %v1284 = vadd.f32 %v1110, %v1283
    %v1285 = vpop.f32.mrb[0].mxu0
    %v1286 = vadd.f32 %v1106, %v1285
    %v1287 = vpop.f32.mrb[0].mxu0
    %v1288 = vadd.f32 %v1110, %v1287
    %1289 = vdwg.mxu0
    %1298 = vrot.lane.b32.xlu0 %v1212, 64
    %v1299 = vpop.permute.xlu0 %1298
    %1300 = vrot.lane.b32.xlu0 %v1216, 64
    %v1301 = vpop.permute.xlu0 %1300
    %1302 = vrot.lane.b32.xlu0 %v1222, 64
    %v1303 = vpop.permute.xlu0 %1302
    %1304 = vrot.lane.b32.xlu0 %v1226, 64
    %v1305 = vpop.permute.xlu0 %1304
    %1306 = vrot.lane.b32.xlu0 %v1232, 64
    %v1307 = vpop.permute.xlu0 %1306
    %1308 = vrot.lane.b32.xlu0 %v1236, 64
    %v1309 = vpop.permute.xlu0 %1308
    %1310 = vrot.lane.b32.xlu0 %v1242, 64
    %v1311 = vpop.permute.xlu0 %1310
    %1312 = vrot.lane.b32.xlu0 %v1246, 64
    %v1313 = vpop.permute.xlu0 %1312
    %v1322 = vsel %vm369, %v1299, %v1252
    %v1323 = vsel %vm369, %v1301, %v1256
    %v1324 = vsel %vm369, %v1303, %v1262
    %v1325 = vsel %vm369, %v1305, %v1266
    %v1326 = vsel %vm369, %v1307, %v1272
    %v1327 = vsel %vm369, %v1309, %v1276
    %v1328 = vsel %vm369, %v1311, %v1282
    %v1329 = vsel %vm369, %v1313, %v1286
    %1338 = vrot.lane.b32.xlu0 %v1254, 64
    %v1339 = vpop.permute.xlu0 %1338
    %1340 = vrot.lane.b32.xlu0 %v1258, 64
    %v1341 = vpop.permute.xlu0 %1340
    %1342 = vrot.lane.b32.xlu0 %v1264, 64
    %v1343 = vpop.permute.xlu0 %1342
    %1344 = vrot.lane.b32.xlu0 %v1268, 64
    %v1345 = vpop.permute.xlu0 %1344
    %1346 = vrot.lane.b32.xlu0 %v1274, 64
    %v1347 = vpop.permute.xlu0 %1346
    %1348 = vrot.lane.b32.xlu0 %v1278, 64
    %v1349 = vpop.permute.xlu0 %1348
    %1350 = vrot.lane.b32.xlu0 %v1284, 64
    %v1351 = vpop.permute.xlu0 %1350
    %1352 = vrot.lane.b32.xlu0 %v1288, 64
    %v1353 = vpop.permute.xlu0 %1352
    %v1362 = vsel %vm369, %v1214, %v1339
    %v1363 = vsel %vm369, %v1218, %v1341
    %v1364 = vsel %vm369, %v1224, %v1343
    %v1365 = vsel %vm369, %v1228, %v1345
    %v1366 = vsel %vm369, %v1234, %v1347
    %v1367 = vsel %vm369, %v1238, %v1349
    %v1368 = vsel %vm369, %v1244, %v1351
    %v1369 = vsel %vm369, %v1248, %v1353
    %1378 = vrot.lane.b32.xlu0 %v1252, 64
    %v1379 = vpop.permute.xlu0 %1378
    %1380 = vrot.lane.b32.xlu0 %v1256, 64
    %v1381 = vpop.permute.xlu0 %1380
    %1382 = vrot.lane.b32.xlu0 %v1262, 64
    %v1383 = vpop.permute.xlu0 %1382
    %1384 = vrot.lane.b32.xlu0 %v1266, 64
    %v1385 = vpop.permute.xlu0 %1384
    %1386 = vrot.lane.b32.xlu0 %v1272, 64
    %v1387 = vpop.permute.xlu0 %1386
    %1388 = vrot.lane.b32.xlu0 %v1276, 64
    %v1389 = vpop.permute.xlu0 %1388
    %1390 = vrot.lane.b32.xlu0 %v1282, 64
    %v1391 = vpop.permute.xlu0 %1390
    %1392 = vrot.lane.b32.xlu0 %v1286, 64
    %v1393 = vpop.permute.xlu0 %1392
    %v1402 = vsel %vm369, %v1212, %v1299
    %v1403 = vsel %vm369, %v1216, %v1301
    %v1404 = vsel %vm369, %v1222, %v1303
    %v1405 = vsel %vm369, %v1226, %v1305
    %v1406 = vsel %vm369, %v1232, %v1307
    %v1407 = vsel %vm369, %v1236, %v1309
    %v1408 = vsel %vm369, %v1242, %v1311
    %v1409 = vsel %vm369, %v1246, %v1313
    %v1410 = vsel %vm369, %v1252, %v1379
    %v1411 = vsel %vm369, %v1256, %v1381
    %v1412 = vsel %vm369, %v1262, %v1383
    %v1413 = vsel %vm369, %v1266, %v1385
    %v1414 = vsel %vm369, %v1272, %v1387
    %v1415 = vsel %vm369, %v1276, %v1389
    %v1416 = vsel %vm369, %v1282, %v1391
    %v1417 = vsel %vm369, %v1286, %v1393
    %v1418 = vmul.f32 %v1402, %v1322
    %v1419 = vmul.f32 %v1403, %v1323
    %v1420 = vmul.f32 %v1404, %v1324
    %v1421 = vmul.f32 %v1405, %v1325
    %v1422 = vmul.f32 %v1406, %v1326
    %v1423 = vmul.f32 %v1407, %v1327
    %v1424 = vmul.f32 %v1408, %v1328
    %v1425 = vmul.f32 %v1409, %v1329
    %v1426 = vmul.f32 %v1410, %v1322
    %v1427 = vmul.f32 %v1411, %v1323
    %v1428 = vmul.f32 %v1412, %v1324
    %v1429 = vmul.f32 %v1413, %v1325
    %v1430 = vmul.f32 %v1414, %v1326
    %v1431 = vmul.f32 %v1415, %v1327
    %v1432 = vmul.f32 %v1416, %v1328
    %v1433 = vmul.f32 %v1417, %v1329
    %v1434 = vpack.c.bf16 %v1419, %v1418
    %v1435 = vpack.c.bf16 %v1421, %v1420
    %v1436 = vpack.c.bf16 %v1423, %v1422
    %v1437 = vpack.c.bf16 %v1425, %v1424
    %v1438 = vpack.c.bf16 %v1427, %v1426
    %v1439 = vpack.c.bf16 %v1429, %v1428
    %v1440 = vpack.c.bf16 %v1431, %v1430
    %v1441 = vpack.c.bf16 %v1433, %v1432
    %v1458 = vunpack.c.l.b16 %v1068
    %v1459 = vunpack.c.l.b16 %v1069
    %v1460 = vunpack.c.l.b16 %v1070
    %v1461 = vunpack.c.l.b16 %v1071
    %v1462 = vunpack.c.l.b16 %v1072
    %v1463 = vunpack.c.l.b16 %v1073
    %v1464 = vunpack.c.l.b16 %v1074
    %v1465 = vunpack.c.l.b16 %v1075
    %v1466 = vunpack.c.l.b16 %v1076
    %v1467 = vunpack.c.l.b16 %v1077
    %v1468 = vunpack.c.l.b16 %v1078
    %v1469 = vunpack.c.l.b16 %v1079
    %v1470 = vunpack.c.l.b16 %v1080
    %v1471 = vunpack.c.l.b16 %v1081
    %v1472 = vunpack.c.l.b16 %v1082
    %v1473 = vunpack.c.l.b16 %v1083
    %v1474 = vpack.c.b16 %v1459, %v1458
    %v1475 = vpack.c.b16 %v1461, %v1460
    %v1476 = vpack.c.b16 %v1463, %v1462
    %v1477 = vpack.c.b16 %v1465, %v1464
    %v1478 = vpack.c.b16 %v1467, %v1466
    %v1479 = vpack.c.b16 %v1469, %v1468
    %v1480 = vpack.c.b16 %v1471, %v1470
    %v1481 = vpack.c.b16 %v1473, %v1472
    %1490 = vmatprep.subr.bf16.mxu0 0
    %1491 = vmatpush1.bf16.msra.mxu0 %v1474
    %1492 = vmatprep.subr.bf16.mxu0 0
    %1493 = vmatpush1.bf16.msra.mxu0 %v1475
    %1494 = vmatprep.subr.bf16.mxu0 0
    %1495 = vmatpush1.bf16.msra.mxu0 %v1476
    %1496 = vmatprep.subr.bf16.mxu0 0
    %1497 = vmatpush1.bf16.msra.mxu0 %v1477
    %1498 = vmatprep.subr.bf16.mxu0 0
    %1499 = vmatpush1.bf16.msra.mxu0 %v1478
    %1500 = vmatprep.subr.bf16.mxu0 0
    %1501 = vmatpush1.bf16.msra.mxu0 %v1479
    %1502 = vmatprep.subr.bf16.mxu0 0
    %1503 = vmatpush1.bf16.msra.mxu0 %v1480
    %1504 = vmatprep.subr.bf16.mxu0 0
    %1505 = vmatpush1.bf16.msra.mxu0 %v1481
    %1506 = vmatprep.subr.bf16.mxu0 0
    %1507 = vmatpush1.bf16.msra.mxu0 0
    %1508 = vmatprep.subr.bf16.mxu0 0
    %1509 = vmatpush1.bf16.msra.mxu0 0
    %1510 = vmatprep.subr.bf16.mxu0 0
    %1511 = vmatpush1.bf16.msra.mxu0 0
    %1512 = vmatprep.subr.bf16.mxu0 0
    %1513 = vmatpush1.bf16.msra.mxu0 0
    %1514 = vmatprep.subr.bf16.mxu0 0
    %1515 = vmatpush1.bf16.msra.mxu0 0
    %1516 = vmatprep.subr.bf16.mxu0 0
    %1517 = vmatpush1.bf16.msra.mxu0 0
    %1518 = vmatprep.subr.bf16.mxu0 0
    %1519 = vmatpush1.bf16.msra.mxu0 0
    %1520 = vmatprep.subr.bf16.mxu0 0
    %1521 = vmatpush1.bf16.msra.mxu0 0
    %1522 = vmatprep.mubr.bf16.mxu0 0
    %1523 = vmatmul.mubr.bf16.gmra.mrb[0].mxu0 %v1434
    %v1524 = vpop.f32.mrb[0].mxu0
    %v1525 = vadd.f32 0.0, %v1524
    %v1526 = vpop.f32.mrb[0].mxu0
    %v1527 = vpop.f32.mrb[0].mxu0
    %v1528 = vadd.f32 0.0, %v1527
    %v1529 = vpop.f32.mrb[0].mxu0
    %1530 = vmatprep.mubr.bf16.mxu0 0
    %1531 = vmatmul.mubr.bf16.gmra.mrb[0].mxu0 %v1435
    %v1532 = vpop.f32.mrb[0].mxu0
    %v1533 = vadd.f32 0.0, %v1532
    %v1534 = vpop.f32.mrb[0].mxu0
    %v1535 = vpop.f32.mrb[0].mxu0
    %v1536 = vadd.f32 0.0, %v1535
    %v1537 = vpop.f32.mrb[0].mxu0
    %1538 = vmatprep.mubr.bf16.mxu0 0
    %1539 = vmatmul.mubr.bf16.gmra.mrb[0].mxu0 %v1436
    %v1540 = vpop.f32.mrb[0].mxu0
    %v1541 = vadd.f32 0.0, %v1540
    %v1542 = vpop.f32.mrb[0].mxu0
    %v1543 = vpop.f32.mrb[0].mxu0
    %v1544 = vadd.f32 0.0, %v1543
    %v1545 = vpop.f32.mrb[0].mxu0
    %1546 = vmatprep.mubr.bf16.mxu0 0
    %1547 = vmatmul.mubr.bf16.gmra.mrb[0].mxu0 %v1437
    %v1548 = vpop.f32.mrb[0].mxu0
    %v1549 = vadd.f32 0.0, %v1548
    %v1550 = vpop.f32.mrb[0].mxu0
    %v1551 = vpop.f32.mrb[0].mxu0
    %v1552 = vadd.f32 0.0, %v1551
    %v1553 = vpop.f32.mrb[0].mxu0
    %1554 = vmatprep.mubr.bf16.mxu0 0
    %1555 = vmatmul.mubr.bf16.gmra.mrb[0].mxu0 %v1438
    %v1556 = vpop.f32.mrb[0].mxu0
    %v1557 = vadd.f32 0.0, %v1556
    %v1558 = vpop.f32.mrb[0].mxu0
    %v1559 = vpop.f32.mrb[0].mxu0
    %v1560 = vadd.f32 0.0, %v1559
    %v1561 = vpop.f32.mrb[0].mxu0
    %1562 = vmatprep.mubr.bf16.mxu0 0
    %1563 = vmatmul.mubr.bf16.gmra.mrb[0].mxu0 %v1439
    %v1564 = vpop.f32.mrb[0].mxu0
    %v1565 = vadd.f32 0.0, %v1564
    %v1566 = vpop.f32.mrb[0].mxu0
    %v1567 = vpop.f32.mrb[0].mxu0
    %v1568 = vadd.f32 0.0, %v1567
    %v1569 = vpop.f32.mrb[0].mxu0
    %1570 = vmatprep.mubr.bf16.mxu0 0
    %1571 = vmatmul.mubr.bf16.gmra.mrb[0].mxu0 %v1440
    %v1572 = vpop.f32.mrb[0].mxu0
    %v1573 = vadd.f32 0.0, %v1572
    %v1574 = vpop.f32.mrb[0].mxu0
    %v1575 = vpop.f32.mrb[0].mxu0
    %v1576 = vadd.f32 0.0, %v1575
    %v1577 = vpop.f32.mrb[0].mxu0
    %1578 = vmatprep.mubr.bf16.mxu0 0
    %1579 = vmatmul.mubr.bf16.gmra.mrb[0].mxu0 %v1441
    %v1580 = vpop.f32.mrb[0].mxu0
    %v1581 = vadd.f32 0.0, %v1580
    %v1582 = vpop.f32.mrb[0].mxu0
    %v1583 = vpop.f32.mrb[0].mxu0
    %v1584 = vadd.f32 0.0, %v1583
    %v1585 = vpop.f32.mrb[0].mxu0
    %1586 = vdwg.mxu0
    %1603 = vrot.lane.b32.xlu0 %v1525, 124
    %v1604 = vpop.permute.xlu0 %1603
    %1605 = vrot.lane.b32.xlu0 %v1528, 124
    %v1606 = vpop.permute.xlu0 %1605
    %1607 = vrot.lane.b32.xlu0 %v1533, 124
    %v1608 = vpop.permute.xlu0 %1607
    %1609 = vrot.lane.b32.xlu0 %v1536, 124
    %v1610 = vpop.permute.xlu0 %1609
    %1611 = vrot.lane.b32.xlu0 %v1541, 124
    %v1612 = vpop.permute.xlu0 %1611
    %1613 = vrot.lane.b32.xlu0 %v1544, 124
    %v1614 = vpop.permute.xlu0 %1613
    %1615 = vrot.lane.b32.xlu0 %v1549, 124
    %v1616 = vpop.permute.xlu0 %1615
    %1617 = vrot.lane.b32.xlu0 %v1552, 124
    %v1618 = vpop.permute.xlu0 %1617
    %1619 = vrot.lane.b32.xlu0 %v1557, 124
    %v1620 = vpop.permute.xlu0 %1619
    %1621 = vrot.lane.b32.xlu0 %v1560, 124
    %v1622 = vpop.permute.xlu0 %1621
    %1623 = vrot.lane.b32.xlu0 %v1565, 124
    %v1624 = vpop.permute.xlu0 %1623
    %1625 = vrot.lane.b32.xlu0 %v1568, 124
    %v1626 = vpop.permute.xlu0 %1625
    %1627 = vrot.lane.b32.xlu0 %v1573, 124
    %v1628 = vpop.permute.xlu0 %1627
    %1629 = vrot.lane.b32.xlu0 %v1576, 124
    %v1630 = vpop.permute.xlu0 %1629
    %1631 = vrot.lane.b32.xlu0 %v1581, 124
    %v1632 = vpop.permute.xlu0 %1631
    %1633 = vrot.lane.b32.xlu0 %v1584, 124
    %v1634 = vpop.permute.xlu0 %1633
    %v1651 = vmax.f32 %v1525, %v1604
    %v1652 = vmax.f32 %v1528, %v1606
    %v1653 = vmax.f32 %v1533, %v1608
    %v1654 = vmax.f32 %v1536, %v1610
    %v1655 = vmax.f32 %v1541, %v1612
    %v1656 = vmax.f32 %v1544, %v1614
    %v1657 = vmax.f32 %v1549, %v1616
    %v1658 = vmax.f32 %v1552, %v1618
    %v1659 = vmax.f32 %v1557, %v1620
    %v1660 = vmax.f32 %v1560, %v1622
    %v1661 = vmax.f32 %v1565, %v1624
    %v1662 = vmax.f32 %v1568, %v1626
    %v1663 = vmax.f32 %v1573, %v1628
    %v1664 = vmax.f32 %v1576, %v1630
    %v1665 = vmax.f32 %v1581, %v1632
    %v1666 = vmax.f32 %v1584, %v1634
    %v1667 = vsub.f32 %v1525, %v1651
    %v1668 = vsub.f32 %v1528, %v1652
    %v1669 = vsub.f32 %v1533, %v1653
    %v1670 = vsub.f32 %v1536, %v1654
    %v1671 = vsub.f32 %v1541, %v1655
    %v1672 = vsub.f32 %v1544, %v1656
    %v1673 = vsub.f32 %v1549, %v1657
    %v1674 = vsub.f32 %v1552, %v1658
    %v1675 = vsub.f32 %v1557, %v1659
    %v1676 = vsub.f32 %v1560, %v1660
    %v1677 = vsub.f32 %v1565, %v1661
    %v1678 = vsub.f32 %v1568, %v1662
    %v1679 = vsub.f32 %v1573, %v1663
    %v1680 = vsub.f32 %v1576, %v1664
    %v1681 = vsub.f32 %v1581, %v1665
    %v1682 = vsub.f32 %v1584, %v1666
    %v1683 = vmul.f32 %v1667, 1.442695
    %v1684 = vpow.pop %v1683
    %v1685 = vmul.f32 %v1668, 1.442695
    %v1686 = vpow.pop %v1685
    %v1687 = vmul.f32 %v1669, 1.442695
    %v1688 = vpow.pop %v1687
    %v1689 = vmul.f32 %v1670, 1.442695
    %v1690 = vpow.pop %v1689
    %v1691 = vmul.f32 %v1671, 1.442695
    %v1692 = vpow.pop %v1691
    %v1693 = vmul.f32 %v1672, 1.442695
    %v1694 = vpow.pop %v1693
    %v1695 = vmul.f32 %v1673, 1.442695
    %v1696 = vpow.pop %v1695
    %v1697 = vmul.f32 %v1674, 1.442695
    %v1698 = vpow.pop %v1697
    %v1699 = vmul.f32 %v1675, 1.442695
    %v1700 = vpow.pop %v1699
    %v1701 = vmul.f32 %v1676, 1.442695
    %v1702 = vpow.pop %v1701
    %v1703 = vmul.f32 %v1677, 1.442695
    %v1704 = vpow.pop %v1703
    %v1705 = vmul.f32 %v1678, 1.442695
    %v1706 = vpow.pop %v1705
    %v1707 = vmul.f32 %v1679, 1.442695
    %v1708 = vpow.pop %v1707
    %v1709 = vmul.f32 %v1680, 1.442695
    %v1710 = vpow.pop %v1709
    %v1711 = vmul.f32 %v1681, 1.442695
    %v1712 = vpow.pop %v1711
    %v1713 = vmul.f32 %v1682, 1.442695
    %v1714 = vpow.pop %v1713
    %1731 = vrot.lane.b32.xlu0 %v1651, 4
    %v1732 = vpop.permute.xlu0 %1731
    %1733 = vrot.lane.b32.xlu0 %v1652, 4
    %v1734 = vpop.permute.xlu0 %1733
    %1735 = vrot.lane.b32.xlu0 %v1653, 4
    %v1736 = vpop.permute.xlu0 %1735
    %1737 = vrot.lane.b32.xlu0 %v1654, 4
    %v1738 = vpop.permute.xlu0 %1737
    %1739 = vrot.lane.b32.xlu0 %v1655, 4
    %v1740 = vpop.permute.xlu0 %1739
    %1741 = vrot.lane.b32.xlu0 %v1656, 4
    %v1742 = vpop.permute.xlu0 %1741
    %1743 = vrot.lane.b32.xlu0 %v1657, 4
    %v1744 = vpop.permute.xlu0 %1743
    %1745 = vrot.lane.b32.xlu0 %v1658, 4
    %v1746 = vpop.permute.xlu0 %1745
    %1747 = vrot.lane.b32.xlu0 %v1659, 4
    %v1748 = vpop.permute.xlu0 %1747
    %1749 = vrot.lane.b32.xlu0 %v1660, 4
    %v1750 = vpop.permute.xlu0 %1749
    %1751 = vrot.lane.b32.xlu0 %v1661, 4
    %v1752 = vpop.permute.xlu0 %1751
    %1753 = vrot.lane.b32.xlu0 %v1662, 4
    %v1754 = vpop.permute.xlu0 %1753
    %1755 = vrot.lane.b32.xlu0 %v1663, 4
    %v1756 = vpop.permute.xlu0 %1755
    %1757 = vrot.lane.b32.xlu0 %v1664, 4
    %v1758 = vpop.permute.xlu0 %1757
    %1759 = vrot.lane.b32.xlu0 %v1665, 4
    %v1760 = vpop.permute.xlu0 %1759
    %1761 = vrot.lane.b32.xlu0 %v1666, 4
    %v1762 = vpop.permute.xlu0 %1761
    %v1779 = vsub.f32 %v1525, %v1732
    %v1780 = vsub.f32 %v1528, %v1734
    %v1781 = vsub.f32 %v1533, %v1736
    %v1782 = vsub.f32 %v1536, %v1738
    %v1783 = vsub.f32 %v1541, %v1740
    %v1784 = vsub.f32 %v1544, %v1742
    %v1785 = vsub.f32 %v1549, %v1744
    %v1786 = vsub.f32 %v1552, %v1746
    %v1787 = vsub.f32 %v1557, %v1748
    %v1788 = vsub.f32 %v1560, %v1750
    %v1789 = vsub.f32 %v1565, %v1752
    %v1790 = vsub.f32 %v1568, %v1754
    %v1791 = vsub.f32 %v1573, %v1756
    %v1792 = vsub.f32 %v1576, %v1758
    %v1793 = vsub.f32 %v1581, %v1760
    %v1794 = vsub.f32 %v1584, %v1762
    %v1795 = vmul.f32 %v1779, 1.442695
    %v1796 = vpow.pop %v1795
    %v1797 = vmul.f32 %v1780, 1.442695
    %v1798 = vpow.pop %v1797
    %v1799 = vmul.f32 %v1781, 1.442695
    %v1800 = vpow.pop %v1799
    %v1801 = vmul.f32 %v1782, 1.442695
    %v1802 = vpow.pop %v1801
    %v1803 = vmul.f32 %v1783, 1.442695
    %v1804 = vpow.pop %v1803
    %v1805 = vmul.f32 %v1784, 1.442695
    %v1806 = vpow.pop %v1805
    %v1807 = vmul.f32 %v1785, 1.442695
    %v1808 = vpow.pop %v1807
    %v1809 = vmul.f32 %v1786, 1.442695
    %v1810 = vpow.pop %v1809
    %v1811 = vmul.f32 %v1787, 1.442695
    %v1812 = vpow.pop %v1811
    %v1813 = vmul.f32 %v1788, 1.442695
    %v1814 = vpow.pop %v1813
    %v1815 = vmul.f32 %v1789, 1.442695
    %v1816 = vpow.pop %v1815
    %v1817 = vmul.f32 %v1790, 1.442695
    %v1818 = vpow.pop %v1817
    %v1819 = vmul.f32 %v1791, 1.442695
    %v1820 = vpow.pop %v1819
    %v1821 = vmul.f32 %v1792, 1.442695
    %v1822 = vpow.pop %v1821
    %v1823 = vmul.f32 %v1793, 1.442695
    %v1824 = vpow.pop %v1823
    %v1825 = vmul.f32 %v1794, 1.442695
    %v1826 = vpow.pop %v1825
    %1843 = vrot.lane.b32.xlu0 %v1796, 124
    %v1844 = vpop.permute.xlu0 %1843
    %1845 = vrot.lane.b32.xlu0 %v1798, 124
    %v1846 = vpop.permute.xlu0 %1845
    %1847 = vrot.lane.b32.xlu0 %v1800, 124
    %v1848 = vpop.permute.xlu0 %1847
    %1849 = vrot.lane.b32.xlu0 %v1802, 124
    %v1850 = vpop.permute.xlu0 %1849
    %1851 = vrot.lane.b32.xlu0 %v1804, 124
    %v1852 = vpop.permute.xlu0 %1851
    %1853 = vrot.lane.b32.xlu0 %v1806, 124
    %v1854 = vpop.permute.xlu0 %1853
    %1855 = vrot.lane.b32.xlu0 %v1808, 124
    %v1856 = vpop.permute.xlu0 %1855
    %1857 = vrot.lane.b32.xlu0 %v1810, 124
    %v1858 = vpop.permute.xlu0 %1857
    %1859 = vrot.lane.b32.xlu0 %v1812, 124
    %v1860 = vpop.permute.xlu0 %1859
    %1861 = vrot.lane.b32.xlu0 %v1814, 124
    %v1862 = vpop.permute.xlu0 %1861
    %1863 = vrot.lane.b32.xlu0 %v1816, 124
    %v1864 = vpop.permute.xlu0 %1863
    %1865 = vrot.lane.b32.xlu0 %v1818, 124
    %v1866 = vpop.permute.xlu0 %1865
    %1867 = vrot.lane.b32.xlu0 %v1820, 124
    %v1868 = vpop.permute.xlu0 %1867
    %1869 = vrot.lane.b32.xlu0 %v1822, 124
    %v1870 = vpop.permute.xlu0 %1869
    %1871 = vrot.lane.b32.xlu0 %v1824, 124
    %v1872 = vpop.permute.xlu0 %1871
    %1873 = vrot.lane.b32.xlu0 %v1826, 124
    %v1874 = vpop.permute.xlu0 %1873
    %v1891 = vadd.f32 %v1684, %v1844
    %v1892 = vadd.f32 %v1686, %v1846
    %v1893 = vadd.f32 %v1688, %v1848
    %v1894 = vadd.f32 %v1690, %v1850
    %v1895 = vadd.f32 %v1692, %v1852
    %v1896 = vadd.f32 %v1694, %v1854
    %v1897 = vadd.f32 %v1696, %v1856
    %v1898 = vadd.f32 %v1698, %v1858
    %v1899 = vadd.f32 %v1700, %v1860
    %v1900 = vadd.f32 %v1702, %v1862
    %v1901 = vadd.f32 %v1704, %v1864
    %v1902 = vadd.f32 %v1706, %v1866
    %v1903 = vadd.f32 %v1708, %v1868
    %v1904 = vadd.f32 %v1710, %v1870
    %v1905 = vadd.f32 %v1712, %v1872
    %v1906 = vadd.f32 %v1714, %v1874
    %v1907 = vrcp.pop %v1891
    %v1908 = vrcp.pop %v1892
    %v1909 = vrcp.pop %v1893
    %v1910 = vrcp.pop %v1894
    %v1911 = vrcp.pop %v1895
    %v1912 = vrcp.pop %v1896
    %v1913 = vrcp.pop %v1897
    %v1914 = vrcp.pop %v1898
    %v1915 = vrcp.pop %v1899
    %v1916 = vrcp.pop %v1900
    %v1917 = vrcp.pop %v1901
    %v1918 = vrcp.pop %v1902
    %v1919 = vrcp.pop %v1903
    %v1920 = vrcp.pop %v1904
    %v1921 = vrcp.pop %v1905
    %v1922 = vrcp.pop %v1906
    %v1923 = vmul.f32 %v1684, %v1907
    %v1924 = vmul.f32 %v1686, %v1908
    %v1925 = vmul.f32 %v1688, %v1909
    %v1926 = vmul.f32 %v1690, %v1910
    %v1927 = vmul.f32 %v1692, %v1911
    %v1928 = vmul.f32 %v1694, %v1912
    %v1929 = vmul.f32 %v1696, %v1913
    %v1930 = vmul.f32 %v1698, %v1914
    %v1931 = vmul.f32 %v1700, %v1915
    %v1932 = vmul.f32 %v1702, %v1916
    %v1933 = vmul.f32 %v1704, %v1917
    %v1934 = vmul.f32 %v1706, %v1918
    %v1935 = vmul.f32 %v1708, %v1919
    %v1936 = vmul.f32 %v1710, %v1920
    %v1937 = vmul.f32 %v1712, %v1921
    %v1938 = vmul.f32 %v1714, %v1922
    %1955 = vrot.lane.b32.xlu0 %v1907, 4
    %v1956 = vpop.permute.xlu0 %1955
    %1957 = vrot.lane.b32.xlu0 %v1908, 4
    %v1958 = vpop.permute.xlu0 %1957
    %1959 = vrot.lane.b32.xlu0 %v1909, 4
    %v1960 = vpop.permute.xlu0 %1959
    %1961 = vrot.lane.b32.xlu0 %v1910, 4
    %v1962 = vpop.permute.xlu0 %1961
    %1963 = vrot.lane.b32.xlu0 %v1911, 4
    %v1964 = vpop.permute.xlu0 %1963
    %1965 = vrot.lane.b32.xlu0 %v1912, 4
    %v1966 = vpop.permute.xlu0 %1965
    %1967 = vrot.lane.b32.xlu0 %v1913, 4
    %v1968 = vpop.permute.xlu0 %1967
    %1969 = vrot.lane.b32.xlu0 %v1914, 4
    %v1970 = vpop.permute.xlu0 %1969
    %1971 = vrot.lane.b32.xlu0 %v1915, 4
    %v1972 = vpop.permute.xlu0 %1971
    %1973 = vrot.lane.b32.xlu0 %v1916, 4
    %v1974 = vpop.permute.xlu0 %1973
    %1975 = vrot.lane.b32.xlu0 %v1917, 4
    %v1976 = vpop.permute.xlu0 %1975
    %1977 = vrot.lane.b32.xlu0 %v1918, 4
    %v1978 = vpop.permute.xlu0 %1977
    %1979 = vrot.lane.b32.xlu0 %v1919, 4
    %v1980 = vpop.permute.xlu0 %1979
    %1981 = vrot.lane.b32.xlu0 %v1920, 4
    %v1982 = vpop.permute.xlu0 %1981
    %1983 = vrot.lane.b32.xlu0 %v1921, 4
    %v1984 = vpop.permute.xlu0 %1983
    %1985 = vrot.lane.b32.xlu0 %v1922, 4
    %v1986 = vpop.permute.xlu0 %1985
    %v2003 = vmul.f32 %v1796, %v1956
    %v2004 = vmul.f32 %v1798, %v1958
    %v2005 = vmul.f32 %v1800, %v1960
    %v2006 = vmul.f32 %v1802, %v1962
    %v2007 = vmul.f32 %v1804, %v1964
    %v2008 = vmul.f32 %v1806, %v1966
    %v2009 = vmul.f32 %v1808, %v1968
    %v2010 = vmul.f32 %v1810, %v1970
    %v2011 = vmul.f32 %v1812, %v1972
    %v2012 = vmul.f32 %v1814, %v1974
    %v2013 = vmul.f32 %v1816, %v1976
    %v2014 = vmul.f32 %v1818, %v1978
    %v2015 = vmul.f32 %v1820, %v1980
    %v2016 = vmul.f32 %v1822, %v1982
    %v2017 = vmul.f32 %v1824, %v1984
    %v2018 = vmul.f32 %v1826, %v1986
    %vm2019 = vcmask 31744
    %v2020 = vsel %vm2019, %v1923, %v2003
    %v2021 = vsel %vm2019, %v1924, %v2004
    %v2022 = vsel %vm2019, %v1925, %v2005
    %v2023 = vsel %vm2019, %v1926, %v2006
    %v2024 = vsel %vm2019, %v1927, %v2007
    %v2025 = vsel %vm2019, %v1928, %v2008
    %v2026 = vsel %vm2019, %v1929, %v2009
    %v2027 = vsel %vm2019, %v1930, %v2010
    %v2028 = vsel %vm2019, %v1931, %v2011
    %v2029 = vsel %vm2019, %v1932, %v2012
    %v2030 = vsel %vm2019, %v1933, %v2013
    %v2031 = vsel %vm2019, %v1934, %v2014
    %v2032 = vsel %vm2019, %v1935, %v2015
    %v2033 = vsel %vm2019, %v1936, %v2016
    %v2034 = vsel %vm2019, %v1937, %v2017
    %v2035 = vsel %vm2019, %v1938, %v2018
    %v2036 = vpack.c.bf16 %v2021, %v2020
    %v2037 = vpack.c.bf16 %v2023, %v2022
    %v2038 = vpack.c.bf16 %v2025, %v2024
    %v2039 = vpack.c.bf16 %v2027, %v2026
    %v2040 = vpack.c.bf16 %v2029, %v2028
    %v2041 = vpack.c.bf16 %v2031, %v2030
    %v2042 = vpack.c.bf16 %v2033, %v2032
    %v2043 = vpack.c.bf16 %v2035, %v2034
    %vm2044 = vcmask 64512
    %v2046 = vsel %vm2044, %v2036, 0
    %v2049 = vsel %vm2044, %v2037, 0
    %v2052 = vsel %vm2044, %v2038, 0
    %v2055 = vsel %vm2044, %v2039, 0
    %v2058 = vsel %vm2044, %v2040, 0
    %v2061 = vsel %vm2044, %v2041, 0
    %v2064 = vsel %vm2044, %v2042, 0
    %v2067 = vsel %vm2044, %v2043, 0
    %vm2069 = vcmask 1043456
    %v2071 = vsel %vm2069, %v1084, 0
    %2073 = vmatprep.subr.bf16.mxu0 0
    %2074 = vmatpush1.bf16.msra.mxu0 %v2071
    %2075 = vmatprep.subr.bf16.mxu0 0
    %2076 = vmatpush1.bf16.msra.mxu0 0
    %2077 = vmatprep.subr.bf16.mxu0 0
    %2078 = vmatpush1.bf16.msra.mxu0 0
    %2079 = vmatprep.subr.bf16.mxu0 0
    %2080 = vmatpush1.bf16.msra.mxu0 0
    %2081 = vmatprep.subr.bf16.mxu0 0
    %2082 = vmatpush1.bf16.msra.mxu0 0
    %2083 = vmatprep.subr.bf16.mxu0 0
    %2084 = vmatpush1.bf16.msra.mxu0 0
    %2085 = vmatprep.subr.bf16.mxu0 0
    %2086 = vmatpush1.bf16.msra.mxu0 0
    %2087 = vmatprep.subr.bf16.mxu0 0
    %2088 = vmatpush1.bf16.msra.mxu0 0
    %2089 = vmatprep.subr.bf16.mxu0 0
    %2090 = vmatpush1.bf16.msra.mxu0 0
    %2091 = vmatprep.subr.bf16.mxu0 0
    %2092 = vmatpush1.bf16.msra.mxu0 0
    %2093 = vmatprep.subr.bf16.mxu0 0
    %2094 = vmatpush1.bf16.msra.mxu0 0
    %2095 = vmatprep.subr.bf16.mxu0 0
    %2096 = vmatpush1.bf16.msra.mxu0 0
    %2097 = vmatprep.subr.bf16.mxu0 0
    %2098 = vmatpush1.bf16.msra.mxu0 0
    %2099 = vmatprep.subr.bf16.mxu0 0
    %2100 = vmatpush1.bf16.msra.mxu0 0
    %2101 = vmatprep.subr.bf16.mxu0 0
    %2102 = vmatpush1.bf16.msra.mxu0 0
    %2103 = vmatprep.subr.bf16.mxu0 0
    %2104 = vmatpush1.bf16.msra.mxu0 0
    %2105 = vmatprep.mubr.bf16.mxu0 0
    %2106 = vmatmul.mubr.bf16.gmra.mrb[0].mxu0 %v2046
    %v2107 = vpop.f32.mrb[0].mxu0
    %v2108 = vadd.f32 0.0, %v2107
    %v2109 = vpop.f32.mrb[0].mxu0
    %v2110 = vpop.f32.mrb[0].mxu0
    %v2111 = vadd.f32 0.0, %v2110
    %v2112 = vpop.f32.mrb[0].mxu0
    %2113 = vmatprep.mubr.bf16.mxu0 0
    %2114 = vmatmul.mubr.bf16.gmra.mrb[0].mxu0 %v2049
    %v2115 = vpop.f32.mrb[0].mxu0
    %v2116 = vadd.f32 0.0, %v2115
    %v2117 = vpop.f32.mrb[0].mxu0
    %v2118 = vpop.f32.mrb[0].mxu0
    %v2119 = vadd.f32 0.0, %v2118
    %v2120 = vpop.f32.mrb[0].mxu0
    %2121 = vmatprep.mubr.bf16.mxu0 0
    %2122 = vmatmul.mubr.bf16.gmra.mrb[0].mxu0 %v2052
    %v2123 = vpop.f32.mrb[0].mxu0
    %v2124 = vadd.f32 0.0, %v2123
    %v2125 = vpop.f32.mrb[0].mxu0
    %v2126 = vpop.f32.mrb[0].mxu0
    %v2127 = vadd.f32 0.0, %v2126
    %v2128 = vpop.f32.mrb[0].mxu0
    %2129 = vmatprep.mubr.bf16.mxu0 0
    %2130 = vmatmul.mubr.bf16.gmra.mrb[0].mxu0 %v2055
    %v2131 = vpop.f32.mrb[0].mxu0
    %v2132 = vadd.f32 0.0, %v2131
    %v2133 = vpop.f32.mrb[0].mxu0
    %v2134 = vpop.f32.mrb[0].mxu0
    %v2135 = vadd.f32 0.0, %v2134
    %v2136 = vpop.f32.mrb[0].mxu0
    %2137 = vmatprep.mubr.bf16.mxu0 0
    %2138 = vmatmul.mubr.bf16.gmra.mrb[0].mxu0 %v2058
    %v2139 = vpop.f32.mrb[0].mxu0
    %v2140 = vadd.f32 0.0, %v2139
    %v2141 = vpop.f32.mrb[0].mxu0
    %v2142 = vpop.f32.mrb[0].mxu0
    %v2143 = vadd.f32 0.0, %v2142
    %v2144 = vpop.f32.mrb[0].mxu0
    %2145 = vmatprep.mubr.bf16.mxu0 0
    %2146 = vmatmul.mubr.bf16.gmra.mrb[0].mxu0 %v2061
    %v2147 = vpop.f32.mrb[0].mxu0
    %v2148 = vadd.f32 0.0, %v2147
    %v2149 = vpop.f32.mrb[0].mxu0
    %v2150 = vpop.f32.mrb[0].mxu0
    %v2151 = vadd.f32 0.0, %v2150
    %v2152 = vpop.f32.mrb[0].mxu0
    %2153 = vmatprep.mubr.bf16.mxu0 0
    %2154 = vmatmul.mubr.bf16.gmra.mrb[0].mxu0 %v2064
    %v2155 = vpop.f32.mrb[0].mxu0
    %v2156 = vadd.f32 0.0, %v2155
    %v2157 = vpop.f32.mrb[0].mxu0
    %v2158 = vpop.f32.mrb[0].mxu0
    %v2159 = vadd.f32 0.0, %v2158
    %v2160 = vpop.f32.mrb[0].mxu0
    %2161 = vmatprep.mubr.bf16.mxu0 0
    %2162 = vmatmul.mubr.bf16.gmra.mrb[0].mxu0 %v2067
    %v2163 = vpop.f32.mrb[0].mxu0
    %v2164 = vadd.f32 0.0, %v2163
    %v2165 = vpop.f32.mrb[0].mxu0
    %v2166 = vpop.f32.mrb[0].mxu0
    %v2167 = vadd.f32 0.0, %v2166
    %v2168 = vpop.f32.mrb[0].mxu0
    %2169 = vdwg.mxu0
    %v2170 = vmul.f32 %v2108, %v1362
    %v2171 = vmul.f32 %v2111, %v1363
    %v2172 = vmul.f32 %v2116, %v1364
    %v2173 = vmul.f32 %v2119, %v1365
    %v2174 = vmul.f32 %v2124, %v1366
    %v2175 = vmul.f32 %v2127, %v1367
    %v2176 = vmul.f32 %v2132, %v1368
    %v2177 = vmul.f32 %v2135, %v1369
    %v2178 = vmul.f32 %v2140, %v1362
    %v2179 = vmul.f32 %v2143, %v1363
    %v2180 = vmul.f32 %v2148, %v1364
    %v2181 = vmul.f32 %v2151, %v1365
    %v2182 = vmul.f32 %v2156, %v1366
    %v2183 = vmul.f32 %v2159, %v1367
    %v2184 = vmul.f32 %v2164, %v1368
    %v2185 = vmul.f32 %v2167, %v1369
    %2202 = vrot.lane.b32.xlu0 %v2170, 64
    %v2203 = vpop.permute.xlu0 %2202
    %2204 = vrot.lane.b32.xlu0 %v2171, 64
    %v2205 = vpop.permute.xlu0 %2204
    %2206 = vrot.lane.b32.xlu0 %v2172, 64
    %v2207 = vpop.permute.xlu0 %2206
    %2208 = vrot.lane.b32.xlu0 %v2173, 64
    %v2209 = vpop.permute.xlu0 %2208
    %2210 = vrot.lane.b32.xlu0 %v2174, 64
    %v2211 = vpop.permute.xlu0 %2210
    %2212 = vrot.lane.b32.xlu0 %v2175, 64
    %v2213 = vpop.permute.xlu0 %2212
    %2214 = vrot.lane.b32.xlu0 %v2176, 64
    %v2215 = vpop.permute.xlu0 %2214
    %2216 = vrot.lane.b32.xlu0 %v2177, 64
    %v2217 = vpop.permute.xlu0 %2216
    %2218 = vrot.lane.b32.xlu0 %v2178, 64
    %v2219 = vpop.permute.xlu0 %2218
    %2220 = vrot.lane.b32.xlu0 %v2179, 64
    %v2221 = vpop.permute.xlu0 %2220
    %2222 = vrot.lane.b32.xlu0 %v2180, 64
    %v2223 = vpop.permute.xlu0 %2222
    %2224 = vrot.lane.b32.xlu0 %v2181, 64
    %v2225 = vpop.permute.xlu0 %2224
    %2226 = vrot.lane.b32.xlu0 %v2182, 64
    %v2227 = vpop.permute.xlu0 %2226
    %2228 = vrot.lane.b32.xlu0 %v2183, 64
    %v2229 = vpop.permute.xlu0 %2228
    %2230 = vrot.lane.b32.xlu0 %v2184, 64
    %v2231 = vpop.permute.xlu0 %2230
    %2232 = vrot.lane.b32.xlu0 %v2185, 64
    %v2233 = vpop.permute.xlu0 %2232
    %v2250 = vadd.f32 %v2170, %v2203
    %v2251 = vadd.f32 %v2171, %v2205
    %v2252 = vadd.f32 %v2172, %v2207
    %v2253 = vadd.f32 %v2173, %v2209
    %v2254 = vadd.f32 %v2174, %v2211
    %v2255 = vadd.f32 %v2175, %v2213
    %v2256 = vadd.f32 %v2176, %v2215
    %v2257 = vadd.f32 %v2177, %v2217
    %v2258 = vadd.f32 %v2178, %v2219
    %v2259 = vadd.f32 %v2179, %v2221
    %v2260 = vadd.f32 %v2180, %v2223
    %v2261 = vadd.f32 %v2181, %v2225
    %v2262 = vadd.f32 %v2182, %v2227
    %v2263 = vadd.f32 %v2183, %v2229
    %v2264 = vadd.f32 %v2184, %v2231
    %v2265 = vadd.f32 %v2185, %v2233
    %v2266 = vpack.c.bf16 %v2251, %v2250
    %v2267 = vpack.c.bf16 %v2253, %v2252
    %v2268 = vpack.c.bf16 %v2255, %v2254
    %v2269 = vpack.c.bf16 %v2257, %v2256
    %v2270 = vpack.c.bf16 %v2259, %v2258
    %v2271 = vpack.c.bf16 %v2261, %v2260
    %v2272 = vpack.c.bf16 %v2263, %v2262
    %v2273 = vpack.c.bf16 %v2265, %v2264
    %v2274 = vld [vmem:[%s13] sm:$0xf]
    %v2275 = vld [vmem:[%s13 + $0x4] sm:$0xf]
    %v2276 = vld [vmem:[%s13 + $0x8] sm:$0xf]
    %v2277 = vld [vmem:[%s13 + $0xc] sm:$0xf]
    %v2278 = vld [vmem:[%s13 + $0x10] sm:$0xf]
    %v2279 = vld [vmem:[%s13 + $0x14] sm:$0xf]
    %v2280 = vld [vmem:[%s13 + $0x18] sm:$0xf]
    %v2281 = vld [vmem:[%s13 + $0x1c] sm:$0xf]
    %v2282 = vld [vmem:[%s14] sm:$0x1]
    %v2284 = vlaneseq
    %v2285 = vshrl.u32 %v2284, 7
    %v2286 = vsub.s32 0, %v2285
    %v2287 = vrot.slane %v2282, %v2286
    %v2297 = vunpack.c.l.b16 %v2274
    %v2298 = vunpack.c.l.b16 %v2275
    %v2299 = vunpack.c.l.b16 %v2276
    %v2300 = vunpack.c.l.b16 %v2277
    %v2301 = vunpack.c.l.b16 %v2278
    %v2302 = vunpack.c.l.b16 %v2279
    %v2303 = vunpack.c.l.b16 %v2280
    %v2304 = vunpack.c.l.b16 %v2281
    %v2305 = vpack.c.b16 %v2298, %v2297
    %v2306 = vpack.c.b16 %v2300, %v2299
    %v2307 = vpack.c.b16 %v2302, %v2301
    %v2308 = vpack.c.b16 %v2304, %v2303
    %v2314 = vsel %vm369, %v2266, 0
    %v2317 = vsel %vm369, %v2267, 0
    %v2320 = vsel %vm369, %v2268, 0
    %v2323 = vsel %vm369, %v2269, 0
    %v2326 = vsel %vm369, %v2270, 0
    %v2329 = vsel %vm369, %v2271, 0
    %v2332 = vsel %vm369, %v2272, 0
    %v2335 = vsel %vm369, %v2273, 0
    %2337 = vmatprep.subr.bf16.mxu0 0
    %2338 = vmatpush1.bf16.msra.mxu0 %v2305
    %2339 = vmatprep.subr.bf16.mxu0 0
    %2340 = vmatpush1.bf16.msra.mxu0 %v2306
    %2341 = vmatprep.subr.bf16.mxu0 0
    %2342 = vmatpush1.bf16.msra.mxu0 %v2307
    %2343 = vmatprep.subr.bf16.mxu0 0
    %2344 = vmatpush1.bf16.msra.mxu0 %v2308
    %2345 = vmatprep.subr.bf16.mxu0 0
    %2346 = vmatpush1.bf16.msra.mxu0 0
    %2347 = vmatprep.subr.bf16.mxu0 0
    %2348 = vmatpush1.bf16.msra.mxu0 0
    %2349 = vmatprep.subr.bf16.mxu0 0
    %2350 = vmatpush1.bf16.msra.mxu0 0
    %2351 = vmatprep.subr.bf16.mxu0 0
    %2352 = vmatpush1.bf16.msra.mxu0 0
    %2353 = vmatprep.subr.bf16.mxu0 0
    %2354 = vmatpush1.bf16.msra.mxu0 0
    %2355 = vmatprep.subr.bf16.mxu0 0
    %2356 = vmatpush1.bf16.msra.mxu0 0
    %2357 = vmatprep.subr.bf16.mxu0 0
    %2358 = vmatpush1.bf16.msra.mxu0 0
    %2359 = vmatprep.subr.bf16.mxu0 0
    %2360 = vmatpush1.bf16.msra.mxu0 0
    %2361 = vmatprep.subr.bf16.mxu0 0
    %2362 = vmatpush1.bf16.msra.mxu0 0
    %2363 = vmatprep.subr.bf16.mxu0 0
    %2364 = vmatpush1.bf16.msra.mxu0 0
    %2365 = vmatprep.subr.bf16.mxu0 0
    %2366 = vmatpush1.bf16.msra.mxu0 0
    %2367 = vmatprep.subr.bf16.mxu0 0
    %2368 = vmatpush1.bf16.msra.mxu0 0
    %2369 = vmatprep.mubr.bf16.mxu0 0
    %2370 = vmatmul.mubr.bf16.gmra.mrb[0].mxu0 %v2314
    %v2371 = vpop.f32.mrb[0].mxu0
    %v2372 = vadd.f32 %v2287, %v2371
    %v2373 = vpop.f32.mrb[0].mxu0
    %v2374 = vpop.f32.mrb[0].mxu0
    %v2375 = vadd.f32 %v2287, %v2374
    %v2376 = vpop.f32.mrb[0].mxu0
    %2377 = vmatprep.mubr.bf16.mxu0 0
    %2378 = vmatmul.mubr.bf16.gmra.mrb[0].mxu0 %v2317
    %v2379 = vpop.f32.mrb[0].mxu0
    %v2380 = vadd.f32 %v2287, %v2379
    %v2381 = vpop.f32.mrb[0].mxu0
    %v2382 = vpop.f32.mrb[0].mxu0
    %v2383 = vadd.f32 %v2287, %v2382
    %v2384 = vpop.f32.mrb[0].mxu0
    %2385 = vmatprep.mubr.bf16.mxu0 0
    %2386 = vmatmul.mubr.bf16.gmra.mrb[0].mxu0 %v2320
    %v2387 = vpop.f32.mrb[0].mxu0
    %v2388 = vadd.f32 %v2287, %v2387
    %v2389 = vpop.f32.mrb[0].mxu0
    %v2390 = vpop.f32.mrb[0].mxu0
    %v2391 = vadd.f32 %v2287, %v2390
    %v2392 = vpop.f32.mrb[0].mxu0
    %2393 = vmatprep.mubr.bf16.mxu0 0
    %2394 = vmatmul.mubr.bf16.gmra.mrb[0].mxu0 %v2323
    %v2395 = vpop.f32.mrb[0].mxu0
    %v2396 = vadd.f32 %v2287, %v2395
    %v2397 = vpop.f32.mrb[0].mxu0
    %v2398 = vpop.f32.mrb[0].mxu0
    %v2399 = vadd.f32 %v2287, %v2398
    %v2400 = vpop.f32.mrb[0].mxu0
    %2401 = vmatprep.mubr.bf16.mxu0 0
    %2402 = vmatmul.mubr.bf16.gmra.mrb[0].mxu0 %v2326
    %v2403 = vpop.f32.mrb[0].mxu0
    %v2404 = vadd.f32 %v2287, %v2403
    %v2405 = vpop.f32.mrb[0].mxu0
    %v2406 = vpop.f32.mrb[0].mxu0
    %v2407 = vadd.f32 %v2287, %v2406
    %v2408 = vpop.f32.mrb[0].mxu0
    %2409 = vmatprep.mubr.bf16.mxu0 0
    %2410 = vmatmul.mubr.bf16.gmra.mrb[0].mxu0 %v2329
    %v2411 = vpop.f32.mrb[0].mxu0
    %v2412 = vadd.f32 %v2287, %v2411
    %v2413 = vpop.f32.mrb[0].mxu0
    %v2414 = vpop.f32.mrb[0].mxu0
    %v2415 = vadd.f32 %v2287, %v2414
    %v2416 = vpop.f32.mrb[0].mxu0
    %2417 = vmatprep.mubr.bf16.mxu0 0
    %2418 = vmatmul.mubr.bf16.gmra.mrb[0].mxu0 %v2332
    %v2419 = vpop.f32.mrb[0].mxu0
    %v2420 = vadd.f32 %v2287, %v2419
    %v2421 = vpop.f32.mrb[0].mxu0
    %v2422 = vpop.f32.mrb[0].mxu0
    %v2423 = vadd.f32 %v2287, %v2422
    %v2424 = vpop.f32.mrb[0].mxu0
    %2425 = vmatprep.mubr.bf16.mxu0 0
    %2426 = vmatmul.mubr.bf16.gmra.mrb[0].mxu0 %v2335
    %v2427 = vpop.f32.mrb[0].mxu0
    %v2428 = vadd.f32 %v2287, %v2427
    %v2429 = vpop.f32.mrb[0].mxu0
    %v2430 = vpop.f32.mrb[0].mxu0
    %v2431 = vadd.f32 %v2287, %v2430
    %v2432 = vpop.f32.mrb[0].mxu0
    %2433 = vdwg.mxu0
    %v2434 = vadd.f32 %v1052, %v2372
    %v2435 = vadd.f32 %v1053, %v2375
    %v2436 = vadd.f32 %v1054, %v2380
    %v2437 = vadd.f32 %v1055, %v2383
    %v2438 = vadd.f32 %v1056, %v2388
    %v2439 = vadd.f32 %v1057, %v2391
    %v2440 = vadd.f32 %v1058, %v2396
    %v2441 = vadd.f32 %v1059, %v2399
    %v2442 = vadd.f32 %v1060, %v2404
    %v2443 = vadd.f32 %v1061, %v2407
    %v2444 = vadd.f32 %v1062, %v2412
    %v2445 = vadd.f32 %v1063, %v2415
    %v2446 = vadd.f32 %v1064, %v2420
    %v2447 = vadd.f32 %v1065, %v2423
    %v2448 = vadd.f32 %v1066, %v2428
    %v2449 = vadd.f32 %v1067, %v2431
    %v2450 = vsel %vm369, %v2434, 0.0
    %2451 = vadd.xlane.f32.xlu0 %v2450
    %v2452 = vpop.xlane.xlu0 %2451
    %v2453 = vsel %vm369, %v2435, 0.0
    %2454 = vadd.xlane.f32.xlu0 %v2453
    %v2455 = vpop.xlane.xlu0 %2454
    %v2456 = vsel %vm369, %v2436, 0.0
    %2457 = vadd.xlane.f32.xlu0 %v2456
    %v2458 = vpop.xlane.xlu0 %2457
    %v2459 = vsel %vm369, %v2437, 0.0
    %2460 = vadd.xlane.f32.xlu0 %v2459
    %v2461 = vpop.xlane.xlu0 %2460
    %v2462 = vsel %vm369, %v2438, 0.0
    %2463 = vadd.xlane.f32.xlu0 %v2462
    %v2464 = vpop.xlane.xlu0 %2463
    %v2465 = vsel %vm369, %v2439, 0.0
    %2466 = vadd.xlane.f32.xlu0 %v2465
    %v2467 = vpop.xlane.xlu0 %2466
    %v2468 = vsel %vm369, %v2440, 0.0
    %2469 = vadd.xlane.f32.xlu0 %v2468
    %v2470 = vpop.xlane.xlu0 %2469
    %v2471 = vsel %vm369, %v2441, 0.0
    %2472 = vadd.xlane.f32.xlu0 %v2471
    %v2473 = vpop.xlane.xlu0 %2472
    %v2474 = vsel %vm369, %v2442, 0.0
    %2475 = vadd.xlane.f32.xlu0 %v2474
    %v2476 = vpop.xlane.xlu0 %2475
    %v2477 = vsel %vm369, %v2443, 0.0
    %2478 = vadd.xlane.f32.xlu0 %v2477
    %v2479 = vpop.xlane.xlu0 %2478
    %v2480 = vsel %vm369, %v2444, 0.0
    %2481 = vadd.xlane.f32.xlu0 %v2480
    %v2482 = vpop.xlane.xlu0 %2481
    %v2483 = vsel %vm369, %v2445, 0.0
    %2484 = vadd.xlane.f32.xlu0 %v2483
    %v2485 = vpop.xlane.xlu0 %2484
    %v2486 = vsel %vm369, %v2446, 0.0
    %2487 = vadd.xlane.f32.xlu0 %v2486
    %v2488 = vpop.xlane.xlu0 %2487
    %v2489 = vsel %vm369, %v2447, 0.0
    %2490 = vadd.xlane.f32.xlu0 %v2489
    %v2491 = vpop.xlane.xlu0 %2490
    %v2492 = vsel %vm369, %v2448, 0.0
    %2493 = vadd.xlane.f32.xlu0 %v2492
    %v2494 = vpop.xlane.xlu0 %2493
    %v2495 = vsel %vm369, %v2449, 0.0
    %2496 = vadd.xlane.f32.xlu0 %v2495
    %v2497 = vpop.xlane.xlu0 %2496
    %v2498 = vrcp.pop 64.0
    %v2499 = vmul.f32 %v2452, %v2498
    %v2500 = vmul.f32 %v2455, %v2498
    %v2501 = vmul.f32 %v2458, %v2498
    %v2502 = vmul.f32 %v2461, %v2498
    %v2503 = vmul.f32 %v2464, %v2498
    %v2504 = vmul.f32 %v2467, %v2498
    %v2505 = vmul.f32 %v2470, %v2498
    %v2506 = vmul.f32 %v2473, %v2498
    %v2507 = vmul.f32 %v2476, %v2498
    %v2508 = vmul.f32 %v2479, %v2498
    %v2509 = vmul.f32 %v2482, %v2498
    %v2510 = vmul.f32 %v2485, %v2498
    %v2511 = vmul.f32 %v2488, %v2498
    %v2512 = vmul.f32 %v2491, %v2498
    %v2513 = vmul.f32 %v2494, %v2498
    %v2514 = vmul.f32 %v2497, %v2498
    %v2515 = vsub.f32 %v2434, %v2499
    %v2516 = vsub.f32 %v2435, %v2500
    %v2517 = vsub.f32 %v2436, %v2501
    %v2518 = vsub.f32 %v2437, %v2502
    %v2519 = vsub.f32 %v2438, %v2503
    %v2520 = vsub.f32 %v2439, %v2504
    %v2521 = vsub.f32 %v2440, %v2505
    %v2522 = vsub.f32 %v2441, %v2506
    %v2523 = vsub.f32 %v2442, %v2507
    %v2524 = vsub.f32 %v2443, %v2508
    %v2525 = vsub.f32 %v2444, %v2509
    %v2526 = vsub.f32 %v2445, %v2510
    %v2527 = vsub.f32 %v2446, %v2511
    %v2528 = vsub.f32 %v2447, %v2512
    %v2529 = vsub.f32 %v2448, %v2513
    %v2530 = vsub.f32 %v2449, %v2514
    %v2531 = vmul.f32 %v2515, %v2515
    %v2532 = vmul.f32 %v2516, %v2516
    %v2533 = vmul.f32 %v2517, %v2517
    %v2534 = vmul.f32 %v2518, %v2518
    %v2535 = vmul.f32 %v2519, %v2519
    %v2536 = vmul.f32 %v2520, %v2520
    %v2537 = vmul.f32 %v2521, %v2521
    %v2538 = vmul.f32 %v2522, %v2522
    %v2539 = vmul.f32 %v2523, %v2523
    %v2540 = vmul.f32 %v2524, %v2524
    %v2541 = vmul.f32 %v2525, %v2525
    %v2542 = vmul.f32 %v2526, %v2526
    %v2543 = vmul.f32 %v2527, %v2527
    %v2544 = vmul.f32 %v2528, %v2528
    %v2545 = vmul.f32 %v2529, %v2529
    %v2546 = vmul.f32 %v2530, %v2530
    %v2547 = vsel %vm369, %v2531, 0.0
    %2548 = vadd.xlane.f32.xlu0 %v2547
    %v2549 = vpop.xlane.xlu0 %2548
    %v2550 = vsel %vm369, %v2532, 0.0
    %2551 = vadd.xlane.f32.xlu0 %v2550
    %v2552 = vpop.xlane.xlu0 %2551
    %v2553 = vsel %vm369, %v2533, 0.0
    %2554 = vadd.xlane.f32.xlu0 %v2553
    %v2555 = vpop.xlane.xlu0 %2554
    %v2556 = vsel %vm369, %v2534, 0.0
    %2557 = vadd.xlane.f32.xlu0 %v2556
    %v2558 = vpop.xlane.xlu0 %2557
    %v2559 = vsel %vm369, %v2535, 0.0
    %2560 = vadd.xlane.f32.xlu0 %v2559
    %v2561 = vpop.xlane.xlu0 %2560
    %v2562 = vsel %vm369, %v2536, 0.0
    %2563 = vadd.xlane.f32.xlu0 %v2562
    %v2564 = vpop.xlane.xlu0 %2563
    %v2565 = vsel %vm369, %v2537, 0.0
    %2566 = vadd.xlane.f32.xlu0 %v2565
    %v2567 = vpop.xlane.xlu0 %2566
    %v2568 = vsel %vm369, %v2538, 0.0
    %2569 = vadd.xlane.f32.xlu0 %v2568
    %v2570 = vpop.xlane.xlu0 %2569
    %v2571 = vsel %vm369, %v2539, 0.0
    %2572 = vadd.xlane.f32.xlu0 %v2571
    %v2573 = vpop.xlane.xlu0 %2572
    %v2574 = vsel %vm369, %v2540, 0.0
    %2575 = vadd.xlane.f32.xlu0 %v2574
    %v2576 = vpop.xlane.xlu0 %2575
    %v2577 = vsel %vm369, %v2541, 0.0
    %2578 = vadd.xlane.f32.xlu0 %v2577
    %v2579 = vpop.xlane.xlu0 %2578
    %v2580 = vsel %vm369, %v2542, 0.0
    %2581 = vadd.xlane.f32.xlu0 %v2580
    %v2582 = vpop.xlane.xlu0 %2581
    %v2583 = vsel %vm369, %v2543, 0.0
    %2584 = vadd.xlane.f32.xlu0 %v2583
    %v2585 = vpop.xlane.xlu0 %2584
    %v2586 = vsel %vm369, %v2544, 0.0
    %2587 = vadd.xlane.f32.xlu0 %v2586
    %v2588 = vpop.xlane.xlu0 %2587
    %v2589 = vsel %vm369, %v2545, 0.0
    %2590 = vadd.xlane.f32.xlu0 %v2589
    %v2591 = vpop.xlane.xlu0 %2590
    %v2592 = vsel %vm369, %v2546, 0.0
    %2593 = vadd.xlane.f32.xlu0 %v2592
    %v2594 = vpop.xlane.xlu0 %2593
    %v2595 = vmul.f32 %v2549, %v2498
    %v2596 = vmul.f32 %v2552, %v2498
    %v2597 = vmul.f32 %v2555, %v2498
    %v2598 = vmul.f32 %v2558, %v2498
    %v2599 = vmul.f32 %v2561, %v2498
    %v2600 = vmul.f32 %v2564, %v2498
    %v2601 = vmul.f32 %v2567, %v2498
    %v2602 = vmul.f32 %v2570, %v2498
    %v2603 = vmul.f32 %v2573, %v2498
    %v2604 = vmul.f32 %v2576, %v2498
    %v2605 = vmul.f32 %v2579, %v2498
    %v2606 = vmul.f32 %v2582, %v2498
    %v2607 = vmul.f32 %v2585, %v2498
    %v2608 = vmul.f32 %v2588, %v2498
    %v2609 = vmul.f32 %v2591, %v2498
    %v2610 = vmul.f32 %v2594, %v2498
    %v2611 = vadd.f32 %v2595, 1e-05
    %v2612 = vadd.f32 %v2596, 1e-05
    %v2613 = vadd.f32 %v2597, 1e-05
    %v2614 = vadd.f32 %v2598, 1e-05
    %v2615 = vadd.f32 %v2599, 1e-05
    %v2616 = vadd.f32 %v2600, 1e-05
    %v2617 = vadd.f32 %v2601, 1e-05
    %v2618 = vadd.f32 %v2602, 1e-05
    %v2619 = vadd.f32 %v2603, 1e-05
    %v2620 = vadd.f32 %v2604, 1e-05
    %v2621 = vadd.f32 %v2605, 1e-05
    %v2622 = vadd.f32 %v2606, 1e-05
    %v2623 = vadd.f32 %v2607, 1e-05
    %v2624 = vadd.f32 %v2608, 1e-05
    %v2625 = vadd.f32 %v2609, 1e-05
    %v2626 = vadd.f32 %v2610, 1e-05
    %v2627 = vrsqrt.pop %v2611
    %v2628 = vrsqrt.pop %v2612
    %v2629 = vrsqrt.pop %v2613
    %v2630 = vrsqrt.pop %v2614
    %v2631 = vrsqrt.pop %v2615
    %v2632 = vrsqrt.pop %v2616
    %v2633 = vrsqrt.pop %v2617
    %v2634 = vrsqrt.pop %v2618
    %v2635 = vrsqrt.pop %v2619
    %v2636 = vrsqrt.pop %v2620
    %v2637 = vrsqrt.pop %v2621
    %v2638 = vrsqrt.pop %v2622
    %v2639 = vrsqrt.pop %v2623
    %v2640 = vrsqrt.pop %v2624
    %v2641 = vrsqrt.pop %v2625
    %v2642 = vrsqrt.pop %v2626
    %v2643 = vmul.f32 %v2515, %v2627
    %v2644 = vmul.f32 %v2516, %v2628
    %v2645 = vmul.f32 %v2517, %v2629
    %v2646 = vmul.f32 %v2518, %v2630
    %v2647 = vmul.f32 %v2519, %v2631
    %v2648 = vmul.f32 %v2520, %v2632
    %v2649 = vmul.f32 %v2521, %v2633
    %v2650 = vmul.f32 %v2522, %v2634
    %v2651 = vmul.f32 %v2523, %v2635
    %v2652 = vmul.f32 %v2524, %v2636
    %v2653 = vmul.f32 %v2525, %v2637
    %v2654 = vmul.f32 %v2526, %v2638
    %v2655 = vmul.f32 %v2527, %v2639
    %v2656 = vmul.f32 %v2528, %v2640
    %v2657 = vmul.f32 %v2529, %v2641
    %v2658 = vmul.f32 %v2530, %v2642
    %v2659 = vld [vmem:[%s15] sm:$0x1]
    %v2661 = vlaneseq
    %v2662 = vshrl.u32 %v2661, 7
    %v2663 = vsub.s32 0, %v2662
    %v2664 = vrot.slane %v2659, %v2663
    %v2666 = vmul.f32 %v2643, %v2664
    %v2667 = vmul.f32 %v2644, %v2664
    %v2668 = vmul.f32 %v2645, %v2664
    %v2669 = vmul.f32 %v2646, %v2664
    %v2670 = vmul.f32 %v2647, %v2664
    %v2671 = vmul.f32 %v2648, %v2664
    %v2672 = vmul.f32 %v2649, %v2664
    %v2673 = vmul.f32 %v2650, %v2664
    %v2674 = vmul.f32 %v2651, %v2664
    %v2675 = vmul.f32 %v2652, %v2664
    %v2676 = vmul.f32 %v2653, %v2664
    %v2677 = vmul.f32 %v2654, %v2664
    %v2678 = vmul.f32 %v2655, %v2664
    %v2679 = vmul.f32 %v2656, %v2664
    %v2680 = vmul.f32 %v2657, %v2664
    %v2681 = vmul.f32 %v2658, %v2664
    %v2682 = vld [vmem:[%s16] sm:$0x1]
    %v2684 = vlaneseq
    %v2685 = vshrl.u32 %v2684, 7
    %v2686 = vsub.s32 0, %v2685
    %v2687 = vrot.slane %v2682, %v2686
    %v2689 = vadd.f32 %v2666, %v2687
    %v2690 = vadd.f32 %v2667, %v2687
    %v2691 = vadd.f32 %v2668, %v2687
    %v2692 = vadd.f32 %v2669, %v2687
    %v2693 = vadd.f32 %v2670, %v2687
    %v2694 = vadd.f32 %v2671, %v2687
    %v2695 = vadd.f32 %v2672, %v2687
    %v2696 = vadd.f32 %v2673, %v2687
    %v2697 = vadd.f32 %v2674, %v2687
    %v2698 = vadd.f32 %v2675, %v2687
    %v2699 = vadd.f32 %v2676, %v2687
    %v2700 = vadd.f32 %v2677, %v2687
    %v2701 = vadd.f32 %v2678, %v2687
    %v2702 = vadd.f32 %v2679, %v2687
    %v2703 = vadd.f32 %v2680, %v2687
    %v2704 = vadd.f32 %v2681, %v2687
    %v2705 = vpack.c.bf16 %v2690, %v2689
    %v2706 = vpack.c.bf16 %v2692, %v2691
    %v2707 = vpack.c.bf16 %v2694, %v2693
    %v2708 = vpack.c.bf16 %v2696, %v2695
    %v2709 = vpack.c.bf16 %v2698, %v2697
    %v2710 = vpack.c.bf16 %v2700, %v2699
    %v2711 = vpack.c.bf16 %v2702, %v2701
    %v2712 = vpack.c.bf16 %v2704, %v2703
    %v2713 = vld [vmem:[%s17] sm:$0xf]
    %v2714 = vld [vmem:[%s17 + $0x4] sm:$0xf]
    %v2715 = vld [vmem:[%s17 + $0x8] sm:$0xf]
    %v2716 = vld [vmem:[%s17 + $0xc] sm:$0xf]
    %v2717 = vld [vmem:[%s17 + $0x10] sm:$0xf]
    %v2718 = vld [vmem:[%s17 + $0x14] sm:$0xf]
    %v2719 = vld [vmem:[%s17 + $0x18] sm:$0xf]
    %v2720 = vld [vmem:[%s17 + $0x1c] sm:$0xf]
    %v2721 = vld [vmem:[%s18] sm:$0x1]
    %v2723 = vlaneseq
    %v2724 = vshrl.u32 %v2723, 7
    %v2725 = vsub.s32 0, %v2724
    %v2726 = vrot.slane %v2721, %v2725
    %v2736 = vunpack.c.l.b16 %v2713
    %v2737 = vunpack.c.l.b16 %v2714
    %v2738 = vunpack.c.l.b16 %v2715
    %v2739 = vunpack.c.l.b16 %v2716
    %v2740 = vunpack.c.l.b16 %v2717
    %v2741 = vunpack.c.l.b16 %v2718
    %v2742 = vunpack.c.l.b16 %v2719
    %v2743 = vunpack.c.l.b16 %v2720
    %v2744 = vpack.c.b16 %v2737, %v2736
    %v2745 = vpack.c.b16 %v2739, %v2738
    %v2746 = vpack.c.b16 %v2741, %v2740
    %v2747 = vpack.c.b16 %v2743, %v2742
    %v2753 = vsel %vm369, %v2705, 0
    %v2756 = vsel %vm369, %v2706, 0
    %v2759 = vsel %vm369, %v2707, 0
    %v2762 = vsel %vm369, %v2708, 0
    %v2765 = vsel %vm369, %v2709, 0
    %v2768 = vsel %vm369, %v2710, 0
    %v2771 = vsel %vm369, %v2711, 0
    %v2774 = vsel %vm369, %v2712, 0
    %2776 = vmatprep.subr.bf16.mxu0 0
    %2777 = vmatpush1.bf16.msra.mxu0 %v2744
    %2778 = vmatprep.subr.bf16.mxu0 0
    %2779 = vmatpush1.bf16.msra.mxu0 %v2745
    %2780 = vmatprep.subr.bf16.mxu0 0
    %2781 = vmatpush1.bf16.msra.mxu0 %v2746
    %2782 = vmatprep.subr.bf16.mxu0 0
    %2783 = vmatpush1.bf16.msra.mxu0 %v2747
    %2784 = vmatprep.subr.bf16.mxu0 0
    %2785 = vmatpush1.bf16.msra.mxu0 0
    %2786 = vmatprep.subr.bf16.mxu0 0
    %2787 = vmatpush1.bf16.msra.mxu0 0
    %2788 = vmatprep.subr.bf16.mxu0 0
    %2789 = vmatpush1.bf16.msra.mxu0 0
    %2790 = vmatprep.subr.bf16.mxu0 0
    %2791 = vmatpush1.bf16.msra.mxu0 0
    %2792 = vmatprep.subr.bf16.mxu0 0
    %2793 = vmatpush1.bf16.msra.mxu0 0
    %2794 = vmatprep.subr.bf16.mxu0 0
    %2795 = vmatpush1.bf16.msra.mxu0 0
    %2796 = vmatprep.subr.bf16.mxu0 0
    %2797 = vmatpush1.bf16.msra.mxu0 0
    %2798 = vmatprep.subr.bf16.mxu0 0
    %2799 = vmatpush1.bf16.msra.mxu0 0
    %2800 = vmatprep.subr.bf16.mxu0 0
    %2801 = vmatpush1.bf16.msra.mxu0 0
    %2802 = vmatprep.subr.bf16.mxu0 0
    %2803 = vmatpush1.bf16.msra.mxu0 0
    %2804 = vmatprep.subr.bf16.mxu0 0
    %2805 = vmatpush1.bf16.msra.mxu0 0
    %2806 = vmatprep.subr.bf16.mxu0 0
    %2807 = vmatpush1.bf16.msra.mxu0 0
    %2808 = vmatprep.mubr.bf16.mxu0 0
    %2809 = vmatmul.mubr.bf16.gmra.mrb[0].mxu0 %v2753
    %v2810 = vpop.f32.mrb[0].mxu0
    %v2811 = vadd.f32 %v2726, %v2810
    %v2812 = vpop.f32.mrb[0].mxu0
    %v2813 = vpop.f32.mrb[0].mxu0
    %v2814 = vadd.f32 %v2726, %v2813
    %v2815 = vpop.f32.mrb[0].mxu0
    %2816 = vmatprep.mubr.bf16.mxu0 0
    %2817 = vmatmul.mubr.bf16.gmra.mrb[0].mxu0 %v2756
    %v2818 = vpop.f32.mrb[0].mxu0
    %v2819 = vadd.f32 %v2726, %v2818
    %v2820 = vpop.f32.mrb[0].mxu0
    %v2821 = vpop.f32.mrb[0].mxu0
    %v2822 = vadd.f32 %v2726, %v2821
    %v2823 = vpop.f32.mrb[0].mxu0
    %2824 = vmatprep.mubr.bf16.mxu0 0
    %2825 = vmatmul.mubr.bf16.gmra.mrb[0].mxu0 %v2759
    %v2826 = vpop.f32.mrb[0].mxu0
    %v2827 = vadd.f32 %v2726, %v2826
    %v2828 = vpop.f32.mrb[0].mxu0
    %v2829 = vpop.f32.mrb[0].mxu0
    %v2830 = vadd.f32 %v2726, %v2829
    %v2831 = vpop.f32.mrb[0].mxu0
    %2832 = vmatprep.mubr.bf16.mxu0 0
    %2833 = vmatmul.mubr.bf16.gmra.mrb[0].mxu0 %v2762
    %v2834 = vpop.f32.mrb[0].mxu0
    %v2835 = vadd.f32 %v2726, %v2834
    %v2836 = vpop.f32.mrb[0].mxu0
    %v2837 = vpop.f32.mrb[0].mxu0
    %v2838 = vadd.f32 %v2726, %v2837
    %v2839 = vpop.f32.mrb[0].mxu0
    %2840 = vmatprep.mubr.bf16.mxu0 0
    %2841 = vmatmul.mubr.bf16.gmra.mrb[0].mxu0 %v2765
    %v2842 = vpop.f32.mrb[0].mxu0
    %v2843 = vadd.f32 %v2726, %v2842
    %v2844 = vpop.f32.mrb[0].mxu0
    %v2845 = vpop.f32.mrb[0].mxu0
    %v2846 = vadd.f32 %v2726, %v2845
    %v2847 = vpop.f32.mrb[0].mxu0
    %2848 = vmatprep.mubr.bf16.mxu0 0
    %2849 = vmatmul.mubr.bf16.gmra.mrb[0].mxu0 %v2768
    %v2850 = vpop.f32.mrb[0].mxu0
    %v2851 = vadd.f32 %v2726, %v2850
    %v2852 = vpop.f32.mrb[0].mxu0
    %v2853 = vpop.f32.mrb[0].mxu0
    %v2854 = vadd.f32 %v2726, %v2853
    %v2855 = vpop.f32.mrb[0].mxu0
    %2856 = vmatprep.mubr.bf16.mxu0 0
    %2857 = vmatmul.mubr.bf16.gmra.mrb[0].mxu0 %v2771
    %v2858 = vpop.f32.mrb[0].mxu0
    %v2859 = vadd.f32 %v2726, %v2858
    %v2860 = vpop.f32.mrb[0].mxu0
    %v2861 = vpop.f32.mrb[0].mxu0
    %v2862 = vadd.f32 %v2726, %v2861
    %v2863 = vpop.f32.mrb[0].mxu0
    %2864 = vmatprep.mubr.bf16.mxu0 0
    %2865 = vmatmul.mubr.bf16.gmra.mrb[0].mxu0 %v2774
    %v2866 = vpop.f32.mrb[0].mxu0
    %v2867 = vadd.f32 %v2726, %v2866
    %v2868 = vpop.f32.mrb[0].mxu0
    %v2869 = vpop.f32.mrb[0].mxu0
    %v2870 = vadd.f32 %v2726, %v2869
    %v2871 = vpop.f32.mrb[0].mxu0
    %2872 = vdwg.mxu0
    %v2873 = vmax.f32 %v2811, 0.0
    %v2874 = vmax.f32 %v2814, 0.0
    %v2875 = vmax.f32 %v2819, 0.0
    %v2876 = vmax.f32 %v2822, 0.0
    %v2877 = vmax.f32 %v2827, 0.0
    %v2878 = vmax.f32 %v2830, 0.0
    %v2879 = vmax.f32 %v2835, 0.0
    %v2880 = vmax.f32 %v2838, 0.0
    %v2881 = vmax.f32 %v2843, 0.0
    %v2882 = vmax.f32 %v2846, 0.0
    %v2883 = vmax.f32 %v2851, 0.0
    %v2884 = vmax.f32 %v2854, 0.0
    %v2885 = vmax.f32 %v2859, 0.0
    %v2886 = vmax.f32 %v2862, 0.0
    %v2887 = vmax.f32 %v2867, 0.0
    %v2888 = vmax.f32 %v2870, 0.0
    %v2889 = vpack.c.bf16 %v2874, %v2873
    %v2890 = vpack.c.bf16 %v2876, %v2875
    %v2891 = vpack.c.bf16 %v2878, %v2877
    %v2892 = vpack.c.bf16 %v2880, %v2879
    %v2893 = vpack.c.bf16 %v2882, %v2881
    %v2894 = vpack.c.bf16 %v2884, %v2883
    %v2895 = vpack.c.bf16 %v2886, %v2885
    %v2896 = vpack.c.bf16 %v2888, %v2887
    %v2897 = vld [vmem:[%s19] sm:$0xf]
    %v2898 = vld [vmem:[%s19 + $0x4] sm:$0xf]
    %v2899 = vld [vmem:[%s19 + $0x8] sm:$0xf]
    %v2900 = vld [vmem:[%s19 + $0xc] sm:$0xf]
    %v2901 = vld [vmem:[%s19 + $0x10] sm:$0xf]
    %v2902 = vld [vmem:[%s19 + $0x14] sm:$0xf]
    %v2903 = vld [vmem:[%s19 + $0x18] sm:$0xf]
    %v2904 = vld [vmem:[%s19 + $0x1c] sm:$0xf]
    %v2905 = vld [vmem:[%s20] sm:$0x1]
    %v2907 = vlaneseq
    %v2908 = vshrl.u32 %v2907, 7
    %v2909 = vsub.s32 0, %v2908
    %v2910 = vrot.slane %v2905, %v2909
    %v2920 = vunpack.c.l.b16 %v2897
    %v2921 = vunpack.c.l.b16 %v2898
    %v2922 = vunpack.c.l.b16 %v2899
    %v2923 = vunpack.c.l.b16 %v2900
    %v2924 = vunpack.c.l.b16 %v2901
    %v2925 = vunpack.c.l.b16 %v2902
    %v2926 = vunpack.c.l.b16 %v2903
    %v2927 = vunpack.c.l.b16 %v2904
    %v2928 = vpack.c.b16 %v2921, %v2920
    %v2929 = vpack.c.b16 %v2923, %v2922
    %v2930 = vpack.c.b16 %v2925, %v2924
    %v2931 = vpack.c.b16 %v2927, %v2926
    %v2937 = vsel %vm369, %v2889, 0
    %v2940 = vsel %vm369, %v2890, 0
    %v2943 = vsel %vm369, %v2891, 0
    %v2946 = vsel %vm369, %v2892, 0
    %v2949 = vsel %vm369, %v2893, 0
    %v2952 = vsel %vm369, %v2894, 0
    %v2955 = vsel %vm369, %v2895, 0
    %v2958 = vsel %vm369, %v2896, 0
    %2960 = vmatprep.subr.bf16.mxu0 0
    %2961 = vmatpush1.bf16.msra.mxu0 %v2928
    %2962 = vmatprep.subr.bf16.mxu0 0
    %2963 = vmatpush1.bf16.msra.mxu0 %v2929
    %2964 = vmatprep.subr.bf16.mxu0 0
    %2965 = vmatpush1.bf16.msra.mxu0 %v2930
    %2966 = vmatprep.subr.bf16.mxu0 0
    %2967 = vmatpush1.bf16.msra.mxu0 %v2931
    %2968 = vmatprep.subr.bf16.mxu0 0
    %2969 = vmatpush1.bf16.msra.mxu0 0
    %2970 = vmatprep.subr.bf16.mxu0 0
    %2971 = vmatpush1.bf16.msra.mxu0 0
    %2972 = vmatprep.subr.bf16.mxu0 0
    %2973 = vmatpush1.bf16.msra.mxu0 0
    %2974 = vmatprep.subr.bf16.mxu0 0
    %2975 = vmatpush1.bf16.msra.mxu0 0
    %2976 = vmatprep.subr.bf16.mxu0 0
    %2977 = vmatpush1.bf16.msra.mxu0 0
    %2978 = vmatprep.subr.bf16.mxu0 0
    %2979 = vmatpush1.bf16.msra.mxu0 0
    %2980 = vmatprep.subr.bf16.mxu0 0
    %2981 = vmatpush1.bf16.msra.mxu0 0
    %2982 = vmatprep.subr.bf16.mxu0 0
    %2983 = vmatpush1.bf16.msra.mxu0 0
    %2984 = vmatprep.subr.bf16.mxu0 0
    %2985 = vmatpush1.bf16.msra.mxu0 0
    %2986 = vmatprep.subr.bf16.mxu0 0
    %2987 = vmatpush1.bf16.msra.mxu0 0
    %2988 = vmatprep.subr.bf16.mxu0 0
    %2989 = vmatpush1.bf16.msra.mxu0 0
    %2990 = vmatprep.subr.bf16.mxu0 0
    %2991 = vmatpush1.bf16.msra.mxu0 0
    %2992 = vmatprep.mubr.bf16.mxu0 0
    %2993 = vmatmul.mubr.bf16.gmra.mrb[0].mxu0 %v2937
    %v2994 = vpop.f32.mrb[0].mxu0
    %v2995 = vadd.f32 %v2910, %v2994
    %v2996 = vpop.f32.mrb[0].mxu0
    %v2997 = vpop.f32.mrb[0].mxu0
    %v2998 = vadd.f32 %v2910, %v2997
    %v2999 = vpop.f32.mrb[0].mxu0
    %3000 = vmatprep.mubr.bf16.mxu0 0
    %3001 = vmatmul.mubr.bf16.gmra.mrb[0].mxu0 %v2940
    %v3002 = vpop.f32.mrb[0].mxu0
    %v3003 = vadd.f32 %v2910, %v3002
    %v3004 = vpop.f32.mrb[0].mxu0
    %v3005 = vpop.f32.mrb[0].mxu0
    %v3006 = vadd.f32 %v2910, %v3005
    %v3007 = vpop.f32.mrb[0].mxu0
    %3008 = vmatprep.mubr.bf16.mxu0 0
    %3009 = vmatmul.mubr.bf16.gmra.mrb[0].mxu0 %v2943
    %v3010 = vpop.f32.mrb[0].mxu0
    %v3011 = vadd.f32 %v2910, %v3010
    %v3012 = vpop.f32.mrb[0].mxu0
    %v3013 = vpop.f32.mrb[0].mxu0
    %v3014 = vadd.f32 %v2910, %v3013
    %v3015 = vpop.f32.mrb[0].mxu0
    %3016 = vmatprep.mubr.bf16.mxu0 0
    %3017 = vmatmul.mubr.bf16.gmra.mrb[0].mxu0 %v2946
    %v3018 = vpop.f32.mrb[0].mxu0
    %v3019 = vadd.f32 %v2910, %v3018
    %v3020 = vpop.f32.mrb[0].mxu0
    %v3021 = vpop.f32.mrb[0].mxu0
    %v3022 = vadd.f32 %v2910, %v3021
    %v3023 = vpop.f32.mrb[0].mxu0
    %3024 = vmatprep.mubr.bf16.mxu0 0
    %3025 = vmatmul.mubr.bf16.gmra.mrb[0].mxu0 %v2949
    %v3026 = vpop.f32.mrb[0].mxu0
    %v3027 = vadd.f32 %v2910, %v3026
    %v3028 = vpop.f32.mrb[0].mxu0
    %v3029 = vpop.f32.mrb[0].mxu0
    %v3030 = vadd.f32 %v2910, %v3029
    %v3031 = vpop.f32.mrb[0].mxu0
    %3032 = vmatprep.mubr.bf16.mxu0 0
    %3033 = vmatmul.mubr.bf16.gmra.mrb[0].mxu0 %v2952
    %v3034 = vpop.f32.mrb[0].mxu0
    %v3035 = vadd.f32 %v2910, %v3034
    %v3036 = vpop.f32.mrb[0].mxu0
    %v3037 = vpop.f32.mrb[0].mxu0
    %v3038 = vadd.f32 %v2910, %v3037
    %v3039 = vpop.f32.mrb[0].mxu0
    %3040 = vmatprep.mubr.bf16.mxu0 0
    %3041 = vmatmul.mubr.bf16.gmra.mrb[0].mxu0 %v2955
    %v3042 = vpop.f32.mrb[0].mxu0
    %v3043 = vadd.f32 %v2910, %v3042
    %v3044 = vpop.f32.mrb[0].mxu0
    %v3045 = vpop.f32.mrb[0].mxu0
    %v3046 = vadd.f32 %v2910, %v3045
    %v3047 = vpop.f32.mrb[0].mxu0
    %3048 = vmatprep.mubr.bf16.mxu0 0
    %3049 = vmatmul.mubr.bf16.gmra.mrb[0].mxu0 %v2958
    %v3050 = vpop.f32.mrb[0].mxu0
    %v3051 = vadd.f32 %v2910, %v3050
    %v3052 = vpop.f32.mrb[0].mxu0
    %v3053 = vpop.f32.mrb[0].mxu0
    %v3054 = vadd.f32 %v2910, %v3053
    %v3055 = vpop.f32.mrb[0].mxu0
    %3056 = vdwg.mxu0
    %v3057 = vadd.f32 %v2689, %v2995
    %v3058 = vadd.f32 %v2690, %v2998
    %v3059 = vadd.f32 %v2691, %v3003
    %v3060 = vadd.f32 %v2692, %v3006
    %v3061 = vadd.f32 %v2693, %v3011
    %v3062 = vadd.f32 %v2694, %v3014
    %v3063 = vadd.f32 %v2695, %v3019
    %v3064 = vadd.f32 %v2696, %v3022
    %v3065 = vadd.f32 %v2697, %v3027
    %v3066 = vadd.f32 %v2698, %v3030
    %v3067 = vadd.f32 %v2699, %v3035
    %v3068 = vadd.f32 %v2700, %v3038
    %v3069 = vadd.f32 %v2701, %v3043
    %v3070 = vadd.f32 %v2702, %v3046
    %v3071 = vadd.f32 %v2703, %v3051
    %v3072 = vadd.f32 %v2704, %v3054
    %v3073 = vsel %vm369, %v3057, 0.0
    %3074 = vadd.xlane.f32.xlu0 %v3073
    %v3075 = vpop.xlane.xlu0 %3074
    %v3076 = vsel %vm369, %v3058, 0.0
    %3077 = vadd.xlane.f32.xlu0 %v3076
    %v3078 = vpop.xlane.xlu0 %3077
    %v3079 = vsel %vm369, %v3059, 0.0
    %3080 = vadd.xlane.f32.xlu0 %v3079
    %v3081 = vpop.xlane.xlu0 %3080
    %v3082 = vsel %vm369, %v3060, 0.0
    %3083 = vadd.xlane.f32.xlu0 %v3082
    %v3084 = vpop.xlane.xlu0 %3083
    %v3085 = vsel %vm369, %v3061, 0.0
    %3086 = vadd.xlane.f32.xlu0 %v3085
    %v3087 = vpop.xlane.xlu0 %3086
    %v3088 = vsel %vm369, %v3062, 0.0
    %3089 = vadd.xlane.f32.xlu0 %v3088
    %v3090 = vpop.xlane.xlu0 %3089
    %v3091 = vsel %vm369, %v3063, 0.0
    %3092 = vadd.xlane.f32.xlu0 %v3091
    %v3093 = vpop.xlane.xlu0 %3092
    %v3094 = vsel %vm369, %v3064, 0.0
    %3095 = vadd.xlane.f32.xlu0 %v3094
    %v3096 = vpop.xlane.xlu0 %3095
    %v3097 = vsel %vm369, %v3065, 0.0
    %3098 = vadd.xlane.f32.xlu0 %v3097
    %v3099 = vpop.xlane.xlu0 %3098
    %v3100 = vsel %vm369, %v3066, 0.0
    %3101 = vadd.xlane.f32.xlu0 %v3100
    %v3102 = vpop.xlane.xlu0 %3101
    %v3103 = vsel %vm369, %v3067, 0.0
    %3104 = vadd.xlane.f32.xlu0 %v3103
    %v3105 = vpop.xlane.xlu0 %3104
    %v3106 = vsel %vm369, %v3068, 0.0
    %3107 = vadd.xlane.f32.xlu0 %v3106
    %v3108 = vpop.xlane.xlu0 %3107
    %v3109 = vsel %vm369, %v3069, 0.0
    %3110 = vadd.xlane.f32.xlu0 %v3109
    %v3111 = vpop.xlane.xlu0 %3110
    %v3112 = vsel %vm369, %v3070, 0.0
    %3113 = vadd.xlane.f32.xlu0 %v3112
    %v3114 = vpop.xlane.xlu0 %3113
    %v3115 = vsel %vm369, %v3071, 0.0
    %3116 = vadd.xlane.f32.xlu0 %v3115
    %v3117 = vpop.xlane.xlu0 %3116
    %v3118 = vsel %vm369, %v3072, 0.0
    %3119 = vadd.xlane.f32.xlu0 %v3118
    %v3120 = vpop.xlane.xlu0 %3119
    %v3121 = vmul.f32 %v3075, %v2498
    %v3122 = vmul.f32 %v3078, %v2498
    %v3123 = vmul.f32 %v3081, %v2498
    %v3124 = vmul.f32 %v3084, %v2498
    %v3125 = vmul.f32 %v3087, %v2498
    %v3126 = vmul.f32 %v3090, %v2498
    %v3127 = vmul.f32 %v3093, %v2498
    %v3128 = vmul.f32 %v3096, %v2498
    %v3129 = vmul.f32 %v3099, %v2498
    %v3130 = vmul.f32 %v3102, %v2498
    %v3131 = vmul.f32 %v3105, %v2498
    %v3132 = vmul.f32 %v3108, %v2498
    %v3133 = vmul.f32 %v3111, %v2498
    %v3134 = vmul.f32 %v3114, %v2498
    %v3135 = vmul.f32 %v3117, %v2498
    %v3136 = vmul.f32 %v3120, %v2498
    %v3137 = vsub.f32 %v3057, %v3121
    %v3138 = vsub.f32 %v3058, %v3122
    %v3139 = vsub.f32 %v3059, %v3123
    %v3140 = vsub.f32 %v3060, %v3124
    %v3141 = vsub.f32 %v3061, %v3125
    %v3142 = vsub.f32 %v3062, %v3126
    %v3143 = vsub.f32 %v3063, %v3127
    %v3144 = vsub.f32 %v3064, %v3128
    %v3145 = vsub.f32 %v3065, %v3129
    %v3146 = vsub.f32 %v3066, %v3130
    %v3147 = vsub.f32 %v3067, %v3131
    %v3148 = vsub.f32 %v3068, %v3132
    %v3149 = vsub.f32 %v3069, %v3133
    %v3150 = vsub.f32 %v3070, %v3134
    %v3151 = vsub.f32 %v3071, %v3135
    %v3152 = vsub.f32 %v3072, %v3136
    %v3153 = vmul.f32 %v3137, %v3137
    %v3154 = vmul.f32 %v3138, %v3138
    %v3155 = vmul.f32 %v3139, %v3139
    %v3156 = vmul.f32 %v3140, %v3140
    %v3157 = vmul.f32 %v3141, %v3141
    %v3158 = vmul.f32 %v3142, %v3142
    %v3159 = vmul.f32 %v3143, %v3143
    %v3160 = vmul.f32 %v3144, %v3144
    %v3161 = vmul.f32 %v3145, %v3145
    %v3162 = vmul.f32 %v3146, %v3146
    %v3163 = vmul.f32 %v3147, %v3147
    %v3164 = vmul.f32 %v3148, %v3148
    %v3165 = vmul.f32 %v3149, %v3149
    %v3166 = vmul.f32 %v3150, %v3150
    %v3167 = vmul.f32 %v3151, %v3151
    %v3168 = vmul.f32 %v3152, %v3152
    %v3169 = vsel %vm369, %v3153, 0.0
    %3170 = vadd.xlane.f32.xlu0 %v3169
    %v3171 = vpop.xlane.xlu0 %3170
    %v3172 = vsel %vm369, %v3154, 0.0
    %3173 = vadd.xlane.f32.xlu0 %v3172
    %v3174 = vpop.xlane.xlu0 %3173
    %v3175 = vsel %vm369, %v3155, 0.0
    %3176 = vadd.xlane.f32.xlu0 %v3175
    %v3177 = vpop.xlane.xlu0 %3176
    %v3178 = vsel %vm369, %v3156, 0.0
    %3179 = vadd.xlane.f32.xlu0 %v3178
    %v3180 = vpop.xlane.xlu0 %3179
    %v3181 = vsel %vm369, %v3157, 0.0
    %3182 = vadd.xlane.f32.xlu0 %v3181
    %v3183 = vpop.xlane.xlu0 %3182
    %v3184 = vsel %vm369, %v3158, 0.0
    %3185 = vadd.xlane.f32.xlu0 %v3184
    %v3186 = vpop.xlane.xlu0 %3185
    %v3187 = vsel %vm369, %v3159, 0.0
    %3188 = vadd.xlane.f32.xlu0 %v3187
    %v3189 = vpop.xlane.xlu0 %3188
    %v3190 = vsel %vm369, %v3160, 0.0
    %3191 = vadd.xlane.f32.xlu0 %v3190
    %v3192 = vpop.xlane.xlu0 %3191
    %v3193 = vsel %vm369, %v3161, 0.0
    %3194 = vadd.xlane.f32.xlu0 %v3193
    %v3195 = vpop.xlane.xlu0 %3194
    %v3196 = vsel %vm369, %v3162, 0.0
    %3197 = vadd.xlane.f32.xlu0 %v3196
    %v3198 = vpop.xlane.xlu0 %3197
    %v3199 = vsel %vm369, %v3163, 0.0
    %3200 = vadd.xlane.f32.xlu0 %v3199
    %v3201 = vpop.xlane.xlu0 %3200
    %v3202 = vsel %vm369, %v3164, 0.0
    %3203 = vadd.xlane.f32.xlu0 %v3202
    %v3204 = vpop.xlane.xlu0 %3203
    %v3205 = vsel %vm369, %v3165, 0.0
    %3206 = vadd.xlane.f32.xlu0 %v3205
    %v3207 = vpop.xlane.xlu0 %3206
    %v3208 = vsel %vm369, %v3166, 0.0
    %3209 = vadd.xlane.f32.xlu0 %v3208
    %v3210 = vpop.xlane.xlu0 %3209
    %v3211 = vsel %vm369, %v3167, 0.0
    %3212 = vadd.xlane.f32.xlu0 %v3211
    %v3213 = vpop.xlane.xlu0 %3212
    %v3214 = vsel %vm369, %v3168, 0.0
    %3215 = vadd.xlane.f32.xlu0 %v3214
    %v3216 = vpop.xlane.xlu0 %3215
    %v3217 = vmul.f32 %v3171, %v2498
    %v3218 = vmul.f32 %v3174, %v2498
    %v3219 = vmul.f32 %v3177, %v2498
    %v3220 = vmul.f32 %v3180, %v2498
    %v3221 = vmul.f32 %v3183, %v2498
    %v3222 = vmul.f32 %v3186, %v2498
    %v3223 = vmul.f32 %v3189, %v2498
    %v3224 = vmul.f32 %v3192, %v2498
    %v3225 = vmul.f32 %v3195, %v2498
    %v3226 = vmul.f32 %v3198, %v2498
    %v3227 = vmul.f32 %v3201, %v2498
    %v3228 = vmul.f32 %v3204, %v2498
    %v3229 = vmul.f32 %v3207, %v2498
    %v3230 = vmul.f32 %v3210, %v2498
    %v3231 = vmul.f32 %v3213, %v2498
    %v3232 = vmul.f32 %v3216, %v2498
    %v3233 = vadd.f32 %v3217, 1e-05
    %v3234 = vadd.f32 %v3218, 1e-05
    %v3235 = vadd.f32 %v3219, 1e-05
    %v3236 = vadd.f32 %v3220, 1e-05
    %v3237 = vadd.f32 %v3221, 1e-05
    %v3238 = vadd.f32 %v3222, 1e-05
    %v3239 = vadd.f32 %v3223, 1e-05
    %v3240 = vadd.f32 %v3224, 1e-05
    %v3241 = vadd.f32 %v3225, 1e-05
    %v3242 = vadd.f32 %v3226, 1e-05
    %v3243 = vadd.f32 %v3227, 1e-05
    %v3244 = vadd.f32 %v3228, 1e-05
    %v3245 = vadd.f32 %v3229, 1e-05
    %v3246 = vadd.f32 %v3230, 1e-05
    %v3247 = vadd.f32 %v3231, 1e-05
    %v3248 = vadd.f32 %v3232, 1e-05
    %v3249 = vrsqrt.pop %v3233
    %v3250 = vrsqrt.pop %v3234
    %v3251 = vrsqrt.pop %v3235
    %v3252 = vrsqrt.pop %v3236
    %v3253 = vrsqrt.pop %v3237
    %v3254 = vrsqrt.pop %v3238
    %v3255 = vrsqrt.pop %v3239
    %v3256 = vrsqrt.pop %v3240
    %v3257 = vrsqrt.pop %v3241
    %v3258 = vrsqrt.pop %v3242
    %v3259 = vrsqrt.pop %v3243
    %v3260 = vrsqrt.pop %v3244
    %v3261 = vrsqrt.pop %v3245
    %v3262 = vrsqrt.pop %v3246
    %v3263 = vrsqrt.pop %v3247
    %v3264 = vrsqrt.pop %v3248
    %v3265 = vmul.f32 %v3137, %v3249
    %v3266 = vmul.f32 %v3138, %v3250
    %v3267 = vmul.f32 %v3139, %v3251
    %v3268 = vmul.f32 %v3140, %v3252
    %v3269 = vmul.f32 %v3141, %v3253
    %v3270 = vmul.f32 %v3142, %v3254
    %v3271 = vmul.f32 %v3143, %v3255
    %v3272 = vmul.f32 %v3144, %v3256
    %v3273 = vmul.f32 %v3145, %v3257
    %v3274 = vmul.f32 %v3146, %v3258
    %v3275 = vmul.f32 %v3147, %v3259
    %v3276 = vmul.f32 %v3148, %v3260
    %v3277 = vmul.f32 %v3149, %v3261
    %v3278 = vmul.f32 %v3150, %v3262
    %v3279 = vmul.f32 %v3151, %v3263
    %v3280 = vmul.f32 %v3152, %v3264
    %v3281 = vld [vmem:[%s21] sm:$0x1]
    %v3283 = vlaneseq
    %v3284 = vshrl.u32 %v3283, 7
    %v3285 = vsub.s32 0, %v3284
    %v3286 = vrot.slane %v3281, %v3285
    %v3288 = vmul.f32 %v3265, %v3286
    %v3289 = vmul.f32 %v3266, %v3286
    %v3290 = vmul.f32 %v3267, %v3286
    %v3291 = vmul.f32 %v3268, %v3286
    %v3292 = vmul.f32 %v3269, %v3286
    %v3293 = vmul.f32 %v3270, %v3286
    %v3294 = vmul.f32 %v3271, %v3286
    %v3295 = vmul.f32 %v3272, %v3286
    %v3296 = vmul.f32 %v3273, %v3286
    %v3297 = vmul.f32 %v3274, %v3286
    %v3298 = vmul.f32 %v3275, %v3286
    %v3299 = vmul.f32 %v3276, %v3286
    %v3300 = vmul.f32 %v3277, %v3286
    %v3301 = vmul.f32 %v3278, %v3286
    %v3302 = vmul.f32 %v3279, %v3286
    %v3303 = vmul.f32 %v3280, %v3286
    %v3304 = vld [vmem:[%s22] sm:$0x1]
    %v3306 = vlaneseq
    %v3307 = vshrl.u32 %v3306, 7
    %v3308 = vsub.s32 0, %v3307
    %v3309 = vrot.slane %v3304, %v3308
    %v3311 = vadd.f32 %v3288, %v3309
    %v3312 = vadd.f32 %v3289, %v3309
    %v3313 = vadd.f32 %v3290, %v3309
    %v3314 = vadd.f32 %v3291, %v3309
    %v3315 = vadd.f32 %v3292, %v3309
    %v3316 = vadd.f32 %v3293, %v3309
    %v3317 = vadd.f32 %v3294, %v3309
    %v3318 = vadd.f32 %v3295, %v3309
    %v3319 = vadd.f32 %v3296, %v3309
    %v3320 = vadd.f32 %v3297, %v3309
    %v3321 = vadd.f32 %v3298, %v3309
    %v3322 = vadd.f32 %v3299, %v3309
    %v3323 = vadd.f32 %v3300, %v3309
    %v3324 = vadd.f32 %v3301, %v3309
    %v3325 = vadd.f32 %v3302, %v3309
    %v3326 = vadd.f32 %v3303, %v3309
    %v3327 = vpack.c.bf16 %v3312, %v3311
    %v3328 = vpack.c.bf16 %v3314, %v3313
    %v3329 = vpack.c.bf16 %v3316, %v3315
    %v3330 = vpack.c.bf16 %v3318, %v3317
    %v3331 = vpack.c.bf16 %v3320, %v3319
    %v3332 = vpack.c.bf16 %v3322, %v3321
    %v3333 = vpack.c.bf16 %v3324, %v3323
    %v3334 = vpack.c.bf16 %v3326, %v3325
    %s3335 = scalar_lea.vmem %s11, 64
    %v3336 = vld [vmem:[%s3335] sm:$0xff]
    %v3337 = vld [vmem:[%s3335 + $0x8] sm:$0xff]
    %v3338 = vld [vmem:[%s3335 + $0x10] sm:$0xff]
    %v3339 = vld [vmem:[%s3335 + $0x18] sm:$0xff]
    %v3340 = vld [vmem:[%s3335 + $0x20] sm:$0xff]
    %v3341 = vld [vmem:[%s3335 + $0x28] sm:$0xff]
    %v3342 = vld [vmem:[%s3335 + $0x30] sm:$0xff]
    %v3343 = vld [vmem:[%s3335 + $0x38] sm:$0xff]
    %s3344 = scalar_lea.vmem %s12, 2
    %v3345 = vld [vmem:[%s3344] sm:$0x3]
    %v3347 = vlaneseq
    %v3348 = vshrl.u32 %v3347, 7
    %v3349 = vsub.s32 0, %v3348
    %v3350 = vrot.slane %v3345, %v3349
    %v3351 = vlaneseq
    %v3352 = vshrl.u32 %v3351, 7
    %v3353 = vsub.s32 1, %v3352
    %v3354 = vrot.slane %v3345, %v3353
    %v3365 = vunpack.c.l.b16 %v3336
    %v3366 = vunpack.c.h.b16 %v3336
    %v3367 = vunpack.c.l.b16 %v3337
    %v3368 = vunpack.c.h.b16 %v3337
    %v3369 = vunpack.c.l.b16 %v3338
    %v3370 = vunpack.c.h.b16 %v3338
    %v3371 = vunpack.c.l.b16 %v3339
    %v3372 = vunpack.c.h.b16 %v3339
    %v3373 = vunpack.c.l.b16 %v3340
    %v3374 = vunpack.c.h.b16 %v3340
    %v3375 = vunpack.c.l.b16 %v3341
    %v3376 = vunpack.c.h.b16 %v3341
    %v3377 = vunpack.c.l.b16 %v3342
    %v3378 = vunpack.c.h.b16 %v3342
    %v3379 = vunpack.c.l.b16 %v3343
    %v3380 = vunpack.c.h.b16 %v3343
    %v3381 = vpack.c.b16 %v3367, %v3365
    %v3382 = vpack.c.b16 %v3368, %v3366
    %v3383 = vpack.c.b16 %v3371, %v3369
    %v3384 = vpack.c.b16 %v3372, %v3370
    %v3385 = vpack.c.b16 %v3375, %v3373
    %v3386 = vpack.c.b16 %v3376, %v3374
    %v3387 = vpack.c.b16 %v3379, %v3377
    %v3388 = vpack.c.b16 %v3380, %v3378
    %v3398 = vsel %vm369, %v3327, 0
    %v3401 = vsel %vm369, %v3328, 0
    %v3404 = vsel %vm369, %v3329, 0
    %v3407 = vsel %vm369, %v3330, 0
    %v3410 = vsel %vm369, %v3331, 0
    %v3413 = vsel %vm369, %v3332, 0
    %v3416 = vsel %vm369, %v3333, 0
    %v3419 = vsel %vm369, %v3334, 0
    %3421 = vmatprep.subr.bf16.mxu0 %v3382
    %3422 = vmatpush1.bf16.msra.mxu0 %v3381
    %3423 = vmatprep.subr.bf16.mxu0 %v3384
    %3424 = vmatpush1.bf16.msra.mxu0 %v3383
    %3425 = vmatprep.subr.bf16.mxu0 %v3386
    %3426 = vmatpush1.bf16.msra.mxu0 %v3385
    %3427 = vmatprep.subr.bf16.mxu0 %v3388
    %3428 = vmatpush1.bf16.msra.mxu0 %v3387
    %3429 = vmatprep.subr.bf16.mxu0 0
    %3430 = vmatpush1.bf16.msra.mxu0 0
    %3431 = vmatprep.subr.bf16.mxu0 0
    %3432 = vmatpush1.bf16.msra.mxu0 0
    %3433 = vmatprep.subr.bf16.mxu0 0
    %3434 = vmatpush1.bf16.msra.mxu0 0
    %3435 = vmatprep.subr.bf16.mxu0 0
    %3436 = vmatpush1.bf16.msra.mxu0 0
    %3437 = vmatprep.subr.bf16.mxu0 0
    %3438 = vmatpush1.bf16.msra.mxu0 0
    %3439 = vmatprep.subr.bf16.mxu0 0
    %3440 = vmatpush1.bf16.msra.mxu0 0
    %3441 = vmatprep.subr.bf16.mxu0 0
    %3442 = vmatpush1.bf16.msra.mxu0 0
    %3443 = vmatprep.subr.bf16.mxu0 0
    %3444 = vmatpush1.bf16.msra.mxu0 0
    %3445 = vmatprep.subr.bf16.mxu0 0
    %3446 = vmatpush1.bf16.msra.mxu0 0
    %3447 = vmatprep.subr.bf16.mxu0 0
    %3448 = vmatpush1.bf16.msra.mxu0 0
    %3449 = vmatprep.subr.bf16.mxu0 0
    %3450 = vmatpush1.bf16.msra.mxu0 0
    %3451 = vmatprep.subr.bf16.mxu0 0
    %3452 = vmatpush1.bf16.msra.mxu0 0
    %3453 = vmatprep.mubr.bf16.mxu0 0
    %3454 = vmatmul.mubr.bf16.gmra.mrb[0].mxu0 %v3398
    %v3455 = vpop.f32.mrb[0].mxu0
    %v3456 = vadd.f32 %v3350, %v3455
    %v3457 = vpop.f32.mrb[0].mxu0
    %v3458 = vadd.f32 %v3354, %v3457
    %v3459 = vpop.f32.mrb[0].mxu0
    %v3460 = vadd.f32 %v3350, %v3459
    %v3461 = vpop.f32.mrb[0].mxu0
    %v3462 = vadd.f32 %v3354, %v3461
    %3463 = vmatprep.mubr.bf16.mxu0 0
    %3464 = vmatmul.mubr.bf16.gmra.mrb[0].mxu0 %v3401
    %v3465 = vpop.f32.mrb[0].mxu0
    %v3466 = vadd.f32 %v3350, %v3465
    %v3467 = vpop.f32.mrb[0].mxu0
    %v3468 = vadd.f32 %v3354, %v3467
    %v3469 = vpop.f32.mrb[0].mxu0
    %v3470 = vadd.f32 %v3350, %v3469
    %v3471 = vpop.f32.mrb[0].mxu0
    %v3472 = vadd.f32 %v3354, %v3471
    %3473 = vmatprep.mubr.bf16.mxu0 0
    %3474 = vmatmul.mubr.bf16.gmra.mrb[0].mxu0 %v3404
    %v3475 = vpop.f32.mrb[0].mxu0
    %v3476 = vadd.f32 %v3350, %v3475
    %v3477 = vpop.f32.mrb[0].mxu0
    %v3478 = vadd.f32 %v3354, %v3477
    %v3479 = vpop.f32.mrb[0].mxu0
    %v3480 = vadd.f32 %v3350, %v3479
    %v3481 = vpop.f32.mrb[0].mxu0
    %v3482 = vadd.f32 %v3354, %v3481
    %3483 = vmatprep.mubr.bf16.mxu0 0
    %3484 = vmatmul.mubr.bf16.gmra.mrb[0].mxu0 %v3407
    %v3485 = vpop.f32.mrb[0].mxu0
    %v3486 = vadd.f32 %v3350, %v3485
    %v3487 = vpop.f32.mrb[0].mxu0
    %v3488 = vadd.f32 %v3354, %v3487
    %v3489 = vpop.f32.mrb[0].mxu0
    %v3490 = vadd.f32 %v3350, %v3489
    %v3491 = vpop.f32.mrb[0].mxu0
    %v3492 = vadd.f32 %v3354, %v3491
    %3493 = vmatprep.mubr.bf16.mxu0 0
    %3494 = vmatmul.mubr.bf16.gmra.mrb[0].mxu0 %v3410
    %v3495 = vpop.f32.mrb[0].mxu0
    %v3496 = vadd.f32 %v3350, %v3495
    %v3497 = vpop.f32.mrb[0].mxu0
    %v3498 = vadd.f32 %v3354, %v3497
    %v3499 = vpop.f32.mrb[0].mxu0
    %v3500 = vadd.f32 %v3350, %v3499
    %v3501 = vpop.f32.mrb[0].mxu0
    %v3502 = vadd.f32 %v3354, %v3501
    %3503 = vmatprep.mubr.bf16.mxu0 0
    %3504 = vmatmul.mubr.bf16.gmra.mrb[0].mxu0 %v3413
    %v3505 = vpop.f32.mrb[0].mxu0
    %v3506 = vadd.f32 %v3350, %v3505
    %v3507 = vpop.f32.mrb[0].mxu0
    %v3508 = vadd.f32 %v3354, %v3507
    %v3509 = vpop.f32.mrb[0].mxu0
    %v3510 = vadd.f32 %v3350, %v3509
    %v3511 = vpop.f32.mrb[0].mxu0
    %v3512 = vadd.f32 %v3354, %v3511
    %3513 = vmatprep.mubr.bf16.mxu0 0
    %3514 = vmatmul.mubr.bf16.gmra.mrb[0].mxu0 %v3416
    %v3515 = vpop.f32.mrb[0].mxu0
    %v3516 = vadd.f32 %v3350, %v3515
    %v3517 = vpop.f32.mrb[0].mxu0
    %v3518 = vadd.f32 %v3354, %v3517
    %v3519 = vpop.f32.mrb[0].mxu0
    %v3520 = vadd.f32 %v3350, %v3519
    %v3521 = vpop.f32.mrb[0].mxu0
    %v3522 = vadd.f32 %v3354, %v3521
    %3523 = vmatprep.mubr.bf16.mxu0 0
    %3524 = vmatmul.mubr.bf16.gmra.mrb[0].mxu0 %v3419
    %v3525 = vpop.f32.mrb[0].mxu0
    %v3526 = vadd.f32 %v3350, %v3525
    %v3527 = vpop.f32.mrb[0].mxu0
    %v3528 = vadd.f32 %v3354, %v3527
    %v3529 = vpop.f32.mrb[0].mxu0
    %v3530 = vadd.f32 %v3350, %v3529
    %v3531 = vpop.f32.mrb[0].mxu0
    %v3532 = vadd.f32 %v3354, %v3531
    %3533 = vdwg.mxu0
    %3542 = vrot.lane.b32.xlu0 %v3456, 64
    %v3543 = vpop.permute.xlu0 %3542
    %3544 = vrot.lane.b32.xlu0 %v3460, 64
    %v3545 = vpop.permute.xlu0 %3544
    %3546 = vrot.lane.b32.xlu0 %v3466, 64
    %v3547 = vpop.permute.xlu0 %3546
    %3548 = vrot.lane.b32.xlu0 %v3470, 64
    %v3549 = vpop.permute.xlu0 %3548
    %3550 = vrot.lane.b32.xlu0 %v3476, 64
    %v3551 = vpop.permute.xlu0 %3550
    %3552 = vrot.lane.b32.xlu0 %v3480, 64
    %v3553 = vpop.permute.xlu0 %3552
    %3554 = vrot.lane.b32.xlu0 %v3486, 64
    %v3555 = vpop.permute.xlu0 %3554
    %3556 = vrot.lane.b32.xlu0 %v3490, 64
    %v3557 = vpop.permute.xlu0 %3556
    %v3566 = vsel %vm369, %v3543, %v3496
    %v3567 = vsel %vm369, %v3545, %v3500
    %v3568 = vsel %vm369, %v3547, %v3506
    %v3569 = vsel %vm369, %v3549, %v3510
    %v3570 = vsel %vm369, %v3551, %v3516
    %v3571 = vsel %vm369, %v3553, %v3520
    %v3572 = vsel %vm369, %v3555, %v3526
    %v3573 = vsel %vm369, %v3557, %v3530
    %3582 = vrot.lane.b32.xlu0 %v3498, 64
    %v3583 = vpop.permute.xlu0 %3582
    %3584 = vrot.lane.b32.xlu0 %v3502, 64
    %v3585 = vpop.permute.xlu0 %3584
    %3586 = vrot.lane.b32.xlu0 %v3508, 64
    %v3587 = vpop.permute.xlu0 %3586
    %3588 = vrot.lane.b32.xlu0 %v3512, 64
    %v3589 = vpop.permute.xlu0 %3588
    %3590 = vrot.lane.b32.xlu0 %v3518, 64
    %v3591 = vpop.permute.xlu0 %3590
    %3592 = vrot.lane.b32.xlu0 %v3522, 64
    %v3593 = vpop.permute.xlu0 %3592
    %3594 = vrot.lane.b32.xlu0 %v3528, 64
    %v3595 = vpop.permute.xlu0 %3594
    %3596 = vrot.lane.b32.xlu0 %v3532, 64
    %v3597 = vpop.permute.xlu0 %3596
    %v3606 = vsel %vm369, %v3458, %v3583
    %v3607 = vsel %vm369, %v3462, %v3585
    %v3608 = vsel %vm369, %v3468, %v3587
    %v3609 = vsel %vm369, %v3472, %v3589
    %v3610 = vsel %vm369, %v3478, %v3591
    %v3611 = vsel %vm369, %v3482, %v3593
    %v3612 = vsel %vm369, %v3488, %v3595
    %v3613 = vsel %vm369, %v3492, %v3597
    %3622 = vrot.lane.b32.xlu0 %v3496, 64
    %v3623 = vpop.permute.xlu0 %3622
    %3624 = vrot.lane.b32.xlu0 %v3500, 64
    %v3625 = vpop.permute.xlu0 %3624
    %3626 = vrot.lane.b32.xlu0 %v3506, 64
    %v3627 = vpop.permute.xlu0 %3626
    %3628 = vrot.lane.b32.xlu0 %v3510, 64
    %v3629 = vpop.permute.xlu0 %3628
    %3630 = vrot.lane.b32.xlu0 %v3516, 64
    %v3631 = vpop.permute.xlu0 %3630
    %3632 = vrot.lane.b32.xlu0 %v3520, 64
    %v3633 = vpop.permute.xlu0 %3632
    %3634 = vrot.lane.b32.xlu0 %v3526, 64
    %v3635 = vpop.permute.xlu0 %3634
    %3636 = vrot.lane.b32.xlu0 %v3530, 64
    %v3637 = vpop.permute.xlu0 %3636
    %v3646 = vsel %vm369, %v3456, %v3543
    %v3647 = vsel %vm369, %v3460, %v3545
    %v3648 = vsel %vm369, %v3466, %v3547
    %v3649 = vsel %vm369, %v3470, %v3549
    %v3650 = vsel %vm369, %v3476, %v3551
    %v3651 = vsel %vm369, %v3480, %v3553
    %v3652 = vsel %vm369, %v3486, %v3555
    %v3653 = vsel %vm369, %v3490, %v3557
    %v3654 = vsel %vm369, %v3496, %v3623
    %v3655 = vsel %vm369, %v3500, %v3625
    %v3656 = vsel %vm369, %v3506, %v3627
    %v3657 = vsel %vm369, %v3510, %v3629
    %v3658 = vsel %vm369, %v3516, %v3631
    %v3659 = vsel %vm369, %v3520, %v3633
    %v3660 = vsel %vm369, %v3526, %v3635
    %v3661 = vsel %vm369, %v3530, %v3637
    %v3662 = vmul.f32 %v3646, %v3566
    %v3663 = vmul.f32 %v3647, %v3567
    %v3664 = vmul.f32 %v3648, %v3568
    %v3665 = vmul.f32 %v3649, %v3569
    %v3666 = vmul.f32 %v3650, %v3570
    %v3667 = vmul.f32 %v3651, %v3571
    %v3668 = vmul.f32 %v3652, %v3572
    %v3669 = vmul.f32 %v3653, %v3573
    %v3670 = vmul.f32 %v3654, %v3566
    %v3671 = vmul.f32 %v3655, %v3567
    %v3672 = vmul.f32 %v3656, %v3568
    %v3673 = vmul.f32 %v3657, %v3569
    %v3674 = vmul.f32 %v3658, %v3570
    %v3675 = vmul.f32 %v3659, %v3571
    %v3676 = vmul.f32 %v3660, %v3572
    %v3677 = vmul.f32 %v3661, %v3573
    %v3678 = vpack.c.bf16 %v3663, %v3662
    %v3679 = vpack.c.bf16 %v3665, %v3664
    %v3680 = vpack.c.bf16 %v3667, %v3666
    %v3681 = vpack.c.bf16 %v3669, %v3668
    %v3682 = vpack.c.bf16 %v3671, %v3670
    %v3683 = vpack.c.bf16 %v3673, %v3672
    %v3684 = vpack.c.bf16 %v3675, %v3674
    %v3685 = vpack.c.bf16 %v3677, %v3676
    %3686 = vmatprep.subr.bf16.mxu0 0
    %3687 = vmatpush1.bf16.msra.mxu0 %v1474
    %3688 = vmatprep.subr.bf16.mxu0 0
    %3689 = vmatpush1.bf16.msra.mxu0 %v1475
    %3690 = vmatprep.subr.bf16.mxu0 0
    %3691 = vmatpush1.bf16.msra.mxu0 %v1476
    %3692 = vmatprep.subr.bf16.mxu0 0
    %3693 = vmatpush1.bf16.msra.mxu0 %v1477
    %3694 = vmatprep.subr.bf16.mxu0 0
    %3695 = vmatpush1.bf16.msra.mxu0 %v1478
    %3696 = vmatprep.subr.bf16.mxu0 0
    %3697 = vmatpush1.bf16.msra.mxu0 %v1479
    %3698 = vmatprep.subr.bf16.mxu0 0
    %3699 = vmatpush1.bf16.msra.mxu0 %v1480
    %3700 = vmatprep.subr.bf16.mxu0 0
    %3701 = vmatpush1.bf16.msra.mxu0 %v1481
    %3702 = vmatprep.subr.bf16.mxu0 0
    %3703 = vmatpush1.bf16.msra.mxu0 0
    %3704 = vmatprep.subr.bf16.mxu0 0
    %3705 = vmatpush1.bf16.msra.mxu0 0
    %3706 = vmatprep.subr.bf16.mxu0 0
    %3707 = vmatpush1.bf16.msra.mxu0 0
    %3708 = vmatprep.subr.bf16.mxu0 0
    %3709 = vmatpush1.bf16.msra.mxu0 0
    %3710 = vmatprep.subr.bf16.mxu0 0
    %3711 = vmatpush1.bf16.msra.mxu0 0
    %3712 = vmatprep.subr.bf16.mxu0 0
    %3713 = vmatpush1.bf16.msra.mxu0 0
    %3714 = vmatprep.subr.bf16.mxu0 0
    %3715 = vmatpush1.bf16.msra.mxu0 0
    %3716 = vmatprep.subr.bf16.mxu0 0
    %3717 = vmatpush1.bf16.msra.mxu0 0
    %3718 = vmatprep.mubr.bf16.mxu0 0
    %3719 = vmatmul.mubr.bf16.gmra.mrb[0].mxu0 %v3678
    %v3720 = vpop.f32.mrb[0].mxu0
    %v3721 = vadd.f32 0.0, %v3720
    %v3722 = vpop.f32.mrb[0].mxu0
    %v3723 = vpop.f32.mrb[0].mxu0
    %v3724 = vadd.f32 0.0, %v3723
    %v3725 = vpop.f32.mrb[0].mxu0
    %3726 = vmatprep.mubr.bf16.mxu0 0
    %3727 = vmatmul.mubr.bf16.gmra.mrb[0].mxu0 %v3679
    %v3728 = vpop.f32.mrb[0].mxu0
    %v3729 = vadd.f32 0.0, %v3728
    %v3730 = vpop.f32.mrb[0].mxu0
    %v3731 = vpop.f32.mrb[0].mxu0
    %v3732 = vadd.f32 0.0, %v3731
    %v3733 = vpop.f32.mrb[0].mxu0
    %3734 = vmatprep.mubr.bf16.mxu0 0
    %3735 = vmatmul.mubr.bf16.gmra.mrb[0].mxu0 %v3680
    %v3736 = vpop.f32.mrb[0].mxu0
    %v3737 = vadd.f32 0.0, %v3736
    %v3738 = vpop.f32.mrb[0].mxu0
    %v3739 = vpop.f32.mrb[0].mxu0
    %v3740 = vadd.f32 0.0, %v3739
    %v3741 = vpop.f32.mrb[0].mxu0
    %3742 = vmatprep.mubr.bf16.mxu0 0
    %3743 = vmatmul.mubr.bf16.gmra.mrb[0].mxu0 %v3681
    %v3744 = vpop.f32.mrb[0].mxu0
    %v3745 = vadd.f32 0.0, %v3744
    %v3746 = vpop.f32.mrb[0].mxu0
    %v3747 = vpop.f32.mrb[0].mxu0
    %v3748 = vadd.f32 0.0, %v3747
    %v3749 = vpop.f32.mrb[0].mxu0
    %3750 = vmatprep.mubr.bf16.mxu0 0
    %3751 = vmatmul.mubr.bf16.gmra.mrb[0].mxu0 %v3682
    %v3752 = vpop.f32.mrb[0].mxu0
    %v3753 = vadd.f32 0.0, %v3752
    %v3754 = vpop.f32.mrb[0].mxu0
    %v3755 = vpop.f32.mrb[0].mxu0
    %v3756 = vadd.f32 0.0, %v3755
    %v3757 = vpop.f32.mrb[0].mxu0
    %3758 = vmatprep.mubr.bf16.mxu0 0
    %3759 = vmatmul.mubr.bf16.gmra.mrb[0].mxu0 %v3683
    %v3760 = vpop.f32.mrb[0].mxu0
    %v3761 = vadd.f32 0.0, %v3760
    %v3762 = vpop.f32.mrb[0].mxu0
    %v3763 = vpop.f32.mrb[0].mxu0
    %v3764 = vadd.f32 0.0, %v3763
    %v3765 = vpop.f32.mrb[0].mxu0
    %3766 = vmatprep.mubr.bf16.mxu0 0
    %3767 = vmatmul.mubr.bf16.gmra.mrb[0].mxu0 %v3684
    %v3768 = vpop.f32.mrb[0].mxu0
    %v3769 = vadd.f32 0.0, %v3768
    %v3770 = vpop.f32.mrb[0].mxu0
    %v3771 = vpop.f32.mrb[0].mxu0
    %v3772 = vadd.f32 0.0, %v3771
    %v3773 = vpop.f32.mrb[0].mxu0
    %3774 = vmatprep.mubr.bf16.mxu0 0
    %3775 = vmatmul.mubr.bf16.gmra.mrb[0].mxu0 %v3685
    %v3776 = vpop.f32.mrb[0].mxu0
    %v3777 = vadd.f32 0.0, %v3776
    %v3778 = vpop.f32.mrb[0].mxu0
    %v3779 = vpop.f32.mrb[0].mxu0
    %v3780 = vadd.f32 0.0, %v3779
    %v3781 = vpop.f32.mrb[0].mxu0
    %3782 = vdwg.mxu0
    %3799 = vrot.lane.b32.xlu0 %v3721, 124
    %v3800 = vpop.permute.xlu0 %3799
    %3801 = vrot.lane.b32.xlu0 %v3724, 124
    %v3802 = vpop.permute.xlu0 %3801
    %3803 = vrot.lane.b32.xlu0 %v3729, 124
    %v3804 = vpop.permute.xlu0 %3803
    %3805 = vrot.lane.b32.xlu0 %v3732, 124
    %v3806 = vpop.permute.xlu0 %3805
    %3807 = vrot.lane.b32.xlu0 %v3737, 124
    %v3808 = vpop.permute.xlu0 %3807
    %3809 = vrot.lane.b32.xlu0 %v3740, 124
    %v3810 = vpop.permute.xlu0 %3809
    %3811 = vrot.lane.b32.xlu0 %v3745, 124
    %v3812 = vpop.permute.xlu0 %3811
    %3813 = vrot.lane.b32.xlu0 %v3748, 124
    %v3814 = vpop.permute.xlu0 %3813
    %3815 = vrot.lane.b32.xlu0 %v3753, 124
    %v3816 = vpop.permute.xlu0 %3815
    %3817 = vrot.lane.b32.xlu0 %v3756, 124
    %v3818 = vpop.permute.xlu0 %3817
    %3819 = vrot.lane.b32.xlu0 %v3761, 124
    %v3820 = vpop.permute.xlu0 %3819
    %3821 = vrot.lane.b32.xlu0 %v3764, 124
    %v3822 = vpop.permute.xlu0 %3821
    %3823 = vrot.lane.b32.xlu0 %v3769, 124
    %v3824 = vpop.permute.xlu0 %3823
    %3825 = vrot.lane.b32.xlu0 %v3772, 124
    %v3826 = vpop.permute.xlu0 %3825
    %3827 = vrot.lane.b32.xlu0 %v3777, 124
    %v3828 = vpop.permute.xlu0 %3827
    %3829 = vrot.lane.b32.xlu0 %v3780, 124
    %v3830 = vpop.permute.xlu0 %3829
    %v3847 = vmax.f32 %v3721, %v3800
    %v3848 = vmax.f32 %v3724, %v3802
    %v3849 = vmax.f32 %v3729, %v3804
    %v3850 = vmax.f32 %v3732, %v3806
    %v3851 = vmax.f32 %v3737, %v3808
    %v3852 = vmax.f32 %v3740, %v3810
    %v3853 = vmax.f32 %v3745, %v3812
    %v3854 = vmax.f32 %v3748, %v3814
    %v3855 = vmax.f32 %v3753, %v3816
    %v3856 = vmax.f32 %v3756, %v3818
    %v3857 = vmax.f32 %v3761, %v3820
    %v3858 = vmax.f32 %v3764, %v3822
    %v3859 = vmax.f32 %v3769, %v3824
    %v3860 = vmax.f32 %v3772, %v3826
    %v3861 = vmax.f32 %v3777, %v3828
    %v3862 = vmax.f32 %v3780, %v3830
    %v3863 = vsub.f32 %v3721, %v3847
    %v3864 = vsub.f32 %v3724, %v3848
    %v3865 = vsub.f32 %v3729, %v3849
    %v3866 = vsub.f32 %v3732, %v3850
    %v3867 = vsub.f32 %v3737, %v3851
    %v3868 = vsub.f32 %v3740, %v3852
    %v3869 = vsub.f32 %v3745, %v3853
    %v3870 = vsub.f32 %v3748, %v3854
    %v3871 = vsub.f32 %v3753, %v3855
    %v3872 = vsub.f32 %v3756, %v3856
    %v3873 = vsub.f32 %v3761, %v3857
    %v3874 = vsub.f32 %v3764, %v3858
    %v3875 = vsub.f32 %v3769, %v3859
    %v3876 = vsub.f32 %v3772, %v3860
    %v3877 = vsub.f32 %v3777, %v3861
    %v3878 = vsub.f32 %v3780, %v3862
    %v3879 = vmul.f32 %v3863, 1.442695
    %v3880 = vpow.pop %v3879
    %v3881 = vmul.f32 %v3864, 1.442695
    %v3882 = vpow.pop %v3881
    %v3883 = vmul.f32 %v3865, 1.442695
    %v3884 = vpow.pop %v3883
    %v3885 = vmul.f32 %v3866, 1.442695
    %v3886 = vpow.pop %v3885
    %v3887 = vmul.f32 %v3867, 1.442695
    %v3888 = vpow.pop %v3887
    %v3889 = vmul.f32 %v3868, 1.442695
    %v3890 = vpow.pop %v3889
    %v3891 = vmul.f32 %v3869, 1.442695
    %v3892 = vpow.pop %v3891
    %v3893 = vmul.f32 %v3870, 1.442695
    %v3894 = vpow.pop %v3893
    %v3895 = vmul.f32 %v3871, 1.442695
    %v3896 = vpow.pop %v3895
    %v3897 = vmul.f32 %v3872, 1.442695
    %v3898 = vpow.pop %v3897
    %v3899 = vmul.f32 %v3873, 1.442695
    %v3900 = vpow.pop %v3899
    %v3901 = vmul.f32 %v3874, 1.442695
    %v3902 = vpow.pop %v3901
    %v3903 = vmul.f32 %v3875, 1.442695
    %v3904 = vpow.pop %v3903
    %v3905 = vmul.f32 %v3876, 1.442695
    %v3906 = vpow.pop %v3905
    %v3907 = vmul.f32 %v3877, 1.442695
    %v3908 = vpow.pop %v3907
    %v3909 = vmul.f32 %v3878, 1.442695
    %v3910 = vpow.pop %v3909
    %3927 = vrot.lane.b32.xlu0 %v3847, 4
    %v3928 = vpop.permute.xlu0 %3927
    %3929 = vrot.lane.b32.xlu0 %v3848, 4
    %v3930 = vpop.permute.xlu0 %3929
    %3931 = vrot.lane.b32.xlu0 %v3849, 4
    %v3932 = vpop.permute.xlu0 %3931
    %3933 = vrot.lane.b32.xlu0 %v3850, 4
    %v3934 = vpop.permute.xlu0 %3933
    %3935 = vrot.lane.b32.xlu0 %v3851, 4
    %v3936 = vpop.permute.xlu0 %3935
    %3937 = vrot.lane.b32.xlu0 %v3852, 4
    %v3938 = vpop.permute.xlu0 %3937
    %3939 = vrot.lane.b32.xlu0 %v3853, 4
    %v3940 = vpop.permute.xlu0 %3939
    %3941 = vrot.lane.b32.xlu0 %v3854, 4
    %v3942 = vpop.permute.xlu0 %3941
    %3943 = vrot.lane.b32.xlu0 %v3855, 4
    %v3944 = vpop.permute.xlu0 %3943
    %3945 = vrot.lane.b32.xlu0 %v3856, 4
    %v3946 = vpop.permute.xlu0 %3945
    %3947 = vrot.lane.b32.xlu0 %v3857, 4
    %v3948 = vpop.permute.xlu0 %3947
    %3949 = vrot.lane.b32.xlu0 %v3858, 4
    %v3950 = vpop.permute.xlu0 %3949
    %3951 = vrot.lane.b32.xlu0 %v3859, 4
    %v3952 = vpop.permute.xlu0 %3951
    %3953 = vrot.lane.b32.xlu0 %v3860, 4
    %v3954 = vpop.permute.xlu0 %3953
    %3955 = vrot.lane.b32.xlu0 %v3861, 4
    %v3956 = vpop.permute.xlu0 %3955
    %3957 = vrot.lane.b32.xlu0 %v3862, 4
    %v3958 = vpop.permute.xlu0 %3957
    %v3975 = vsub.f32 %v3721, %v3928
    %v3976 = vsub.f32 %v3724, %v3930
    %v3977 = vsub.f32 %v3729, %v3932
    %v3978 = vsub.f32 %v3732, %v3934
    %v3979 = vsub.f32 %v3737, %v3936
    %v3980 = vsub.f32 %v3740, %v3938
    %v3981 = vsub.f32 %v3745, %v3940
    %v3982 = vsub.f32 %v3748, %v3942
    %v3983 = vsub.f32 %v3753, %v3944
    %v3984 = vsub.f32 %v3756, %v3946
    %v3985 = vsub.f32 %v3761, %v3948
    %v3986 = vsub.f32 %v3764, %v3950
    %v3987 = vsub.f32 %v3769, %v3952
    %v3988 = vsub.f32 %v3772, %v3954
    %v3989 = vsub.f32 %v3777, %v3956
    %v3990 = vsub.f32 %v3780, %v3958
    %v3991 = vmul.f32 %v3975, 1.442695
    %v3992 = vpow.pop %v3991
    %v3993 = vmul.f32 %v3976, 1.442695
    %v3994 = vpow.pop %v3993
    %v3995 = vmul.f32 %v3977, 1.442695
    %v3996 = vpow.pop %v3995
    %v3997 = vmul.f32 %v3978, 1.442695
    %v3998 = vpow.pop %v3997
    %v3999 = vmul.f32 %v3979, 1.442695
    %v4000 = vpow.pop %v3999
    %v4001 = vmul.f32 %v3980, 1.442695
    %v4002 = vpow.pop %v4001
    %v4003 = vmul.f32 %v3981, 1.442695
    %v4004 = vpow.pop %v4003
    %v4005 = vmul.f32 %v3982, 1.442695
    %v4006 = vpow.pop %v4005
    %v4007 = vmul.f32 %v3983, 1.442695
    %v4008 = vpow.pop %v4007
    %v4009 = vmul.f32 %v3984, 1.442695
    %v4010 = vpow.pop %v4009
    %v4011 = vmul.f32 %v3985, 1.442695
    %v4012 = vpow.pop %v4011
    %v4013 = vmul.f32 %v3986, 1.442695
    %v4014 = vpow.pop %v4013
    %v4015 = vmul.f32 %v3987, 1.442695
    %v4016 = vpow.pop %v4015
    %v4017 = vmul.f32 %v3988, 1.442695
    %v4018 = vpow.pop %v4017
    %v4019 = vmul.f32 %v3989, 1.442695
    %v4020 = vpow.pop %v4019
    %v4021 = vmul.f32 %v3990, 1.442695
    %v4022 = vpow.pop %v4021
    %4039 = vrot.lane.b32.xlu0 %v3992, 124
    %v4040 = vpop.permute.xlu0 %4039
    %4041 = vrot.lane.b32.xlu0 %v3994, 124
    %v4042 = vpop.permute.xlu0 %4041
    %4043 = vrot.lane.b32.xlu0 %v3996, 124
    %v4044 = vpop.permute.xlu0 %4043
    %4045 = vrot.lane.b32.xlu0 %v3998, 124
    %v4046 = vpop.permute.xlu0 %4045
    %4047 = vrot.lane.b32.xlu0 %v4000, 124
    %v4048 = vpop.permute.xlu0 %4047
    %4049 = vrot.lane.b32.xlu0 %v4002, 124
    %v4050 = vpop.permute.xlu0 %4049
    %4051 = vrot.lane.b32.xlu0 %v4004, 124
    %v4052 = vpop.permute.xlu0 %4051
    %4053 = vrot.lane.b32.xlu0 %v4006, 124
    %v4054 = vpop.permute.xlu0 %4053
    %4055 = vrot.lane.b32.xlu0 %v4008, 124
    %v4056 = vpop.permute.xlu0 %4055
    %4057 = vrot.lane.b32.xlu0 %v4010, 124
    %v4058 = vpop.permute.xlu0 %4057
    %4059 = vrot.lane.b32.xlu0 %v4012, 124
    %v4060 = vpop.permute.xlu0 %4059
    %4061 = vrot.lane.b32.xlu0 %v4014, 124
    %v4062 = vpop.permute.xlu0 %4061
    %4063 = vrot.lane.b32.xlu0 %v4016, 124
    %v4064 = vpop.permute.xlu0 %4063
    %4065 = vrot.lane.b32.xlu0 %v4018, 124
    %v4066 = vpop.permute.xlu0 %4065
    %4067 = vrot.lane.b32.xlu0 %v4020, 124
    %v4068 = vpop.permute.xlu0 %4067
    %4069 = vrot.lane.b32.xlu0 %v4022, 124
    %v4070 = vpop.permute.xlu0 %4069
    %v4087 = vadd.f32 %v3880, %v4040
    %v4088 = vadd.f32 %v3882, %v4042
    %v4089 = vadd.f32 %v3884, %v4044
    %v4090 = vadd.f32 %v3886, %v4046
    %v4091 = vadd.f32 %v3888, %v4048
    %v4092 = vadd.f32 %v3890, %v4050
    %v4093 = vadd.f32 %v3892, %v4052
    %v4094 = vadd.f32 %v3894, %v4054
    %v4095 = vadd.f32 %v3896, %v4056
    %v4096 = vadd.f32 %v3898, %v4058
    %v4097 = vadd.f32 %v3900, %v4060
    %v4098 = vadd.f32 %v3902, %v4062
    %v4099 = vadd.f32 %v3904, %v4064
    %v4100 = vadd.f32 %v3906, %v4066
    %v4101 = vadd.f32 %v3908, %v4068
    %v4102 = vadd.f32 %v3910, %v4070
    %v4103 = vrcp.pop %v4087
    %v4104 = vrcp.pop %v4088
    %v4105 = vrcp.pop %v4089
    %v4106 = vrcp.pop %v4090
    %v4107 = vrcp.pop %v4091
    %v4108 = vrcp.pop %v4092
    %v4109 = vrcp.pop %v4093
    %v4110 = vrcp.pop %v4094
    %v4111 = vrcp.pop %v4095
    %v4112 = vrcp.pop %v4096
    %v4113 = vrcp.pop %v4097
    %v4114 = vrcp.pop %v4098
    %v4115 = vrcp.pop %v4099
    %v4116 = vrcp.pop %v4100
    %v4117 = vrcp.pop %v4101
    %v4118 = vrcp.pop %v4102
    %v4119 = vmul.f32 %v3880, %v4103
    %v4120 = vmul.f32 %v3882, %v4104
    %v4121 = vmul.f32 %v3884, %v4105
    %v4122 = vmul.f32 %v3886, %v4106
    %v4123 = vmul.f32 %v3888, %v4107
    %v4124 = vmul.f32 %v3890, %v4108
    %v4125 = vmul.f32 %v3892, %v4109
    %v4126 = vmul.f32 %v3894, %v4110
    %v4127 = vmul.f32 %v3896, %v4111
    %v4128 = vmul.f32 %v3898, %v4112
    %v4129 = vmul.f32 %v3900, %v4113
    %v4130 = vmul.f32 %v3902, %v4114
    %v4131 = vmul.f32 %v3904, %v4115
    %v4132 = vmul.f32 %v3906, %v4116
    %v4133 = vmul.f32 %v3908, %v4117
    %v4134 = vmul.f32 %v3910, %v4118
    %4151 = vrot.lane.b32.xlu0 %v4103, 4
    %v4152 = vpop.permute.xlu0 %4151
    %4153 = vrot.lane.b32.xlu0 %v4104, 4
    %v4154 = vpop.permute.xlu0 %4153
    %4155 = vrot.lane.b32.xlu0 %v4105, 4
    %v4156 = vpop.permute.xlu0 %4155
    %4157 = vrot.lane.b32.xlu0 %v4106, 4
    %v4158 = vpop.permute.xlu0 %4157
    %4159 = vrot.lane.b32.xlu0 %v4107, 4
    %v4160 = vpop.permute.xlu0 %4159
    %4161 = vrot.lane.b32.xlu0 %v4108, 4
    %v4162 = vpop.permute.xlu0 %4161
    %4163 = vrot.lane.b32.xlu0 %v4109, 4
    %v4164 = vpop.permute.xlu0 %4163
    %4165 = vrot.lane.b32.xlu0 %v4110, 4
    %v4166 = vpop.permute.xlu0 %4165
    %4167 = vrot.lane.b32.xlu0 %v4111, 4
    %v4168 = vpop.permute.xlu0 %4167
    %4169 = vrot.lane.b32.xlu0 %v4112, 4
    %v4170 = vpop.permute.xlu0 %4169
    %4171 = vrot.lane.b32.xlu0 %v4113, 4
    %v4172 = vpop.permute.xlu0 %4171
    %4173 = vrot.lane.b32.xlu0 %v4114, 4
    %v4174 = vpop.permute.xlu0 %4173
    %4175 = vrot.lane.b32.xlu0 %v4115, 4
    %v4176 = vpop.permute.xlu0 %4175
    %4177 = vrot.lane.b32.xlu0 %v4116, 4
    %v4178 = vpop.permute.xlu0 %4177
    %4179 = vrot.lane.b32.xlu0 %v4117, 4
    %v4180 = vpop.permute.xlu0 %4179
    %4181 = vrot.lane.b32.xlu0 %v4118, 4
    %v4182 = vpop.permute.xlu0 %4181
    %v4199 = vmul.f32 %v3992, %v4152
    %v4200 = vmul.f32 %v3994, %v4154
    %v4201 = vmul.f32 %v3996, %v4156
    %v4202 = vmul.f32 %v3998, %v4158
    %v4203 = vmul.f32 %v4000, %v4160
    %v4204 = vmul.f32 %v4002, %v4162
    %v4205 = vmul.f32 %v4004, %v4164
    %v4206 = vmul.f32 %v4006, %v4166
    %v4207 = vmul.f32 %v4008, %v4168
    %v4208 = vmul.f32 %v4010, %v4170
    %v4209 = vmul.f32 %v4012, %v4172
    %v4210 = vmul.f32 %v4014, %v4174
    %v4211 = vmul.f32 %v4016, %v4176
    %v4212 = vmul.f32 %v4018, %v4178
    %v4213 = vmul.f32 %v4020, %v4180
    %v4214 = vmul.f32 %v4022, %v4182
    %v4215 = vsel %vm2019, %v4119, %v4199
    %v4216 = vsel %vm2019, %v4120, %v4200
    %v4217 = vsel %vm2019, %v4121, %v4201
    %v4218 = vsel %vm2019, %v4122, %v4202
    %v4219 = vsel %vm2019, %v4123, %v4203
    %v4220 = vsel %vm2019, %v4124, %v4204
    %v4221 = vsel %vm2019, %v4125, %v4205
    %v4222 = vsel %vm2019, %v4126, %v4206
    %v4223 = vsel %vm2019, %v4127, %v4207
    %v4224 = vsel %vm2019, %v4128, %v4208
    %v4225 = vsel %vm2019, %v4129, %v4209
    %v4226 = vsel %vm2019, %v4130, %v4210
    %v4227 = vsel %vm2019, %v4131, %v4211
    %v4228 = vsel %vm2019, %v4132, %v4212
    %v4229 = vsel %vm2019, %v4133, %v4213
    %v4230 = vsel %vm2019, %v4134, %v4214
    %v4231 = vpack.c.bf16 %v4216, %v4215
    %v4232 = vpack.c.bf16 %v4218, %v4217
    %v4233 = vpack.c.bf16 %v4220, %v4219
    %v4234 = vpack.c.bf16 %v4222, %v4221
    %v4235 = vpack.c.bf16 %v4224, %v4223
    %v4236 = vpack.c.bf16 %v4226, %v4225
    %v4237 = vpack.c.bf16 %v4228, %v4227
    %v4238 = vpack.c.bf16 %v4230, %v4229
    %v4240 = vsel %vm2044, %v4231, 0
    %v4243 = vsel %vm2044, %v4232, 0
    %v4246 = vsel %vm2044, %v4233, 0
    %v4249 = vsel %vm2044, %v4234, 0
    %v4252 = vsel %vm2044, %v4235, 0
    %v4255 = vsel %vm2044, %v4236, 0
    %v4258 = vsel %vm2044, %v4237, 0
    %v4261 = vsel %vm2044, %v4238, 0
    %4263 = vmatprep.subr.bf16.mxu0 0
    %4264 = vmatpush1.bf16.msra.mxu0 %v2071
    %4265 = vmatprep.subr.bf16.mxu0 0
    %4266 = vmatpush1.bf16.msra.mxu0 0
    %4267 = vmatprep.subr.bf16.mxu0 0
    %4268 = vmatpush1.bf16.msra.mxu0 0
    %4269 = vmatprep.subr.bf16.mxu0 0
    %4270 = vmatpush1.bf16.msra.mxu0 0
    %4271 = vmatprep.subr.bf16.mxu0 0
    %4272 = vmatpush1.bf16.msra.mxu0 0
    %4273 = vmatprep.subr.bf16.mxu0 0
    %4274 = vmatpush1.bf16.msra.mxu0 0
    %4275 = vmatprep.subr.bf16.mxu0 0
    %4276 = vmatpush1.bf16.msra.mxu0 0
    %4277 = vmatprep.subr.bf16.mxu0 0
    %4278 = vmatpush1.bf16.msra.mxu0 0
    %4279 = vmatprep.subr.bf16.mxu0 0
    %4280 = vmatpush1.bf16.msra.mxu0 0
    %4281 = vmatprep.subr.bf16.mxu0 0
    %4282 = vmatpush1.bf16.msra.mxu0 0
    %4283 = vmatprep.subr.bf16.mxu0 0
    %4284 = vmatpush1.bf16.msra.mxu0 0
    %4285 = vmatprep.subr.bf16.mxu0 0
    %4286 = vmatpush1.bf16.msra.mxu0 0
    %4287 = vmatprep.subr.bf16.mxu0 0
    %4288 = vmatpush1.bf16.msra.mxu0 0
    %4289 = vmatprep.subr.bf16.mxu0 0
    %4290 = vmatpush1.bf16.msra.mxu0 0
    %4291 = vmatprep.subr.bf16.mxu0 0
    %4292 = vmatpush1.bf16.msra.mxu0 0
    %4293 = vmatprep.subr.bf16.mxu0 0
    %4294 = vmatpush1.bf16.msra.mxu0 0
    %4295 = vmatprep.mubr.bf16.mxu0 0
    %4296 = vmatmul.mubr.bf16.gmra.mrb[0].mxu0 %v4240
    %v4297 = vpop.f32.mrb[0].mxu0
    %v4298 = vadd.f32 0.0, %v4297
    %v4299 = vpop.f32.mrb[0].mxu0
    %v4300 = vpop.f32.mrb[0].mxu0
    %v4301 = vadd.f32 0.0, %v4300
    %v4302 = vpop.f32.mrb[0].mxu0
    %4303 = vmatprep.mubr.bf16.mxu0 0
    %4304 = vmatmul.mubr.bf16.gmra.mrb[0].mxu0 %v4243
    %v4305 = vpop.f32.mrb[0].mxu0
    %v4306 = vadd.f32 0.0, %v4305
    %v4307 = vpop.f32.mrb[0].mxu0
    %v4308 = vpop.f32.mrb[0].mxu0
    %v4309 = vadd.f32 0.0, %v4308
    %v4310 = vpop.f32.mrb[0].mxu0
    %4311 = vmatprep.mubr.bf16.mxu0 0
    %4312 = vmatmul.mubr.bf16.gmra.mrb[0].mxu0 %v4246
    %v4313 = vpop.f32.mrb[0].mxu0
    %v4314 = vadd.f32 0.0, %v4313
    %v4315 = vpop.f32.mrb[0].mxu0
    %v4316 = vpop.f32.mrb[0].mxu0
    %v4317 = vadd.f32 0.0, %v4316
    %v4318 = vpop.f32.mrb[0].mxu0
    %4319 = vmatprep.mubr.bf16.mxu0 0
    %4320 = vmatmul.mubr.bf16.gmra.mrb[0].mxu0 %v4249
    %v4321 = vpop.f32.mrb[0].mxu0
    %v4322 = vadd.f32 0.0, %v4321
    %v4323 = vpop.f32.mrb[0].mxu0
    %v4324 = vpop.f32.mrb[0].mxu0
    %v4325 = vadd.f32 0.0, %v4324
    %v4326 = vpop.f32.mrb[0].mxu0
    %4327 = vmatprep.mubr.bf16.mxu0 0
    %4328 = vmatmul.mubr.bf16.gmra.mrb[0].mxu0 %v4252
    %v4329 = vpop.f32.mrb[0].mxu0
    %v4330 = vadd.f32 0.0, %v4329
    %v4331 = vpop.f32.mrb[0].mxu0
    %v4332 = vpop.f32.mrb[0].mxu0
    %v4333 = vadd.f32 0.0, %v4332
    %v4334 = vpop.f32.mrb[0].mxu0
    %4335 = vmatprep.mubr.bf16.mxu0 0
    %4336 = vmatmul.mubr.bf16.gmra.mrb[0].mxu0 %v4255
    %v4337 = vpop.f32.mrb[0].mxu0
    %v4338 = vadd.f32 0.0, %v4337
    %v4339 = vpop.f32.mrb[0].mxu0
    %v4340 = vpop.f32.mrb[0].mxu0
    %v4341 = vadd.f32 0.0, %v4340
    %v4342 = vpop.f32.mrb[0].mxu0
    %4343 = vmatprep.mubr.bf16.mxu0 0
    %4344 = vmatmul.mubr.bf16.gmra.mrb[0].mxu0 %v4258
    %v4345 = vpop.f32.mrb[0].mxu0
    %v4346 = vadd.f32 0.0, %v4345
    %v4347 = vpop.f32.mrb[0].mxu0
    %v4348 = vpop.f32.mrb[0].mxu0
    %v4349 = vadd.f32 0.0, %v4348
    %v4350 = vpop.f32.mrb[0].mxu0
    %4351 = vmatprep.mubr.bf16.mxu0 0
    %4352 = vmatmul.mubr.bf16.gmra.mrb[0].mxu0 %v4261
    %v4353 = vpop.f32.mrb[0].mxu0
    %v4354 = vadd.f32 0.0, %v4353
    %v4355 = vpop.f32.mrb[0].mxu0
    %v4356 = vpop.f32.mrb[0].mxu0
    %v4357 = vadd.f32 0.0, %v4356
    %v4358 = vpop.f32.mrb[0].mxu0
    %4359 = vdwg.mxu0
    %v4360 = vmul.f32 %v4298, %v3606
    %v4361 = vmul.f32 %v4301, %v3607
    %v4362 = vmul.f32 %v4306, %v3608
    %v4363 = vmul.f32 %v4309, %v3609
    %v4364 = vmul.f32 %v4314, %v3610
    %v4365 = vmul.f32 %v4317, %v3611
    %v4366 = vmul.f32 %v4322, %v3612
    %v4367 = vmul.f32 %v4325, %v3613
    %v4368 = vmul.f32 %v4330, %v3606
    %v4369 = vmul.f32 %v4333, %v3607
    %v4370 = vmul.f32 %v4338, %v3608
    %v4371 = vmul.f32 %v4341, %v3609
    %v4372 = vmul.f32 %v4346, %v3610
    %v4373 = vmul.f32 %v4349, %v3611
    %v4374 = vmul.f32 %v4354, %v3612
    %v4375 = vmul.f32 %v4357, %v3613
    %4392 = vrot.lane.b32.xlu0 %v4360, 64
    %v4393 = vpop.permute.xlu0 %4392
    %4394 = vrot.lane.b32.xlu0 %v4361, 64
    %v4395 = vpop.permute.xlu0 %4394
    %4396 = vrot.lane.b32.xlu0 %v4362, 64
    %v4397 = vpop.permute.xlu0 %4396
    %4398 = vrot.lane.b32.xlu0 %v4363, 64
    %v4399 = vpop.permute.xlu0 %4398
    %4400 = vrot.lane.b32.xlu0 %v4364, 64
    %v4401 = vpop.permute.xlu0 %4400
    %4402 = vrot.lane.b32.xlu0 %v4365, 64
    %v4403 = vpop.permute.xlu0 %4402
    %4404 = vrot.lane.b32.xlu0 %v4366, 64
    %v4405 = vpop.permute.xlu0 %4404
    %4406 = vrot.lane.b32.xlu0 %v4367, 64
    %v4407 = vpop.permute.xlu0 %4406
    %4408 = vrot.lane.b32.xlu0 %v4368, 64
    %v4409 = vpop.permute.xlu0 %4408
    %4410 = vrot.lane.b32.xlu0 %v4369, 64
    %v4411 = vpop.permute.xlu0 %4410
    %4412 = vrot.lane.b32.xlu0 %v4370, 64
    %v4413 = vpop.permute.xlu0 %4412
    %4414 = vrot.lane.b32.xlu0 %v4371, 64
    %v4415 = vpop.permute.xlu0 %4414
    %4416 = vrot.lane.b32.xlu0 %v4372, 64
    %v4417 = vpop.permute.xlu0 %4416
    %4418 = vrot.lane.b32.xlu0 %v4373, 64
    %v4419 = vpop.permute.xlu0 %4418
    %4420 = vrot.lane.b32.xlu0 %v4374, 64
    %v4421 = vpop.permute.xlu0 %4420
    %4422 = vrot.lane.b32.xlu0 %v4375, 64
    %v4423 = vpop.permute.xlu0 %4422
    %v4440 = vadd.f32 %v4360, %v4393
    %v4441 = vadd.f32 %v4361, %v4395
    %v4442 = vadd.f32 %v4362, %v4397
    %v4443 = vadd.f32 %v4363, %v4399
    %v4444 = vadd.f32 %v4364, %v4401
    %v4445 = vadd.f32 %v4365, %v4403
    %v4446 = vadd.f32 %v4366, %v4405
    %v4447 = vadd.f32 %v4367, %v4407
    %v4448 = vadd.f32 %v4368, %v4409
    %v4449 = vadd.f32 %v4369, %v4411
    %v4450 = vadd.f32 %v4370, %v4413
    %v4451 = vadd.f32 %v4371, %v4415
    %v4452 = vadd.f32 %v4372, %v4417
    %v4453 = vadd.f32 %v4373, %v4419
    %v4454 = vadd.f32 %v4374, %v4421
    %v4455 = vadd.f32 %v4375, %v4423
    %v4456 = vpack.c.bf16 %v4441, %v4440
    %v4457 = vpack.c.bf16 %v4443, %v4442
    %v4458 = vpack.c.bf16 %v4445, %v4444
    %v4459 = vpack.c.bf16 %v4447, %v4446
    %v4460 = vpack.c.bf16 %v4449, %v4448
    %v4461 = vpack.c.bf16 %v4451, %v4450
    %v4462 = vpack.c.bf16 %v4453, %v4452
    %v4463 = vpack.c.bf16 %v4455, %v4454
    %s4464 = scalar_lea.vmem %s13, 32
    %v4465 = vld [vmem:[%s4464] sm:$0xf]
    %v4466 = vld [vmem:[%s4464 + $0x4] sm:$0xf]
    %v4467 = vld [vmem:[%s4464 + $0x8] sm:$0xf]
    %v4468 = vld [vmem:[%s4464 + $0xc] sm:$0xf]
    %v4469 = vld [vmem:[%s4464 + $0x10] sm:$0xf]
    %v4470 = vld [vmem:[%s4464 + $0x14] sm:$0xf]
    %v4471 = vld [vmem:[%s4464 + $0x18] sm:$0xf]
    %v4472 = vld [vmem:[%s4464 + $0x1c] sm:$0xf]
    %s4473 = scalar_lea.vmem %s14, 1
    %v4474 = vld [vmem:[%s4473] sm:$0x1]
    %v4476 = vlaneseq
    %v4477 = vshrl.u32 %v4476, 7
    %v4478 = vsub.s32 0, %v4477
    %v4479 = vrot.slane %v4474, %v4478
    %v4489 = vunpack.c.l.b16 %v4465
    %v4490 = vunpack.c.l.b16 %v4466
    %v4491 = vunpack.c.l.b16 %v4467
    %v4492 = vunpack.c.l.b16 %v4468
    %v4493 = vunpack.c.l.b16 %v4469
    %v4494 = vunpack.c.l.b16 %v4470
    %v4495 = vunpack.c.l.b16 %v4471
    %v4496 = vunpack.c.l.b16 %v4472
    %v4497 = vpack.c.b16 %v4490, %v4489
    %v4498 = vpack.c.b16 %v4492, %v4491
    %v4499 = vpack.c.b16 %v4494, %v4493
    %v4500 = vpack.c.b16 %v4496, %v4495
    %v4506 = vsel %vm369, %v4456, 0
    %v4509 = vsel %vm369, %v4457, 0
    %v4512 = vsel %vm369, %v4458, 0
    %v4515 = vsel %vm369, %v4459, 0
    %v4518 = vsel %vm369, %v4460, 0
    %v4521 = vsel %vm369, %v4461, 0
    %v4524 = vsel %vm369, %v4462, 0
    %v4527 = vsel %vm369, %v4463, 0
    %4529 = vmatprep.subr.bf16.mxu0 0
    %4530 = vmatpush1.bf16.msra.mxu0 %v4497
    %4531 = vmatprep.subr.bf16.mxu0 0
    %4532 = vmatpush1.bf16.msra.mxu0 %v4498
    %4533 = vmatprep.subr.bf16.mxu0 0
    %4534 = vmatpush1.bf16.msra.mxu0 %v4499
    %4535 = vmatprep.subr.bf16.mxu0 0
    %4536 = vmatpush1.bf16.msra.mxu0 %v4500
    %4537 = vmatprep.subr.bf16.mxu0 0
    %4538 = vmatpush1.bf16.msra.mxu0 0
    %4539 = vmatprep.subr.bf16.mxu0 0
    %4540 = vmatpush1.bf16.msra.mxu0 0
    %4541 = vmatprep.subr.bf16.mxu0 0
    %4542 = vmatpush1.bf16.msra.mxu0 0
    %4543 = vmatprep.subr.bf16.mxu0 0
    %4544 = vmatpush1.bf16.msra.mxu0 0
    %4545 = vmatprep.subr.bf16.mxu0 0
    %4546 = vmatpush1.bf16.msra.mxu0 0
    %4547 = vmatprep.subr.bf16.mxu0 0
    %4548 = vmatpush1.bf16.msra.mxu0 0
    %4549 = vmatprep.subr.bf16.mxu0 0
    %4550 = vmatpush1.bf16.msra.mxu0 0
    %4551 = vmatprep.subr.bf16.mxu0 0
    %4552 = vmatpush1.bf16.msra.mxu0 0
    %4553 = vmatprep.subr.bf16.mxu0 0
    %4554 = vmatpush1.bf16.msra.mxu0 0
    %4555 = vmatprep.subr.bf16.mxu0 0
    %4556 = vmatpush1.bf16.msra.mxu0 0
    %4557 = vmatprep.subr.bf16.mxu0 0
    %4558 = vmatpush1.bf16.msra.mxu0 0
    %4559 = vmatprep.subr.bf16.mxu0 0
    %4560 = vmatpush1.bf16.msra.mxu0 0
    %4561 = vmatprep.mubr.bf16.mxu0 0
    %4562 = vmatmul.mubr.bf16.gmra.mrb[0].mxu0 %v4506
    %v4563 = vpop.f32.mrb[0].mxu0
    %v4564 = vadd.f32 %v4479, %v4563
    %v4565 = vpop.f32.mrb[0].mxu0
    %v4566 = vpop.f32.mrb[0].mxu0
    %v4567 = vadd.f32 %v4479, %v4566
    %v4568 = vpop.f32.mrb[0].mxu0
    %4569 = vmatprep.mubr.bf16.mxu0 0
    %4570 = vmatmul.mubr.bf16.gmra.mrb[0].mxu0 %v4509
    %v4571 = vpop.f32.mrb[0].mxu0
    %v4572 = vadd.f32 %v4479, %v4571
    %v4573 = vpop.f32.mrb[0].mxu0
    %v4574 = vpop.f32.mrb[0].mxu0
    %v4575 = vadd.f32 %v4479, %v4574
    %v4576 = vpop.f32.mrb[0].mxu0
    %4577 = vmatprep.mubr.bf16.mxu0 0
    %4578 = vmatmul.mubr.bf16.gmra.mrb[0].mxu0 %v4512
    %v4579 = vpop.f32.mrb[0].mxu0
    %v4580 = vadd.f32 %v4479, %v4579
    %v4581 = vpop.f32.mrb[0].mxu0
    %v4582 = vpop.f32.mrb[0].mxu0
    %v4583 = vadd.f32 %v4479, %v4582
    %v4584 = vpop.f32.mrb[0].mxu0
    %4585 = vmatprep.mubr.bf16.mxu0 0
    %4586 = vmatmul.mubr.bf16.gmra.mrb[0].mxu0 %v4515
    %v4587 = vpop.f32.mrb[0].mxu0
    %v4588 = vadd.f32 %v4479, %v4587
    %v4589 = vpop.f32.mrb[0].mxu0
    %v4590 = vpop.f32.mrb[0].mxu0
    %v4591 = vadd.f32 %v4479, %v4590
    %v4592 = vpop.f32.mrb[0].mxu0
    %4593 = vmatprep.mubr.bf16.mxu0 0
    %4594 = vmatmul.mubr.bf16.gmra.mrb[0].mxu0 %v4518
    %v4595 = vpop.f32.mrb[0].mxu0
    %v4596 = vadd.f32 %v4479, %v4595
    %v4597 = vpop.f32.mrb[0].mxu0
    %v4598 = vpop.f32.mrb[0].mxu0
    %v4599 = vadd.f32 %v4479, %v4598
    %v4600 = vpop.f32.mrb[0].mxu0
    %4601 = vmatprep.mubr.bf16.mxu0 0
    %4602 = vmatmul.mubr.bf16.gmra.mrb[0].mxu0 %v4521
    %v4603 = vpop.f32.mrb[0].mxu0
    %v4604 = vadd.f32 %v4479, %v4603
    %v4605 = vpop.f32.mrb[0].mxu0
    %v4606 = vpop.f32.mrb[0].mxu0
    %v4607 = vadd.f32 %v4479, %v4606
    %v4608 = vpop.f32.mrb[0].mxu0
    %4609 = vmatprep.mubr.bf16.mxu0 0
    %4610 = vmatmul.mubr.bf16.gmra.mrb[0].mxu0 %v4524
    %v4611 = vpop.f32.mrb[0].mxu0
    %v4612 = vadd.f32 %v4479, %v4611
    %v4613 = vpop.f32.mrb[0].mxu0
    %v4614 = vpop.f32.mrb[0].mxu0
    %v4615 = vadd.f32 %v4479, %v4614
    %v4616 = vpop.f32.mrb[0].mxu0
    %4617 = vmatprep.mubr.bf16.mxu0 0
    %4618 = vmatmul.mubr.bf16.gmra.mrb[0].mxu0 %v4527
    %v4619 = vpop.f32.mrb[0].mxu0
    %v4620 = vadd.f32 %v4479, %v4619
    %v4621 = vpop.f32.mrb[0].mxu0
    %v4622 = vpop.f32.mrb[0].mxu0
    %v4623 = vadd.f32 %v4479, %v4622
    %v4624 = vpop.f32.mrb[0].mxu0
    %4625 = vdwg.mxu0
    %v4626 = vadd.f32 %v3311, %v4564
    %v4627 = vadd.f32 %v3312, %v4567
    %v4628 = vadd.f32 %v3313, %v4572
    %v4629 = vadd.f32 %v3314, %v4575
    %v4630 = vadd.f32 %v3315, %v4580
    %v4631 = vadd.f32 %v3316, %v4583
    %v4632 = vadd.f32 %v3317, %v4588
    %v4633 = vadd.f32 %v3318, %v4591
    %v4634 = vadd.f32 %v3319, %v4596
    %v4635 = vadd.f32 %v3320, %v4599
    %v4636 = vadd.f32 %v3321, %v4604
    %v4637 = vadd.f32 %v3322, %v4607
    %v4638 = vadd.f32 %v3323, %v4612
    %v4639 = vadd.f32 %v3324, %v4615
    %v4640 = vadd.f32 %v3325, %v4620
    %v4641 = vadd.f32 %v3326, %v4623
    %v4642 = vsel %vm369, %v4626, 0.0
    %4643 = vadd.xlane.f32.xlu0 %v4642
    %v4644 = vpop.xlane.xlu0 %4643
    %v4645 = vsel %vm369, %v4627, 0.0
    %4646 = vadd.xlane.f32.xlu0 %v4645
    %v4647 = vpop.xlane.xlu0 %4646
    %v4648 = vsel %vm369, %v4628, 0.0
    %4649 = vadd.xlane.f32.xlu0 %v4648
    %v4650 = vpop.xlane.xlu0 %4649
    %v4651 = vsel %vm369, %v4629, 0.0
    %4652 = vadd.xlane.f32.xlu0 %v4651
    %v4653 = vpop.xlane.xlu0 %4652
    %v4654 = vsel %vm369, %v4630, 0.0
    %4655 = vadd.xlane.f32.xlu0 %v4654
    %v4656 = vpop.xlane.xlu0 %4655
    %v4657 = vsel %vm369, %v4631, 0.0
    %4658 = vadd.xlane.f32.xlu0 %v4657
    %v4659 = vpop.xlane.xlu0 %4658
    %v4660 = vsel %vm369, %v4632, 0.0
    %4661 = vadd.xlane.f32.xlu0 %v4660
    %v4662 = vpop.xlane.xlu0 %4661
    %v4663 = vsel %vm369, %v4633, 0.0
    %4664 = vadd.xlane.f32.xlu0 %v4663
    %v4665 = vpop.xlane.xlu0 %4664
    %v4666 = vsel %vm369, %v4634, 0.0
    %4667 = vadd.xlane.f32.xlu0 %v4666
    %v4668 = vpop.xlane.xlu0 %4667
    %v4669 = vsel %vm369, %v4635, 0.0
    %4670 = vadd.xlane.f32.xlu0 %v4669
    %v4671 = vpop.xlane.xlu0 %4670
    %v4672 = vsel %vm369, %v4636, 0.0
    %4673 = vadd.xlane.f32.xlu0 %v4672
    %v4674 = vpop.xlane.xlu0 %4673
    %v4675 = vsel %vm369, %v4637, 0.0
    %4676 = vadd.xlane.f32.xlu0 %v4675
    %v4677 = vpop.xlane.xlu0 %4676
    %v4678 = vsel %vm369, %v4638, 0.0
    %4679 = vadd.xlane.f32.xlu0 %v4678
    %v4680 = vpop.xlane.xlu0 %4679
    %v4681 = vsel %vm369, %v4639, 0.0
    %4682 = vadd.xlane.f32.xlu0 %v4681
    %v4683 = vpop.xlane.xlu0 %4682
    %v4684 = vsel %vm369, %v4640, 0.0
    %4685 = vadd.xlane.f32.xlu0 %v4684
    %v4686 = vpop.xlane.xlu0 %4685
    %v4687 = vsel %vm369, %v4641, 0.0
    %4688 = vadd.xlane.f32.xlu0 %v4687
    %v4689 = vpop.xlane.xlu0 %4688
    %v4690 = vmul.f32 %v4644, %v2498
    %v4691 = vmul.f32 %v4647, %v2498
    %v4692 = vmul.f32 %v4650, %v2498
    %v4693 = vmul.f32 %v4653, %v2498
    %v4694 = vmul.f32 %v4656, %v2498
    %v4695 = vmul.f32 %v4659, %v2498
    %v4696 = vmul.f32 %v4662, %v2498
    %v4697 = vmul.f32 %v4665, %v2498
    %v4698 = vmul.f32 %v4668, %v2498
    %v4699 = vmul.f32 %v4671, %v2498
    %v4700 = vmul.f32 %v4674, %v2498
    %v4701 = vmul.f32 %v4677, %v2498
    %v4702 = vmul.f32 %v4680, %v2498
    %v4703 = vmul.f32 %v4683, %v2498
    %v4704 = vmul.f32 %v4686, %v2498
    %v4705 = vmul.f32 %v4689, %v2498
    %v4706 = vsub.f32 %v4626, %v4690
    %v4707 = vsub.f32 %v4627, %v4691
    %v4708 = vsub.f32 %v4628, %v4692
    %v4709 = vsub.f32 %v4629, %v4693
    %v4710 = vsub.f32 %v4630, %v4694
    %v4711 = vsub.f32 %v4631, %v4695
    %v4712 = vsub.f32 %v4632, %v4696
    %v4713 = vsub.f32 %v4633, %v4697
    %v4714 = vsub.f32 %v4634, %v4698
    %v4715 = vsub.f32 %v4635, %v4699
    %v4716 = vsub.f32 %v4636, %v4700
    %v4717 = vsub.f32 %v4637, %v4701
    %v4718 = vsub.f32 %v4638, %v4702
    %v4719 = vsub.f32 %v4639, %v4703
    %v4720 = vsub.f32 %v4640, %v4704
    %v4721 = vsub.f32 %v4641, %v4705
    %v4722 = vmul.f32 %v4706, %v4706
    %v4723 = vmul.f32 %v4707, %v4707
    %v4724 = vmul.f32 %v4708, %v4708
    %v4725 = vmul.f32 %v4709, %v4709
    %v4726 = vmul.f32 %v4710, %v4710
    %v4727 = vmul.f32 %v4711, %v4711
    %v4728 = vmul.f32 %v4712, %v4712
    %v4729 = vmul.f32 %v4713, %v4713
    %v4730 = vmul.f32 %v4714, %v4714
    %v4731 = vmul.f32 %v4715, %v4715
    %v4732 = vmul.f32 %v4716, %v4716
    %v4733 = vmul.f32 %v4717, %v4717
    %v4734 = vmul.f32 %v4718, %v4718
    %v4735 = vmul.f32 %v4719, %v4719
    %v4736 = vmul.f32 %v4720, %v4720
    %v4737 = vmul.f32 %v4721, %v4721
    %v4738 = vsel %vm369, %v4722, 0.0
    %4739 = vadd.xlane.f32.xlu0 %v4738
    %v4740 = vpop.xlane.xlu0 %4739
    %v4741 = vsel %vm369, %v4723, 0.0
    %4742 = vadd.xlane.f32.xlu0 %v4741
    %v4743 = vpop.xlane.xlu0 %4742
    %v4744 = vsel %vm369, %v4724, 0.0
    %4745 = vadd.xlane.f32.xlu0 %v4744
    %v4746 = vpop.xlane.xlu0 %4745
    %v4747 = vsel %vm369, %v4725, 0.0
    %4748 = vadd.xlane.f32.xlu0 %v4747
    %v4749 = vpop.xlane.xlu0 %4748
    %v4750 = vsel %vm369, %v4726, 0.0
    %4751 = vadd.xlane.f32.xlu0 %v4750
    %v4752 = vpop.xlane.xlu0 %4751
    %v4753 = vsel %vm369, %v4727, 0.0
    %4754 = vadd.xlane.f32.xlu0 %v4753
    %v4755 = vpop.xlane.xlu0 %4754
    %v4756 = vsel %vm369, %v4728, 0.0
    %4757 = vadd.xlane.f32.xlu0 %v4756
    %v4758 = vpop.xlane.xlu0 %4757
    %v4759 = vsel %vm369, %v4729, 0.0
    %4760 = vadd.xlane.f32.xlu0 %v4759
    %v4761 = vpop.xlane.xlu0 %4760
    %v4762 = vsel %vm369, %v4730, 0.0
    %4763 = vadd.xlane.f32.xlu0 %v4762
    %v4764 = vpop.xlane.xlu0 %4763
    %v4765 = vsel %vm369, %v4731, 0.0
    %4766 = vadd.xlane.f32.xlu0 %v4765
    %v4767 = vpop.xlane.xlu0 %4766
    %v4768 = vsel %vm369, %v4732, 0.0
    %4769 = vadd.xlane.f32.xlu0 %v4768
    %v4770 = vpop.xlane.xlu0 %4769
    %v4771 = vsel %vm369, %v4733, 0.0
    %4772 = vadd.xlane.f32.xlu0 %v4771
    %v4773 = vpop.xlane.xlu0 %4772
    %v4774 = vsel %vm369, %v4734, 0.0
    %4775 = vadd.xlane.f32.xlu0 %v4774
    %v4776 = vpop.xlane.xlu0 %4775
    %v4777 = vsel %vm369, %v4735, 0.0
    %4778 = vadd.xlane.f32.xlu0 %v4777
    %v4779 = vpop.xlane.xlu0 %4778
    %v4780 = vsel %vm369, %v4736, 0.0
    %4781 = vadd.xlane.f32.xlu0 %v4780
    %v4782 = vpop.xlane.xlu0 %4781
    %v4783 = vsel %vm369, %v4737, 0.0
    %4784 = vadd.xlane.f32.xlu0 %v4783
    %v4785 = vpop.xlane.xlu0 %4784
    %v4786 = vmul.f32 %v4740, %v2498
    %v4787 = vmul.f32 %v4743, %v2498
    %v4788 = vmul.f32 %v4746, %v2498
    %v4789 = vmul.f32 %v4749, %v2498
    %v4790 = vmul.f32 %v4752, %v2498
    %v4791 = vmul.f32 %v4755, %v2498
    %v4792 = vmul.f32 %v4758, %v2498
    %v4793 = vmul.f32 %v4761, %v2498
    %v4794 = vmul.f32 %v4764, %v2498
    %v4795 = vmul.f32 %v4767, %v2498
    %v4796 = vmul.f32 %v4770, %v2498
    %v4797 = vmul.f32 %v4773, %v2498
    %v4798 = vmul.f32 %v4776, %v2498
    %v4799 = vmul.f32 %v4779, %v2498
    %v4800 = vmul.f32 %v4782, %v2498
    %v4801 = vmul.f32 %v4785, %v2498
    %v4802 = vadd.f32 %v4786, 1e-05
    %v4803 = vadd.f32 %v4787, 1e-05
    %v4804 = vadd.f32 %v4788, 1e-05
    %v4805 = vadd.f32 %v4789, 1e-05
    %v4806 = vadd.f32 %v4790, 1e-05
    %v4807 = vadd.f32 %v4791, 1e-05
    %v4808 = vadd.f32 %v4792, 1e-05
    %v4809 = vadd.f32 %v4793, 1e-05
    %v4810 = vadd.f32 %v4794, 1e-05
    %v4811 = vadd.f32 %v4795, 1e-05
    %v4812 = vadd.f32 %v4796, 1e-05
    %v4813 = vadd.f32 %v4797, 1e-05
    %v4814 = vadd.f32 %v4798, 1e-05
    %v4815 = vadd.f32 %v4799, 1e-05
    %v4816 = vadd.f32 %v4800, 1e-05
    %v4817 = vadd.f32 %v4801, 1e-05
    %v4818 = vrsqrt.pop %v4802
    %v4819 = vrsqrt.pop %v4803
    %v4820 = vrsqrt.pop %v4804
    %v4821 = vrsqrt.pop %v4805
    %v4822 = vrsqrt.pop %v4806
    %v4823 = vrsqrt.pop %v4807
    %v4824 = vrsqrt.pop %v4808
    %v4825 = vrsqrt.pop %v4809
    %v4826 = vrsqrt.pop %v4810
    %v4827 = vrsqrt.pop %v4811
    %v4828 = vrsqrt.pop %v4812
    %v4829 = vrsqrt.pop %v4813
    %v4830 = vrsqrt.pop %v4814
    %v4831 = vrsqrt.pop %v4815
    %v4832 = vrsqrt.pop %v4816
    %v4833 = vrsqrt.pop %v4817
    %v4834 = vmul.f32 %v4706, %v4818
    %v4835 = vmul.f32 %v4707, %v4819
    %v4836 = vmul.f32 %v4708, %v4820
    %v4837 = vmul.f32 %v4709, %v4821
    %v4838 = vmul.f32 %v4710, %v4822
    %v4839 = vmul.f32 %v4711, %v4823
    %v4840 = vmul.f32 %v4712, %v4824
    %v4841 = vmul.f32 %v4713, %v4825
    %v4842 = vmul.f32 %v4714, %v4826
    %v4843 = vmul.f32 %v4715, %v4827
    %v4844 = vmul.f32 %v4716, %v4828
    %v4845 = vmul.f32 %v4717, %v4829
    %v4846 = vmul.f32 %v4718, %v4830
    %v4847 = vmul.f32 %v4719, %v4831
    %v4848 = vmul.f32 %v4720, %v4832
    %v4849 = vmul.f32 %v4721, %v4833
    %s4850 = scalar_lea.vmem %s15, 1
    %v4851 = vld [vmem:[%s4850] sm:$0x1]
    %v4853 = vlaneseq
    %v4854 = vshrl.u32 %v4853, 7
    %v4855 = vsub.s32 0, %v4854
    %v4856 = vrot.slane %v4851, %v4855
    %v4858 = vmul.f32 %v4834, %v4856
    %v4859 = vmul.f32 %v4835, %v4856
    %v4860 = vmul.f32 %v4836, %v4856
    %v4861 = vmul.f32 %v4837, %v4856
    %v4862 = vmul.f32 %v4838, %v4856
    %v4863 = vmul.f32 %v4839, %v4856
    %v4864 = vmul.f32 %v4840, %v4856
    %v4865 = vmul.f32 %v4841, %v4856
    %v4866 = vmul.f32 %v4842, %v4856
    %v4867 = vmul.f32 %v4843, %v4856
    %v4868 = vmul.f32 %v4844, %v4856
    %v4869 = vmul.f32 %v4845, %v4856
    %v4870 = vmul.f32 %v4846, %v4856
    %v4871 = vmul.f32 %v4847, %v4856
    %v4872 = vmul.f32 %v4848, %v4856
    %v4873 = vmul.f32 %v4849, %v4856
    %s4874 = scalar_lea.vmem %s16, 1
    %v4875 = vld [vmem:[%s4874] sm:$0x1]
    %v4877 = vlaneseq
    %v4878 = vshrl.u32 %v4877, 7
    %v4879 = vsub.s32 0, %v4878
    %v4880 = vrot.slane %v4875, %v4879
    %v4882 = vadd.f32 %v4858, %v4880
    %v4883 = vadd.f32 %v4859, %v4880
    %v4884 = vadd.f32 %v4860, %v4880
    %v4885 = vadd.f32 %v4861, %v4880
    %v4886 = vadd.f32 %v4862, %v4880
    %v4887 = vadd.f32 %v4863, %v4880
    %v4888 = vadd.f32 %v4864, %v4880
    %v4889 = vadd.f32 %v4865, %v4880
    %v4890 = vadd.f32 %v4866, %v4880
    %v4891 = vadd.f32 %v4867, %v4880
    %v4892 = vadd.f32 %v4868, %v4880
    %v4893 = vadd.f32 %v4869, %v4880
    %v4894 = vadd.f32 %v4870, %v4880
    %v4895 = vadd.f32 %v4871, %v4880
    %v4896 = vadd.f32 %v4872, %v4880
    %v4897 = vadd.f32 %v4873, %v4880
    %v4898 = vpack.c.bf16 %v4883, %v4882
    %v4899 = vpack.c.bf16 %v4885, %v4884
    %v4900 = vpack.c.bf16 %v4887, %v4886
    %v4901 = vpack.c.bf16 %v4889, %v4888
    %v4902 = vpack.c.bf16 %v4891, %v4890
    %v4903 = vpack.c.bf16 %v4893, %v4892
    %v4904 = vpack.c.bf16 %v4895, %v4894
    %v4905 = vpack.c.bf16 %v4897, %v4896
    %s4906 = scalar_lea.vmem %s17, 32
    %v4907 = vld [vmem:[%s4906] sm:$0xf]
    %v4908 = vld [vmem:[%s4906 + $0x4] sm:$0xf]
    %v4909 = vld [vmem:[%s4906 + $0x8] sm:$0xf]
    %v4910 = vld [vmem:[%s4906 + $0xc] sm:$0xf]
    %v4911 = vld [vmem:[%s4906 + $0x10] sm:$0xf]
    %v4912 = vld [vmem:[%s4906 + $0x14] sm:$0xf]
    %v4913 = vld [vmem:[%s4906 + $0x18] sm:$0xf]
    %v4914 = vld [vmem:[%s4906 + $0x1c] sm:$0xf]
    %s4915 = scalar_lea.vmem %s18, 1
    %v4916 = vld [vmem:[%s4915] sm:$0x1]
    %v4918 = vlaneseq
    %v4919 = vshrl.u32 %v4918, 7
    %v4920 = vsub.s32 0, %v4919
    %v4921 = vrot.slane %v4916, %v4920
    %v4931 = vunpack.c.l.b16 %v4907
    %v4932 = vunpack.c.l.b16 %v4908
    %v4933 = vunpack.c.l.b16 %v4909
    %v4934 = vunpack.c.l.b16 %v4910
    %v4935 = vunpack.c.l.b16 %v4911
    %v4936 = vunpack.c.l.b16 %v4912
    %v4937 = vunpack.c.l.b16 %v4913
    %v4938 = vunpack.c.l.b16 %v4914
    %v4939 = vpack.c.b16 %v4932, %v4931
    %v4940 = vpack.c.b16 %v4934, %v4933
    %v4941 = vpack.c.b16 %v4936, %v4935
    %v4942 = vpack.c.b16 %v4938, %v4937
    %v4948 = vsel %vm369, %v4898, 0
    %v4951 = vsel %vm369, %v4899, 0
    %v4954 = vsel %vm369, %v4900, 0
    %v4957 = vsel %vm369, %v4901, 0
    %v4960 = vsel %vm369, %v4902, 0
    %v4963 = vsel %vm369, %v4903, 0
    %v4966 = vsel %vm369, %v4904, 0
    %v4969 = vsel %vm369, %v4905, 0
    %4971 = vmatprep.subr.bf16.mxu0 0
    %4972 = vmatpush1.bf16.msra.mxu0 %v4939
    %4973 = vmatprep.subr.bf16.mxu0 0
    %4974 = vmatpush1.bf16.msra.mxu0 %v4940
    %4975 = vmatprep.subr.bf16.mxu0 0
    %4976 = vmatpush1.bf16.msra.mxu0 %v4941
    %4977 = vmatprep.subr.bf16.mxu0 0
    %4978 = vmatpush1.bf16.msra.mxu0 %v4942
    %4979 = vmatprep.subr.bf16.mxu0 0
    %4980 = vmatpush1.bf16.msra.mxu0 0
    %4981 = vmatprep.subr.bf16.mxu0 0
    %4982 = vmatpush1.bf16.msra.mxu0 0
    %4983 = vmatprep.subr.bf16.mxu0 0
    %4984 = vmatpush1.bf16.msra.mxu0 0
    %4985 = vmatprep.subr.bf16.mxu0 0
    %4986 = vmatpush1.bf16.msra.mxu0 0
    %4987 = vmatprep.subr.bf16.mxu0 0
    %4988 = vmatpush1.bf16.msra.mxu0 0
    %4989 = vmatprep.subr.bf16.mxu0 0
    %4990 = vmatpush1.bf16.msra.mxu0 0
    %4991 = vmatprep.subr.bf16.mxu0 0
    %4992 = vmatpush1.bf16.msra.mxu0 0
    %4993 = vmatprep.subr.bf16.mxu0 0
    %4994 = vmatpush1.bf16.msra.mxu0 0
    %4995 = vmatprep.subr.bf16.mxu0 0
    %4996 = vmatpush1.bf16.msra.mxu0 0
    %4997 = vmatprep.subr.bf16.mxu0 0
    %4998 = vmatpush1.bf16.msra.mxu0 0
    %4999 = vmatprep.subr.bf16.mxu0 0
    %5000 = vmatpush1.bf16.msra.mxu0 0
    %5001 = vmatprep.subr.bf16.mxu0 0
    %5002 = vmatpush1.bf16.msra.mxu0 0
    %5003 = vmatprep.mubr.bf16.mxu0 0
    %5004 = vmatmul.mubr.bf16.gmra.mrb[0].mxu0 %v4948
    %v5005 = vpop.f32.mrb[0].mxu0
    %v5006 = vadd.f32 %v4921, %v5005
    %v5007 = vpop.f32.mrb[0].mxu0
    %v5008 = vpop.f32.mrb[0].mxu0
    %v5009 = vadd.f32 %v4921, %v5008
    %v5010 = vpop.f32.mrb[0].mxu0
    %5011 = vmatprep.mubr.bf16.mxu0 0
    %5012 = vmatmul.mubr.bf16.gmra.mrb[0].mxu0 %v4951
    %v5013 = vpop.f32.mrb[0].mxu0
    %v5014 = vadd.f32 %v4921, %v5013
    %v5015 = vpop.f32.mrb[0].mxu0
    %v5016 = vpop.f32.mrb[0].mxu0
    %v5017 = vadd.f32 %v4921, %v5016
    %v5018 = vpop.f32.mrb[0].mxu0
    %5019 = vmatprep.mubr.bf16.mxu0 0
    %5020 = vmatmul.mubr.bf16.gmra.mrb[0].mxu0 %v4954
    %v5021 = vpop.f32.mrb[0].mxu0
    %v5022 = vadd.f32 %v4921, %v5021
    %v5023 = vpop.f32.mrb[0].mxu0
    %v5024 = vpop.f32.mrb[0].mxu0
    %v5025 = vadd.f32 %v4921, %v5024
    %v5026 = vpop.f32.mrb[0].mxu0
    %5027 = vmatprep.mubr.bf16.mxu0 0
    %5028 = vmatmul.mubr.bf16.gmra.mrb[0].mxu0 %v4957
    %v5029 = vpop.f32.mrb[0].mxu0
    %v5030 = vadd.f32 %v4921, %v5029
    %v5031 = vpop.f32.mrb[0].mxu0
    %v5032 = vpop.f32.mrb[0].mxu0
    %v5033 = vadd.f32 %v4921, %v5032
    %v5034 = vpop.f32.mrb[0].mxu0
    %5035 = vmatprep.mubr.bf16.mxu0 0
    %5036 = vmatmul.mubr.bf16.gmra.mrb[0].mxu0 %v4960
    %v5037 = vpop.f32.mrb[0].mxu0
    %v5038 = vadd.f32 %v4921, %v5037
    %v5039 = vpop.f32.mrb[0].mxu0
    %v5040 = vpop.f32.mrb[0].mxu0
    %v5041 = vadd.f32 %v4921, %v5040
    %v5042 = vpop.f32.mrb[0].mxu0
    %5043 = vmatprep.mubr.bf16.mxu0 0
    %5044 = vmatmul.mubr.bf16.gmra.mrb[0].mxu0 %v4963
    %v5045 = vpop.f32.mrb[0].mxu0
    %v5046 = vadd.f32 %v4921, %v5045
    %v5047 = vpop.f32.mrb[0].mxu0
    %v5048 = vpop.f32.mrb[0].mxu0
    %v5049 = vadd.f32 %v4921, %v5048
    %v5050 = vpop.f32.mrb[0].mxu0
    %5051 = vmatprep.mubr.bf16.mxu0 0
    %5052 = vmatmul.mubr.bf16.gmra.mrb[0].mxu0 %v4966
    %v5053 = vpop.f32.mrb[0].mxu0
    %v5054 = vadd.f32 %v4921, %v5053
    %v5055 = vpop.f32.mrb[0].mxu0
    %v5056 = vpop.f32.mrb[0].mxu0
    %v5057 = vadd.f32 %v4921, %v5056
    %v5058 = vpop.f32.mrb[0].mxu0
    %5059 = vmatprep.mubr.bf16.mxu0 0
    %5060 = vmatmul.mubr.bf16.gmra.mrb[0].mxu0 %v4969
    %v5061 = vpop.f32.mrb[0].mxu0
    %v5062 = vadd.f32 %v4921, %v5061
    %v5063 = vpop.f32.mrb[0].mxu0
    %v5064 = vpop.f32.mrb[0].mxu0
    %v5065 = vadd.f32 %v4921, %v5064
    %v5066 = vpop.f32.mrb[0].mxu0
    %5067 = vdwg.mxu0
    %v5068 = vmax.f32 %v5006, 0.0
    %v5069 = vmax.f32 %v5009, 0.0
    %v5070 = vmax.f32 %v5014, 0.0
    %v5071 = vmax.f32 %v5017, 0.0
    %v5072 = vmax.f32 %v5022, 0.0
    %v5073 = vmax.f32 %v5025, 0.0
    %v5074 = vmax.f32 %v5030, 0.0
    %v5075 = vmax.f32 %v5033, 0.0
    %v5076 = vmax.f32 %v5038, 0.0
    %v5077 = vmax.f32 %v5041, 0.0
    %v5078 = vmax.f32 %v5046, 0.0
    %v5079 = vmax.f32 %v5049, 0.0
    %v5080 = vmax.f32 %v5054, 0.0
    %v5081 = vmax.f32 %v5057, 0.0
    %v5082 = vmax.f32 %v5062, 0.0
    %v5083 = vmax.f32 %v5065, 0.0
    %v5084 = vpack.c.bf16 %v5069, %v5068
    %v5085 = vpack.c.bf16 %v5071, %v5070
    %v5086 = vpack.c.bf16 %v5073, %v5072
    %v5087 = vpack.c.bf16 %v5075, %v5074
    %v5088 = vpack.c.bf16 %v5077, %v5076
    %v5089 = vpack.c.bf16 %v5079, %v5078
    %v5090 = vpack.c.bf16 %v5081, %v5080
    %v5091 = vpack.c.bf16 %v5083, %v5082
    %s5092 = scalar_lea.vmem %s19, 32
    %v5093 = vld [vmem:[%s5092] sm:$0xf]
    %v5094 = vld [vmem:[%s5092 + $0x4] sm:$0xf]
    %v5095 = vld [vmem:[%s5092 + $0x8] sm:$0xf]
    %v5096 = vld [vmem:[%s5092 + $0xc] sm:$0xf]
    %v5097 = vld [vmem:[%s5092 + $0x10] sm:$0xf]
    %v5098 = vld [vmem:[%s5092 + $0x14] sm:$0xf]
    %v5099 = vld [vmem:[%s5092 + $0x18] sm:$0xf]
    %v5100 = vld [vmem:[%s5092 + $0x1c] sm:$0xf]
    %s5101 = scalar_lea.vmem %s20, 1
    %v5102 = vld [vmem:[%s5101] sm:$0x1]
    %v5104 = vlaneseq
    %v5105 = vshrl.u32 %v5104, 7
    %v5106 = vsub.s32 0, %v5105
    %v5107 = vrot.slane %v5102, %v5106
    %v5117 = vunpack.c.l.b16 %v5093
    %v5118 = vunpack.c.l.b16 %v5094
    %v5119 = vunpack.c.l.b16 %v5095
    %v5120 = vunpack.c.l.b16 %v5096
    %v5121 = vunpack.c.l.b16 %v5097
    %v5122 = vunpack.c.l.b16 %v5098
    %v5123 = vunpack.c.l.b16 %v5099
    %v5124 = vunpack.c.l.b16 %v5100
    %v5125 = vpack.c.b16 %v5118, %v5117
    %v5126 = vpack.c.b16 %v5120, %v5119
    %v5127 = vpack.c.b16 %v5122, %v5121
    %v5128 = vpack.c.b16 %v5124, %v5123
    %v5134 = vsel %vm369, %v5084, 0
    %v5137 = vsel %vm369, %v5085, 0
    %v5140 = vsel %vm369, %v5086, 0
    %v5143 = vsel %vm369, %v5087, 0
    %v5146 = vsel %vm369, %v5088, 0
    %v5149 = vsel %vm369, %v5089, 0
    %v5152 = vsel %vm369, %v5090, 0
    %v5155 = vsel %vm369, %v5091, 0
    %5157 = vmatprep.subr.bf16.mxu0 0
    %5158 = vmatpush1.bf16.msra.mxu0 %v5125
    %5159 = vmatprep.subr.bf16.mxu0 0
    %5160 = vmatpush1.bf16.msra.mxu0 %v5126
    %5161 = vmatprep.subr.bf16.mxu0 0
    %5162 = vmatpush1.bf16.msra.mxu0 %v5127
    %5163 = vmatprep.subr.bf16.mxu0 0
    %5164 = vmatpush1.bf16.msra.mxu0 %v5128
    %5165 = vmatprep.subr.bf16.mxu0 0
    %5166 = vmatpush1.bf16.msra.mxu0 0
    %5167 = vmatprep.subr.bf16.mxu0 0
    %5168 = vmatpush1.bf16.msra.mxu0 0
    %5169 = vmatprep.subr.bf16.mxu0 0
    %5170 = vmatpush1.bf16.msra.mxu0 0
    %5171 = vmatprep.subr.bf16.mxu0 0
    %5172 = vmatpush1.bf16.msra.mxu0 0
    %5173 = vmatprep.subr.bf16.mxu0 0
    %5174 = vmatpush1.bf16.msra.mxu0 0
    %5175 = vmatprep.subr.bf16.mxu0 0
    %5176 = vmatpush1.bf16.msra.mxu0 0
    %5177 = vmatprep.subr.bf16.mxu0 0
    %5178 = vmatpush1.bf16.msra.mxu0 0
    %5179 = vmatprep.subr.bf16.mxu0 0
    %5180 = vmatpush1.bf16.msra.mxu0 0
    %5181 = vmatprep.subr.bf16.mxu0 0
    %5182 = vmatpush1.bf16.msra.mxu0 0
    %5183 = vmatprep.subr.bf16.mxu0 0
    %5184 = vmatpush1.bf16.msra.mxu0 0
    %5185 = vmatprep.subr.bf16.mxu0 0
    %5186 = vmatpush1.bf16.msra.mxu0 0
    %5187 = vmatprep.subr.bf16.mxu0 0
    %5188 = vmatpush1.bf16.msra.mxu0 0
    %5189 = vmatprep.mubr.bf16.mxu0 0
    %5190 = vmatmul.mubr.bf16.gmra.mrb[0].mxu0 %v5134
    %v5191 = vpop.f32.mrb[0].mxu0
    %v5192 = vadd.f32 %v5107, %v5191
    %v5193 = vpop.f32.mrb[0].mxu0
    %v5194 = vpop.f32.mrb[0].mxu0
    %v5195 = vadd.f32 %v5107, %v5194
    %v5196 = vpop.f32.mrb[0].mxu0
    %5197 = vmatprep.mubr.bf16.mxu0 0
    %5198 = vmatmul.mubr.bf16.gmra.mrb[0].mxu0 %v5137
    %v5199 = vpop.f32.mrb[0].mxu0
    %v5200 = vadd.f32 %v5107, %v5199
    %v5201 = vpop.f32.mrb[0].mxu0
    %v5202 = vpop.f32.mrb[0].mxu0
    %v5203 = vadd.f32 %v5107, %v5202
    %v5204 = vpop.f32.mrb[0].mxu0
    %5205 = vmatprep.mubr.bf16.mxu0 0
    %5206 = vmatmul.mubr.bf16.gmra.mrb[0].mxu0 %v5140
    %v5207 = vpop.f32.mrb[0].mxu0
    %v5208 = vadd.f32 %v5107, %v5207
    %v5209 = vpop.f32.mrb[0].mxu0
    %v5210 = vpop.f32.mrb[0].mxu0
    %v5211 = vadd.f32 %v5107, %v5210
    %v5212 = vpop.f32.mrb[0].mxu0
    %5213 = vmatprep.mubr.bf16.mxu0 0
    %5214 = vmatmul.mubr.bf16.gmra.mrb[0].mxu0 %v5143
    %v5215 = vpop.f32.mrb[0].mxu0
    %v5216 = vadd.f32 %v5107, %v5215
    %v5217 = vpop.f32.mrb[0].mxu0
    %v5218 = vpop.f32.mrb[0].mxu0
    %v5219 = vadd.f32 %v5107, %v5218
    %v5220 = vpop.f32.mrb[0].mxu0
    %5221 = vmatprep.mubr.bf16.mxu0 0
    %5222 = vmatmul.mubr.bf16.gmra.mrb[0].mxu0 %v5146
    %v5223 = vpop.f32.mrb[0].mxu0
    %v5224 = vadd.f32 %v5107, %v5223
    %v5225 = vpop.f32.mrb[0].mxu0
    %v5226 = vpop.f32.mrb[0].mxu0
    %v5227 = vadd.f32 %v5107, %v5226
    %v5228 = vpop.f32.mrb[0].mxu0
    %5229 = vmatprep.mubr.bf16.mxu0 0
    %5230 = vmatmul.mubr.bf16.gmra.mrb[0].mxu0 %v5149
    %v5231 = vpop.f32.mrb[0].mxu0
    %v5232 = vadd.f32 %v5107, %v5231
    %v5233 = vpop.f32.mrb[0].mxu0
    %v5234 = vpop.f32.mrb[0].mxu0
    %v5235 = vadd.f32 %v5107, %v5234
    %v5236 = vpop.f32.mrb[0].mxu0
    %5237 = vmatprep.mubr.bf16.mxu0 0
    %5238 = vmatmul.mubr.bf16.gmra.mrb[0].mxu0 %v5152
    %v5239 = vpop.f32.mrb[0].mxu0
    %v5240 = vadd.f32 %v5107, %v5239
    %v5241 = vpop.f32.mrb[0].mxu0
    %v5242 = vpop.f32.mrb[0].mxu0
    %v5243 = vadd.f32 %v5107, %v5242
    %v5244 = vpop.f32.mrb[0].mxu0
    %5245 = vmatprep.mubr.bf16.mxu0 0
    %5246 = vmatmul.mubr.bf16.gmra.mrb[0].mxu0 %v5155
    %v5247 = vpop.f32.mrb[0].mxu0
    %v5248 = vadd.f32 %v5107, %v5247
    %v5249 = vpop.f32.mrb[0].mxu0
    %v5250 = vpop.f32.mrb[0].mxu0
    %v5251 = vadd.f32 %v5107, %v5250
    %v5252 = vpop.f32.mrb[0].mxu0
    %5253 = vdwg.mxu0
    %v5254 = vadd.f32 %v4882, %v5192
    %v5255 = vadd.f32 %v4883, %v5195
    %v5256 = vadd.f32 %v4884, %v5200
    %v5257 = vadd.f32 %v4885, %v5203
    %v5258 = vadd.f32 %v4886, %v5208
    %v5259 = vadd.f32 %v4887, %v5211
    %v5260 = vadd.f32 %v4888, %v5216
    %v5261 = vadd.f32 %v4889, %v5219
    %v5262 = vadd.f32 %v4890, %v5224
    %v5263 = vadd.f32 %v4891, %v5227
    %v5264 = vadd.f32 %v4892, %v5232
    %v5265 = vadd.f32 %v4893, %v5235
    %v5266 = vadd.f32 %v4894, %v5240
    %v5267 = vadd.f32 %v4895, %v5243
    %v5268 = vadd.f32 %v4896, %v5248
    %v5269 = vadd.f32 %v4897, %v5251
    %v5270 = vsel %vm369, %v5254, 0.0
    %5271 = vadd.xlane.f32.xlu0 %v5270
    %v5272 = vpop.xlane.xlu0 %5271
    %v5273 = vsel %vm369, %v5255, 0.0
    %5274 = vadd.xlane.f32.xlu0 %v5273
    %v5275 = vpop.xlane.xlu0 %5274
    %v5276 = vsel %vm369, %v5256, 0.0
    %5277 = vadd.xlane.f32.xlu0 %v5276
    %v5278 = vpop.xlane.xlu0 %5277
    %v5279 = vsel %vm369, %v5257, 0.0
    %5280 = vadd.xlane.f32.xlu0 %v5279
    %v5281 = vpop.xlane.xlu0 %5280
    %v5282 = vsel %vm369, %v5258, 0.0
    %5283 = vadd.xlane.f32.xlu0 %v5282
    %v5284 = vpop.xlane.xlu0 %5283
    %v5285 = vsel %vm369, %v5259, 0.0
    %5286 = vadd.xlane.f32.xlu0 %v5285
    %v5287 = vpop.xlane.xlu0 %5286
    %v5288 = vsel %vm369, %v5260, 0.0
    %5289 = vadd.xlane.f32.xlu0 %v5288
    %v5290 = vpop.xlane.xlu0 %5289
    %v5291 = vsel %vm369, %v5261, 0.0
    %5292 = vadd.xlane.f32.xlu0 %v5291
    %v5293 = vpop.xlane.xlu0 %5292
    %v5294 = vsel %vm369, %v5262, 0.0
    %5295 = vadd.xlane.f32.xlu0 %v5294
    %v5296 = vpop.xlane.xlu0 %5295
    %v5297 = vsel %vm369, %v5263, 0.0
    %5298 = vadd.xlane.f32.xlu0 %v5297
    %v5299 = vpop.xlane.xlu0 %5298
    %v5300 = vsel %vm369, %v5264, 0.0
    %5301 = vadd.xlane.f32.xlu0 %v5300
    %v5302 = vpop.xlane.xlu0 %5301
    %v5303 = vsel %vm369, %v5265, 0.0
    %5304 = vadd.xlane.f32.xlu0 %v5303
    %v5305 = vpop.xlane.xlu0 %5304
    %v5306 = vsel %vm369, %v5266, 0.0
    %5307 = vadd.xlane.f32.xlu0 %v5306
    %v5308 = vpop.xlane.xlu0 %5307
    %v5309 = vsel %vm369, %v5267, 0.0
    %5310 = vadd.xlane.f32.xlu0 %v5309
    %v5311 = vpop.xlane.xlu0 %5310
    %v5312 = vsel %vm369, %v5268, 0.0
    %5313 = vadd.xlane.f32.xlu0 %v5312
    %v5314 = vpop.xlane.xlu0 %5313
    %v5315 = vsel %vm369, %v5269, 0.0
    %5316 = vadd.xlane.f32.xlu0 %v5315
    %v5317 = vpop.xlane.xlu0 %5316
    %v5318 = vmul.f32 %v5272, %v2498
    %v5319 = vmul.f32 %v5275, %v2498
    %v5320 = vmul.f32 %v5278, %v2498
    %v5321 = vmul.f32 %v5281, %v2498
    %v5322 = vmul.f32 %v5284, %v2498
    %v5323 = vmul.f32 %v5287, %v2498
    %v5324 = vmul.f32 %v5290, %v2498
    %v5325 = vmul.f32 %v5293, %v2498
    %v5326 = vmul.f32 %v5296, %v2498
    %v5327 = vmul.f32 %v5299, %v2498
    %v5328 = vmul.f32 %v5302, %v2498
    %v5329 = vmul.f32 %v5305, %v2498
    %v5330 = vmul.f32 %v5308, %v2498
    %v5331 = vmul.f32 %v5311, %v2498
    %v5332 = vmul.f32 %v5314, %v2498
    %v5333 = vmul.f32 %v5317, %v2498
    %v5334 = vsub.f32 %v5254, %v5318
    %v5335 = vsub.f32 %v5255, %v5319
    %v5336 = vsub.f32 %v5256, %v5320
    %v5337 = vsub.f32 %v5257, %v5321
    %v5338 = vsub.f32 %v5258, %v5322
    %v5339 = vsub.f32 %v5259, %v5323
    %v5340 = vsub.f32 %v5260, %v5324
    %v5341 = vsub.f32 %v5261, %v5325
    %v5342 = vsub.f32 %v5262, %v5326
    %v5343 = vsub.f32 %v5263, %v5327
    %v5344 = vsub.f32 %v5264, %v5328
    %v5345 = vsub.f32 %v5265, %v5329
    %v5346 = vsub.f32 %v5266, %v5330
    %v5347 = vsub.f32 %v5267, %v5331
    %v5348 = vsub.f32 %v5268, %v5332
    %v5349 = vsub.f32 %v5269, %v5333
    %v5350 = vmul.f32 %v5334, %v5334
    %v5351 = vmul.f32 %v5335, %v5335
    %v5352 = vmul.f32 %v5336, %v5336
    %v5353 = vmul.f32 %v5337, %v5337
    %v5354 = vmul.f32 %v5338, %v5338
    %v5355 = vmul.f32 %v5339, %v5339
    %v5356 = vmul.f32 %v5340, %v5340
    %v5357 = vmul.f32 %v5341, %v5341
    %v5358 = vmul.f32 %v5342, %v5342
    %v5359 = vmul.f32 %v5343, %v5343
    %v5360 = vmul.f32 %v5344, %v5344
    %v5361 = vmul.f32 %v5345, %v5345
    %v5362 = vmul.f32 %v5346, %v5346
    %v5363 = vmul.f32 %v5347, %v5347
    %v5364 = vmul.f32 %v5348, %v5348
    %v5365 = vmul.f32 %v5349, %v5349
    %v5366 = vsel %vm369, %v5350, 0.0
    %5367 = vadd.xlane.f32.xlu0 %v5366
    %v5368 = vpop.xlane.xlu0 %5367
    %v5369 = vsel %vm369, %v5351, 0.0
    %5370 = vadd.xlane.f32.xlu0 %v5369
    %v5371 = vpop.xlane.xlu0 %5370
    %v5372 = vsel %vm369, %v5352, 0.0
    %5373 = vadd.xlane.f32.xlu0 %v5372
    %v5374 = vpop.xlane.xlu0 %5373
    %v5375 = vsel %vm369, %v5353, 0.0
    %5376 = vadd.xlane.f32.xlu0 %v5375
    %v5377 = vpop.xlane.xlu0 %5376
    %v5378 = vsel %vm369, %v5354, 0.0
    %5379 = vadd.xlane.f32.xlu0 %v5378
    %v5380 = vpop.xlane.xlu0 %5379
    %v5381 = vsel %vm369, %v5355, 0.0
    %5382 = vadd.xlane.f32.xlu0 %v5381
    %v5383 = vpop.xlane.xlu0 %5382
    %v5384 = vsel %vm369, %v5356, 0.0
    %5385 = vadd.xlane.f32.xlu0 %v5384
    %v5386 = vpop.xlane.xlu0 %5385
    %v5387 = vsel %vm369, %v5357, 0.0
    %5388 = vadd.xlane.f32.xlu0 %v5387
    %v5389 = vpop.xlane.xlu0 %5388
    %v5390 = vsel %vm369, %v5358, 0.0
    %5391 = vadd.xlane.f32.xlu0 %v5390
    %v5392 = vpop.xlane.xlu0 %5391
    %v5393 = vsel %vm369, %v5359, 0.0
    %5394 = vadd.xlane.f32.xlu0 %v5393
    %v5395 = vpop.xlane.xlu0 %5394
    %v5396 = vsel %vm369, %v5360, 0.0
    %5397 = vadd.xlane.f32.xlu0 %v5396
    %v5398 = vpop.xlane.xlu0 %5397
    %v5399 = vsel %vm369, %v5361, 0.0
    %5400 = vadd.xlane.f32.xlu0 %v5399
    %v5401 = vpop.xlane.xlu0 %5400
    %v5402 = vsel %vm369, %v5362, 0.0
    %5403 = vadd.xlane.f32.xlu0 %v5402
    %v5404 = vpop.xlane.xlu0 %5403
    %v5405 = vsel %vm369, %v5363, 0.0
    %5406 = vadd.xlane.f32.xlu0 %v5405
    %v5407 = vpop.xlane.xlu0 %5406
    %v5408 = vsel %vm369, %v5364, 0.0
    %5409 = vadd.xlane.f32.xlu0 %v5408
    %v5410 = vpop.xlane.xlu0 %5409
    %v5411 = vsel %vm369, %v5365, 0.0
    %5412 = vadd.xlane.f32.xlu0 %v5411
    %v5413 = vpop.xlane.xlu0 %5412
    %v5414 = vmul.f32 %v5368, %v2498
    %v5415 = vmul.f32 %v5371, %v2498
    %v5416 = vmul.f32 %v5374, %v2498
    %v5417 = vmul.f32 %v5377, %v2498
    %v5418 = vmul.f32 %v5380, %v2498
    %v5419 = vmul.f32 %v5383, %v2498
    %v5420 = vmul.f32 %v5386, %v2498
    %v5421 = vmul.f32 %v5389, %v2498
    %v5422 = vmul.f32 %v5392, %v2498
    %v5423 = vmul.f32 %v5395, %v2498
    %v5424 = vmul.f32 %v5398, %v2498
    %v5425 = vmul.f32 %v5401, %v2498
    %v5426 = vmul.f32 %v5404, %v2498
    %v5427 = vmul.f32 %v5407, %v2498
    %v5428 = vmul.f32 %v5410, %v2498
    %v5429 = vmul.f32 %v5413, %v2498
    %v5430 = vadd.f32 %v5414, 1e-05
    %v5431 = vadd.f32 %v5415, 1e-05
    %v5432 = vadd.f32 %v5416, 1e-05
    %v5433 = vadd.f32 %v5417, 1e-05
    %v5434 = vadd.f32 %v5418, 1e-05
    %v5435 = vadd.f32 %v5419, 1e-05
    %v5436 = vadd.f32 %v5420, 1e-05
    %v5437 = vadd.f32 %v5421, 1e-05
    %v5438 = vadd.f32 %v5422, 1e-05
    %v5439 = vadd.f32 %v5423, 1e-05
    %v5440 = vadd.f32 %v5424, 1e-05
    %v5441 = vadd.f32 %v5425, 1e-05
    %v5442 = vadd.f32 %v5426, 1e-05
    %v5443 = vadd.f32 %v5427, 1e-05
    %v5444 = vadd.f32 %v5428, 1e-05
    %v5445 = vadd.f32 %v5429, 1e-05
    %v5446 = vrsqrt.pop %v5430
    %v5447 = vrsqrt.pop %v5431
    %v5448 = vrsqrt.pop %v5432
    %v5449 = vrsqrt.pop %v5433
    %v5450 = vrsqrt.pop %v5434
    %v5451 = vrsqrt.pop %v5435
    %v5452 = vrsqrt.pop %v5436
    %v5453 = vrsqrt.pop %v5437
    %v5454 = vrsqrt.pop %v5438
    %v5455 = vrsqrt.pop %v5439
    %v5456 = vrsqrt.pop %v5440
    %v5457 = vrsqrt.pop %v5441
    %v5458 = vrsqrt.pop %v5442
    %v5459 = vrsqrt.pop %v5443
    %v5460 = vrsqrt.pop %v5444
    %v5461 = vrsqrt.pop %v5445
    %v5462 = vmul.f32 %v5334, %v5446
    %v5463 = vmul.f32 %v5335, %v5447
    %v5464 = vmul.f32 %v5336, %v5448
    %v5465 = vmul.f32 %v5337, %v5449
    %v5466 = vmul.f32 %v5338, %v5450
    %v5467 = vmul.f32 %v5339, %v5451
    %v5468 = vmul.f32 %v5340, %v5452
    %v5469 = vmul.f32 %v5341, %v5453
    %v5470 = vmul.f32 %v5342, %v5454
    %v5471 = vmul.f32 %v5343, %v5455
    %v5472 = vmul.f32 %v5344, %v5456
    %v5473 = vmul.f32 %v5345, %v5457
    %v5474 = vmul.f32 %v5346, %v5458
    %v5475 = vmul.f32 %v5347, %v5459
    %v5476 = vmul.f32 %v5348, %v5460
    %v5477 = vmul.f32 %v5349, %v5461
    %s5478 = scalar_lea.vmem %s21, 1
    %v5479 = vld [vmem:[%s5478] sm:$0x1]
    %v5481 = vlaneseq
    %v5482 = vshrl.u32 %v5481, 7
    %v5483 = vsub.s32 0, %v5482
    %v5484 = vrot.slane %v5479, %v5483
    %v5486 = vmul.f32 %v5462, %v5484
    %v5487 = vmul.f32 %v5463, %v5484
    %v5488 = vmul.f32 %v5464, %v5484
    %v5489 = vmul.f32 %v5465, %v5484
    %v5490 = vmul.f32 %v5466, %v5484
    %v5491 = vmul.f32 %v5467, %v5484
    %v5492 = vmul.f32 %v5468, %v5484
    %v5493 = vmul.f32 %v5469, %v5484
    %v5494 = vmul.f32 %v5470, %v5484
    %v5495 = vmul.f32 %v5471, %v5484
    %v5496 = vmul.f32 %v5472, %v5484
    %v5497 = vmul.f32 %v5473, %v5484
    %v5498 = vmul.f32 %v5474, %v5484
    %v5499 = vmul.f32 %v5475, %v5484
    %v5500 = vmul.f32 %v5476, %v5484
    %v5501 = vmul.f32 %v5477, %v5484
    %s5502 = scalar_lea.vmem %s22, 1
    %v5503 = vld [vmem:[%s5502] sm:$0x1]
    %v5505 = vlaneseq
    %v5506 = vshrl.u32 %v5505, 7
    %v5507 = vsub.s32 0, %v5506
    %v5508 = vrot.slane %v5503, %v5507
    %v5510 = vadd.f32 %v5486, %v5508
    %v5511 = vadd.f32 %v5487, %v5508
    %v5512 = vadd.f32 %v5488, %v5508
    %v5513 = vadd.f32 %v5489, %v5508
    %v5514 = vadd.f32 %v5490, %v5508
    %v5515 = vadd.f32 %v5491, %v5508
    %v5516 = vadd.f32 %v5492, %v5508
    %v5517 = vadd.f32 %v5493, %v5508
    %v5518 = vadd.f32 %v5494, %v5508
    %v5519 = vadd.f32 %v5495, %v5508
    %v5520 = vadd.f32 %v5496, %v5508
    %v5521 = vadd.f32 %v5497, %v5508
    %v5522 = vadd.f32 %v5498, %v5508
    %v5523 = vadd.f32 %v5499, %v5508
    %v5524 = vadd.f32 %v5500, %v5508
    %v5525 = vadd.f32 %v5501, %v5508
    %v5526 = vsel %vm369, %v5510, 0.0
    %v5527 = vsel %vm369, %v5511, 0.0
    %v5528 = vadd.f32 %v5526, %v5527
    %v5529 = vsel %vm369, %v5512, 0.0
    %v5530 = vadd.f32 %v5528, %v5529
    %v5531 = vsel %vm369, %v5513, 0.0
    %v5532 = vadd.f32 %v5530, %v5531
    %v5533 = vsel %vm369, %v5514, 0.0
    %v5534 = vadd.f32 %v5532, %v5533
    %v5535 = vsel %vm369, %v5515, 0.0
    %v5536 = vadd.f32 %v5534, %v5535
    %v5537 = vsel %vm369, %v5516, 0.0
    %v5538 = vadd.f32 %v5536, %v5537
    %v5539 = vsel %vm369, %v5517, 0.0
    %v5540 = vadd.f32 %v5538, %v5539
    %v5541 = vrot.slane %v5540, 4
    %v5542 = vadd.f32 %v5540, %v5541
    %v5543 = vrot.slane %v5542, 2
    %v5544 = vadd.f32 %v5542, %v5543
    %v5545 = vrot.slane %v5544, 1
    %v5546 = vadd.f32 %v5544, %v5545
    %v5547 = vmul.f32 %v5546, 0.015625
    %v5548 = vsel %vm369, %v5518, 0.0
    %v5549 = vsel %vm369, %v5519, 0.0
    %v5550 = vadd.f32 %v5548, %v5549
    %v5551 = vsel %vm369, %v5520, 0.0
    %v5552 = vadd.f32 %v5550, %v5551
    %v5553 = vsel %vm369, %v5521, 0.0
    %v5554 = vadd.f32 %v5552, %v5553
    %v5555 = vsel %vm369, %v5522, 0.0
    %v5556 = vadd.f32 %v5554, %v5555
    %v5557 = vsel %vm369, %v5523, 0.0
    %v5558 = vadd.f32 %v5556, %v5557
    %v5559 = vsel %vm369, %v5524, 0.0
    %v5560 = vadd.f32 %v5558, %v5559
    %v5561 = vsel %vm369, %v5525, 0.0
    %v5562 = vadd.f32 %v5560, %v5561
    %v5563 = vrot.slane %v5562, 4
    %v5564 = vadd.f32 %v5562, %v5563
    %v5565 = vrot.slane %v5564, 2
    %v5566 = vadd.f32 %v5564, %v5565
    %v5567 = vrot.slane %v5566, 1
    %v5568 = vadd.f32 %v5566, %v5567
    %v5569 = vmul.f32 %v5568, 0.015625
    %vm5570 = vcmask 1040384
    %v5571 = vsel %vm5570, %v5547, %v5569
    %v5572 = vpack.c.bf16 %v5571, %v5571
    %v5573 = vld [vmem:[%s25] sm:$0xf]
    %v5574 = vld [vmem:[%s25 + $0x4] sm:$0xf]
    %v5575 = vld [vmem:[%s25 + $0x8] sm:$0xf]
    %v5576 = vld [vmem:[%s25 + $0xc] sm:$0xf]
    %v5577 = vld [vmem:[%s25 + $0x10] sm:$0xf]
    %v5578 = vld [vmem:[%s25 + $0x14] sm:$0xf]
    %v5579 = vld [vmem:[%s25 + $0x18] sm:$0xf]
    %v5580 = vld [vmem:[%s25 + $0x1c] sm:$0xf]
    %v5581 = vld [vmem:[%s26] sm:$0x1]
    %v5583 = vlaneseq
    %v5584 = vshrl.u32 %v5583, 7
    %v5585 = vsub.s32 0, %v5584
    %v5586 = vrot.slane %v5581, %v5585
    %v5596 = vunpack.c.l.b16 %v5573
    %v5597 = vunpack.c.l.b16 %v5574
    %v5598 = vunpack.c.l.b16 %v5575
    %v5599 = vunpack.c.l.b16 %v5576
    %v5600 = vunpack.c.l.b16 %v5577
    %v5601 = vunpack.c.l.b16 %v5578
    %v5602 = vunpack.c.l.b16 %v5579
    %v5603 = vunpack.c.l.b16 %v5580
    %v5604 = vpack.c.b16 %v5597, %v5596
    %v5605 = vpack.c.b16 %v5599, %v5598
    %v5606 = vpack.c.b16 %v5601, %v5600
    %v5607 = vpack.c.b16 %v5603, %v5602
    %v5613 = vsel %vm369, %v5572, 0
    %5615 = vmatprep.subr.bf16.mxu0 0
    %5616 = vmatpush1.bf16.msra.mxu0 %v5604
    %5617 = vmatprep.subr.bf16.mxu0 0
    %5618 = vmatpush1.bf16.msra.mxu0 %v5605
    %5619 = vmatprep.subr.bf16.mxu0 0
    %5620 = vmatpush1.bf16.msra.mxu0 %v5606
    %5621 = vmatprep.subr.bf16.mxu0 0
    %5622 = vmatpush1.bf16.msra.mxu0 %v5607
    %5623 = vmatprep.subr.bf16.mxu0 0
    %5624 = vmatpush1.bf16.msra.mxu0 0
    %5625 = vmatprep.subr.bf16.mxu0 0
    %5626 = vmatpush1.bf16.msra.mxu0 0
    %5627 = vmatprep.subr.bf16.mxu0 0
    %5628 = vmatpush1.bf16.msra.mxu0 0
    %5629 = vmatprep.subr.bf16.mxu0 0
    %5630 = vmatpush1.bf16.msra.mxu0 0
    %5631 = vmatprep.subr.bf16.mxu0 0
    %5632 = vmatpush1.bf16.msra.mxu0 0
    %5633 = vmatprep.subr.bf16.mxu0 0
    %5634 = vmatpush1.bf16.msra.mxu0 0
    %5635 = vmatprep.subr.bf16.mxu0 0
    %5636 = vmatpush1.bf16.msra.mxu0 0
    %5637 = vmatprep.subr.bf16.mxu0 0
    %5638 = vmatpush1.bf16.msra.mxu0 0
    %5639 = vmatprep.subr.bf16.mxu0 0
    %5640 = vmatpush1.bf16.msra.mxu0 0
    %5641 = vmatprep.subr.bf16.mxu0 0
    %5642 = vmatpush1.bf16.msra.mxu0 0
    %5643 = vmatprep.subr.bf16.mxu0 0
    %5644 = vmatpush1.bf16.msra.mxu0 0
    %5645 = vmatprep.subr.bf16.mxu0 0
    %5646 = vmatpush1.bf16.msra.mxu0 0
    %5647 = vmatprep.mubr.bf16.mxu0 0
    %5648 = vmatmul.mubr.bf16.gmra.mrb[0].mxu0 %v5613
    %v5649 = vpop.f32.mrb[0].mxu0
    %v5650 = vadd.f32 %v5586, %v5649
    %v5651 = vpop.f32.mrb[0].mxu0
    %v5652 = vpop.f32.mrb[0].mxu0
    %v5653 = vpop.f32.mrb[0].mxu0
    %5654 = vdwg.mxu0
    %5655 = vst [vmem:[#allocation2] sm:$0x3] %v5650
    // Predicated region
    $region110: #{supervised_video_classifier_forward.1} parent=1 // pred_check
      _
    $region111: #{supervised_video_classifier_forward.1} parent=1 // pred_check_branch
      %5657 = sbr.rel (0) target = $region113
    $region112: #{supervised_video_classifier_forward.1} parent=1 // pred_region
      %s5659 = ssub.s32 32, 32
      %5660 = vsyncadd [#allocation3], %s5659
      %s5662 = sshll.u32 [#allocation2], 4
      %s5663 = int_to_ptr.vmem [resolvable:$true] %s5662
      %5665 = dma.vmem_to_hbm [thread:$0]  %s5663, 32, %s27, [#allocation3]
    $region113: #{supervised_video_classifier_forward.1} parent=1 // pred_fallthru
      _
    // Predicated region
    $region114: #{supervised_video_classifier_forward.1} parent=1 // pred_check
      _
    $region115: #{supervised_video_classifier_forward.1} parent=1 // pred_check_branch
      %5667 = sbr.rel (0) target = $region117
    $region116: #{supervised_video_classifier_forward.1} parent=1 // pred_region
      %5668 = dma.done [#allocation3], 32
    $region117: #{supervised_video_classifier_forward.1} parent=1 // pred_fallthru
      _
    %5669 = vsyncpa [#allocation3], 1

</llo_original>
